<compile_context>
chip_gen: v7x
topology: tpu7x:2x2x1
jax: 0.10.0
libtpu: 0.0.40
codegen_flags: <defaults>
</compile_context>

<pallas_src>
import functools
import math

import jax
import jax.numpy as jnp
from jax.experimental import pallas as pl
from jax.experimental.pallas import tpu as pltpu


# ----------------------------------------------------------------------------
# Pallas kernel: fused conv(matmul) + bias + InstanceNorm + LeakyReLU
# ----------------------------------------------------------------------------
def _conv_block_kernel(cols_ref, w_ref, b_ref, o_ref, *, use_in, use_act):
    """One (group, batch) block: o = lrelu(instnorm(cols @ w + b)).

    cols_ref: (1, 1, HW, K)    bf16  im2col patches of one image
    w_ref   : (1, K, Cout)     bf16  packed conv weight for this group
    b_ref   : (1, 1, Cout)     f32   bias
    o_ref   : (1, 1, HW, Cout) f32
    """
    a = cols_ref[0, 0]                       # (HW, K)    bf16
    w = w_ref[0]                             # (K, Cout)  bf16
    acc = jnp.dot(a, w, preferred_element_type=jnp.float32)   # MXU, f32 acc
    acc = acc + b_ref[0]                     # (1, Cout) broadcasts over HW
    if use_in:
        # InstanceNorm2d(affine=False, eps=1e-5): biased stats over spatial.
        mean = jnp.mean(acc, axis=0, keepdims=True)
        var = jnp.mean(jnp.square(acc - mean), axis=0, keepdims=True)
        acc = (acc - mean) * jax.lax.rsqrt(var + 1e-5)
    if use_act:
        acc = jnp.where(acc >= 0.0, acc, 0.2 * acc)   # LeakyReLU(0.2), f32
    o_ref[0, 0] = acc


# ----------------------------------------------------------------------------
# XLA glue: im2col (static slices only) + wrapper around the fused kernel
# ----------------------------------------------------------------------------
def _im2col(x, kh, kw, stride, pad):
    """x: (..., H, W, C) -> (..., Ho*Wo, kh*kw*C), Ho, Wo."""
    *lead, h, w, c = x.shape
    xp = jnp.pad(x, [(0, 0)] * len(lead) + [(pad, pad), (pad, pad), (0, 0)])
    ho = (h + 2 * pad - kh) // stride + 1
    wo = (w + 2 * pad - kw) // stride + 1
    patches = []
    for i in range(kh):
        for j in range(kw):
            patches.append(
                xp[..., i:i + stride * ho:stride, j:j + stride * wo:stride, :])
    cols = jnp.concatenate(patches, axis=-1)          # (..., Ho, Wo, kh*kw*C)
    return cols.reshape(*lead, ho * wo, kh * kw * c), ho, wo


def fused_conv_block(x, w2d, b2d, stride, pad, *, use_in, use_act):
    """Conv + bias (+ InstanceNorm) (+ LeakyReLU) as a single pallas_call.

    x   : (G, N, H, W, Cin) f32   activations, G independent weight groups
    w2d : (G, K, Cout)      bf16  packed weight, K = kh*kw*Cin
    b2d : (G, 1, Cout)      f32
    returns (G, N, Ho, Wo, Cout) f32
    """
    g, n, _, _, cin = x.shape
    k, cout = w2d.shape[1], w2d.shape[2]
    kh = kw = int(round(math.sqrt(k // cin)))
    assert kh * kw * cin == k, "weight / activation channel mismatch"

    cols, ho, wo = _im2col(x, kh, kw, stride, pad)    # (G, N, HW, K) f32
    cols = cols.astype(jnp.bfloat16)                  # MXU operands in bf16
    hw = ho * wo

    out = pl.pallas_call(
        functools.partial(_conv_block_kernel, use_in=use_in, use_act=use_act),
        out_shape=jax.ShapeDtypeStruct((g, n, hw, cout), jnp.float32),
        grid=(g, n),
        in_specs=[
            pl.BlockSpec((1, 1, hw, k), lambda gi, ni: (gi, ni, 0, 0)),
            pl.BlockSpec((1, k, cout), lambda gi, ni: (gi, 0, 0)),
            pl.BlockSpec((1, 1, cout), lambda gi, ni: (gi, 0, 0)),
        ],
        out_specs=pl.BlockSpec((1, 1, hw, cout), lambda gi, ni: (gi, ni, 0, 0)),
        compiler_params=pltpu.CompilerParams(
            dimension_semantics=("parallel", "parallel")),
    )(cols, w2d, b2d)
    return out.reshape(g, n, ho, wo, cout)


# ----------------------------------------------------------------------------
# Parameters: PyTorch-style init, then one-time spectral-norm + packing
# ----------------------------------------------------------------------------
def _conv_init(key, c_out, c_in, kh, kw):
    k_w, k_b = jax.random.split(key)
    fan_in = c_in * kh * kw
    bound = 1.0 / math.sqrt(fan_in)
    w = jax.random.uniform(k_w, (c_out, c_in, kh, kw), jnp.float32, -bound, bound)
    b = jax.random.uniform(k_b, (c_out,), jnp.float32, -bound, bound)
    return w, b


def init_params(key, image_size, branch_width, in_channels, channels,
                max_channels=512):
    """Raw OIHW parameters mirroring the PyTorch Discriminator layout."""
    shallow_downs = int(math.log2(image_size) - math.log2(branch_width))
    head_downs = int(math.log2(branch_width) - 1)
    n_keys = 1 + shallow_downs + 2 * (head_downs + 1)
    key_it = iter(jax.random.split(key, n_keys))
    next_key = key_it.__next__

    params = {"input": _conv_init(next_key(), channels, in_channels, 7, 7)}

    shared = []
    och, ch = channels, channels
    for _ in range(shallow_downs):
        ch *= 2
        ich, och = och, min(max_channels, ch)
        shared.append(_conv_init(next_key(), och, ich, 3, 3))
    params["shared"] = shared

    def head(ch_in):
        layers, och_h, ch_h = [], ch_in, ch_in
        for _ in range(head_downs):
            ch_h *= 2
            ich, och_h = och_h, min(max_channels, ch_h)
            layers.append(_conv_init(next_key(), och_h, ich, 3, 3))
        output = _conv_init(next_key(), 1, och_h, 3, 3)
        return {"layers": layers, "output": output}

    # DiscHead receives the raw doubled `channels`, like the PyTorch module.
    params["A_head"] = head(ch)
    params["B_head"] = head(ch)
    return params


def spectral_normalize(w, n_iter=30):
    """w / sigma_max(w) via power iteration.  One-time parameter prep; this
    approximates PyTorch spectral_norm's persistent-u estimate at eval time."""
    w_mat = w.reshape(w.shape[0], -1).astype(jnp.float32)
    u = jnp.ones((w_mat.shape[0],), jnp.float32)
    u = u / jnp.linalg.norm(u)
    v = jnp.zeros((w_mat.shape[1],), jnp.float32)
    for _ in range(n_iter):
        v = w_mat.T @ u
        v = v / (jnp.linalg.norm(v) + 1e-12)
        u = w_mat @ v
        u = u / (jnp.linalg.norm(u) + 1e-12)
    sigma = u @ (w_mat @ v)
    return w / sigma


def _pack_conv(w, b):
    """Spectral-norm + OIHW -> (kh*kw*I, O) packing (matches im2col order)."""
    w = spectral_normalize(w)
    o, i, kh, kw = w.shape
    w2d = jnp.transpose(w, (2, 3, 1, 0)).reshape(kh * kw * i, o)
    return w2d.astype(jnp.bfloat16), b.reshape(1, o).astype(jnp.float32)


def prepare_params(params):
    """One-time parameter prep, hoisted out of the jitted forward pass."""
    packed = {}
    wi, bi = _pack_conv(*params["input"])
    packed["input"] = {"w": wi[None], "b": bi[None]}              # G = 1
    packed["shared"] = [
        {"w": w[None], "b": b[None]}
        for (w, b) in (_pack_conv(*l) for l in params["shared"])]
    # A/B heads have identical shapes -> stack along a leading group axis
    # (G = 2) so both heads run inside the same pallas_call.
    head_layers = []
    for la, lb in zip(params["A_head"]["layers"], params["B_head"]["layers"]):
        wa, ba = _pack_conv(*la)
        wb, bb = _pack_conv(*lb)
        head_layers.append({"w": jnp.stack([wa, wb]), "b": jnp.stack([ba, bb])})
    packed["head_layers"] = head_layers
    wa, ba = _pack_conv(*params["A_head"]["output"])
    wb, bb = _pack_conv(*params["B_head"]["output"])
    packed["head_output"] = {"w": jnp.stack([wa, wb]), "b": jnp.stack([ba, bb])}
    return packed


# ----------------------------------------------------------------------------
# Discriminator forward
# ----------------------------------------------------------------------------
def discriminator_forward(packed, x_nchw):
    """Returns (a_prob, b_prob, shallow_feats, a_feats, b_feats) in NCHW,
    matching Discriminator.forward(x, return_features=True)."""
    to_nchw = lambda t: jnp.transpose(t, (0, 3, 1, 2))
    x = jnp.transpose(x_nchw, (0, 2, 3, 1)).astype(jnp.float32)   # NHWC
    x = x[None]                                                   # (1, N, H, W, C)

    # input: Conv2d(in, ch, 7, 1, 3) + LeakyReLU(0.2)
    p = packed["input"]
    x = fused_conv_block(x, p["w"], p["b"], 1, 3, use_in=False, use_act=True)

    # shared trunk: [Conv 3x3 s2 p1 + InstanceNorm + LeakyReLU] * shallow_downs
    shallow_feats = []
    for p in packed["shared"]:
        x = fused_conv_block(x, p["w"], p["b"], 2, 1, use_in=True, use_act=True)
        shallow_feats.append(to_nchw(x[0]))

    # A/B heads, evaluated together along the leading group axis.
    xh = jnp.concatenate([x, x], axis=0)                          # (2, N, h, w, c)
    a_feats, b_feats = [], []
    for p in packed["head_layers"]:
        xh = fused_conv_block(xh, p["w"], p["b"], 2, 1, use_in=True, use_act=True)
        a_feats.append(to_nchw(xh[0]))
        b_feats.append(to_nchw(xh[1]))

    p = packed["head_output"]
    out = fused_conv_block(xh, p["w"], p["b"], 2, 1, use_in=False, use_act=False)
    a_prob, b_prob = to_nchw(out[0]), to_nchw(out[1])
    return a_prob, b_prob, shallow_feats, a_feats, b_feats


# ----------------------------------------------------------------------------
if __name__ == "__main__":
    image_size = 16
    branch_width = 4
    in_channels = 3
    channels = 8
    batch = 2

    key = jax.random.PRNGKey(0)
    k_params, k_x = jax.random.split(key)
    params = init_params(k_params, image_size, branch_width, in_channels, channels)
    packed = prepare_params(params)       # one-time: spectral norm + packing

    x = jax.random.normal(
        k_x, (batch, in_channels, image_size, image_size), dtype=jnp.float32)

    fwd = jax.jit(discriminator_forward)
    a_prob, b_prob, shallow_feats, a_feats, b_feats = fwd(packed, x)
    jax.block_until_ready((a_prob, b_prob, shallow_feats, a_feats, b_feats))

    # Expected shapes (mirrors the PyTorch module's channel bookkeeping).
    shallow_downs = int(math.log2(image_size) - math.log2(branch_width))
    head_downs = int(math.log2(branch_width) - 1)
    s, ch = image_size, channels
    exp_shallow = []
    for _ in range(shallow_downs):
        ch = min(512, ch * 2)
        s //= 2
        exp_shallow.append((batch, ch, s, s))
    exp_head = []
    for _ in range(head_downs):
        ch = min(512, ch * 2)
        s //= 2
        exp_head.append((batch, ch, s, s))
    s_out = (s + 2 - 3) // 2 + 1

    assert a_prob.shape == (batch, 1, s_out, s_out), a_prob.shape
    assert b_prob.shape == (batch, 1, s_out, s_out), b_prob.shape
    assert [f.shape for f in shallow_feats] == exp_shallow
    assert [f.shape for f in a_feats] == exp_head
    assert [f.shape for f in b_feats] == exp_head
    for t in [a_prob, b_prob, *shallow_feats, *a_feats, *b_feats]:
        assert bool(jnp.all(jnp.isfinite(t)))
    print("KERNEL_OK")
</pallas_src>

<mosaic_0001>
module attributes {stable_mosaic.version = 11 : i64} {
  func.func @_conv_block_kernel(%arg0: i32, %arg1: i32, %arg2: memref<1x1x256x147xbf16, #tpu.memory_space<vmem>>, %arg3: memref<1x147x8xbf16, #tpu.memory_space<vmem>>, %arg4: memref<1x1x8xf32, #tpu.memory_space<vmem>>, %arg5: memref<1x1x256x8xf32, #tpu.memory_space<vmem>>) attributes {dimension_semantics = [#tpu.dimension_semantics<parallel>, #tpu.dimension_semantics<parallel>], iteration_bounds = array<i64: 1, 2>, scalar_prefetch = 0 : i64, scratch_operands = 0 : i64, tpu.core_type = #tpu.core_type<tc>, window_params = [{transform_indices = @transform_0, window_bounds = array<i64: 1, 1, 256, 147>}, {transform_indices = @transform_1, window_bounds = array<i64: 1, 147, 8>}, {transform_indices = @transform_2, window_bounds = array<i64: 1, 1, 8>}, {transform_indices = @transform_3, window_bounds = array<i64: 1, 1, 256, 8>}]} {
    %c0 = arith.constant 0 : index
    %c0_0 = arith.constant 0 : index
    %c0_1 = arith.constant 0 : index
    %c0_2 = arith.constant 0 : index
    %0 = vector.load %arg2[%c0, %c0_0, %c0_1, %c0_2] : memref<1x1x256x147xbf16, #tpu.memory_space<vmem>>, vector<1x1x256x147xbf16>
    %1 = vector.shape_cast %0 : vector<1x1x256x147xbf16> to vector<256x147xbf16>
    %c0_3 = arith.constant 0 : index
    %c0_4 = arith.constant 0 : index
    %c0_5 = arith.constant 0 : index
    %2 = vector.load %arg3[%c0_3, %c0_4, %c0_5] : memref<1x147x8xbf16, #tpu.memory_space<vmem>>, vector<1x147x8xbf16>
    %3 = vector.shape_cast %2 : vector<1x147x8xbf16> to vector<147x8xbf16>
    %cst = arith.constant dense<0.000000e+00> : vector<256x8xf32>
    %4 = tpu.matmul %1, %3, %cst {dimension_numbers = #tpu.dot_dimension_numbers<[1], [0], [0], [1], [0, 0, 1, 1], [], []>} : vector<256x147xbf16>, vector<147x8xbf16>, vector<256x8xf32> -> vector<256x8xf32>
    %c0_6 = arith.constant 0 : index
    %c0_7 = arith.constant 0 : index
    %c0_8 = arith.constant 0 : index
    %5 = vector.load %arg4[%c0_6, %c0_7, %c0_8] : memref<1x1x8xf32, #tpu.memory_space<vmem>>, vector<1x1x8xf32>
    %6 = vector.shape_cast %5 : vector<1x1x8xf32> to vector<1x8xf32>
    %7 = vector.broadcast %6 : vector<1x8xf32> to vector<256x8xf32>
    %8 = arith.addf %4, %7 : vector<256x8xf32>
    %cst_9 = arith.constant 0.000000e+00 : f32
    %9 = vector.broadcast %cst_9 : f32 to vector<256x8xf32>
    %10 = arith.cmpf oge, %8, %9 : vector<256x8xf32>
    %cst_10 = arith.constant 2.000000e-01 : f32
    %11 = vector.broadcast %cst_10 : f32 to vector<256x8xf32>
    %12 = arith.mulf %11, %8 : vector<256x8xf32>
    %13 = arith.select %10, %8, %12 : vector<256x8xi1>, vector<256x8xf32>
    %c0_11 = arith.constant 0 : index
    %c0_12 = arith.constant 0 : index
    %c0_13 = arith.constant 0 : index
    %c0_14 = arith.constant 0 : index
    %14 = vector.load %arg5[%c0_11, %c0_12, %c0_13, %c0_14] : memref<1x1x256x8xf32, #tpu.memory_space<vmem>>, vector<1x1x256x8xf32>
    %15 = vector.shape_cast %14 : vector<1x1x256x8xf32> to vector<256x8xf32>
    %16 = vector.shape_cast %13 : vector<256x8xf32> to vector<1x1x256x8xf32>
    tpu.vector_store %arg5[%c0_11, %c0_12, %c0_13, %c0_14], %16 {strides = array<i32>} : memref<1x1x256x8xf32, #tpu.memory_space<vmem>>, vector<1x1x256x8xf32>,
    return
  }
  func.func @transform_0(%arg0: i32, %arg1: i32) -> (i32, i32, i32, i32) {
    %c0_i32 = arith.constant 0 : i32
    %c0_i32_0 = arith.constant 0 : i32
    %c0_i32_1 = arith.constant 0 : i32
    return %arg0, %arg1, %c0_i32, %c0_i32_0 : i32, i32, i32, i32
  }
  func.func @transform_1(%arg0: i32, %arg1: i32) -> (i32, i32, i32) {
    %c0_i32 = arith.constant 0 : i32
    %c0_i32_0 = arith.constant 0 : i32
    %c0_i32_1 = arith.constant 0 : i32
    return %arg0, %c0_i32, %c0_i32_0 : i32, i32, i32
  }
  func.func @transform_2(%arg0: i32, %arg1: i32) -> (i32, i32, i32) {
    %c0_i32 = arith.constant 0 : i32
    %c0_i32_0 = arith.constant 0 : i32
    %c0_i32_1 = arith.constant 0 : i32
    return %arg0, %c0_i32, %c0_i32_0 : i32, i32, i32
  }
  func.func @transform_3(%arg0: i32, %arg1: i32) -> (i32, i32, i32, i32) {
    %c0_i32 = arith.constant 0 : i32
    %c0_i32_0 = arith.constant 0 : i32
    %c0_i32_1 = arith.constant 0 : i32
    return %arg0, %arg1, %c0_i32, %c0_i32_0 : i32, i32, i32, i32
  }
}

module attributes {stable_mosaic.version = 11 : i64} {
  func.func @_conv_block_kernel(%arg0: i32, %arg1: i32, %arg2: memref<1x1x64x72xbf16, #tpu.memory_space<vmem>>, %arg3: memref<1x72x16xbf16, #tpu.memory_space<vmem>>, %arg4: memref<1x1x16xf32, #tpu.memory_space<vmem>>, %arg5: memref<1x1x64x16xf32, #tpu.memory_space<vmem>>) attributes {dimension_semantics = [#tpu.dimension_semantics<parallel>, #tpu.dimension_semantics<parallel>], iteration_bounds = array<i64: 1, 2>, scalar_prefetch = 0 : i64, scratch_operands = 0 : i64, tpu.core_type = #tpu.core_type<tc>, window_params = [{transform_indices = @transform_0, window_bounds = array<i64: 1, 1, 64, 72>}, {transform_indices = @transform_1, window_bounds = array<i64: 1, 72, 16>}, {transform_indices = @transform_2, window_bounds = array<i64: 1, 1, 16>}, {transform_indices = @transform_3, window_bounds = array<i64: 1, 1, 64, 16>}]} {
    %c0 = arith.constant 0 : index
    %c0_0 = arith.constant 0 : index
    %c0_1 = arith.constant 0 : index
    %c0_2 = arith.constant 0 : index
    %0 = vector.load %arg2[%c0, %c0_0, %c0_1, %c0_2] : memref<1x1x64x72xbf16, #tpu.memory_space<vmem>>, vector<1x1x64x72xbf16>
    %1 = vector.shape_cast %0 : vector<1x1x64x72xbf16> to vector<64x72xbf16>
    %c0_3 = arith.constant 0 : index
    %c0_4 = arith.constant 0 : index
    %c0_5 = arith.constant 0 : index
    %2 = vector.load %arg3[%c0_3, %c0_4, %c0_5] : memref<1x72x16xbf16, #tpu.memory_space<vmem>>, vector<1x72x16xbf16>
    %3 = vector.shape_cast %2 : vector<1x72x16xbf16> to vector<72x16xbf16>
    %cst = arith.constant dense<0.000000e+00> : vector<64x16xf32>
    %4 = tpu.matmul %1, %3, %cst {dimension_numbers = #tpu.dot_dimension_numbers<[1], [0], [0], [1], [0, 0, 1, 1], [], []>} : vector<64x72xbf16>, vector<72x16xbf16>, vector<64x16xf32> -> vector<64x16xf32>
    %c0_6 = arith.constant 0 : index
    %c0_7 = arith.constant 0 : index
    %c0_8 = arith.constant 0 : index
    %5 = vector.load %arg4[%c0_6, %c0_7, %c0_8] : memref<1x1x16xf32, #tpu.memory_space<vmem>>, vector<1x1x16xf32>
    %6 = vector.shape_cast %5 : vector<1x1x16xf32> to vector<1x16xf32>
    %7 = vector.broadcast %6 : vector<1x16xf32> to vector<64x16xf32>
    %8 = arith.addf %4, %7 : vector<64x16xf32>
    %cst_9 = arith.constant dense<0.000000e+00> : vector<16xf32>
    %9 = vector.multi_reduction <add>, %8, %cst_9 [0] : vector<64x16xf32> to vector<16xf32>
    %10 = vector.shape_cast %9 : vector<16xf32> to vector<1x16xf32>
    %cst_10 = arith.constant 6.400000e+01 : f32
    %11 = vector.broadcast %cst_10 : f32 to vector<1x16xf32>
    %12 = arith.divf %10, %11 : vector<1x16xf32>
    %13 = vector.broadcast %12 : vector<1x16xf32> to vector<64x16xf32>
    %14 = arith.subf %8, %13 : vector<64x16xf32>
    %15 = arith.mulf %14, %14 : vector<64x16xf32>
    %cst_11 = arith.constant dense<0.000000e+00> : vector<16xf32>
    %16 = vector.multi_reduction <add>, %15, %cst_11 [0] : vector<64x16xf32> to vector<16xf32>
    %17 = vector.shape_cast %16 : vector<16xf32> to vector<1x16xf32>
    %cst_12 = arith.constant 6.400000e+01 : f32
    %18 = vector.broadcast %cst_12 : f32 to vector<1x16xf32>
    %19 = arith.divf %17, %18 : vector<1x16xf32>
    %20 = vector.broadcast %12 : vector<1x16xf32> to vector<64x16xf32>
    %21 = arith.subf %8, %20 : vector<64x16xf32>
    %cst_13 = arith.constant 9.99999974E-6 : f32
    %22 = vector.broadcast %cst_13 : f32 to vector<1x16xf32>
    %23 = arith.addf %19, %22 : vector<1x16xf32>
    %24 = math.rsqrt %23 : vector<1x16xf32>
    %25 = vector.broadcast %24 : vector<1x16xf32> to vector<64x16xf32>
    %26 = arith.mulf %21, %25 : vector<64x16xf32>
    %cst_14 = arith.constant 0.000000e+00 : f32
    %27 = vector.broadcast %cst_14 : f32 to vector<64x16xf32>
    %28 = arith.cmpf oge, %26, %27 : vector<64x16xf32>
    %cst_15 = arith.constant 2.000000e-01 : f32
    %29 = vector.broadcast %cst_15 : f32 to vector<64x16xf32>
    %30 = arith.mulf %29, %26 : vector<64x16xf32>
    %31 = arith.select %28, %26, %30 : vector<64x16xi1>, vector<64x16xf32>
    %c0_16 = arith.constant 0 : index
    %c0_17 = arith.constant 0 : index
    %c0_18 = arith.constant 0 : index
    %c0_19 = arith.constant 0 : index
    %32 = vector.load %arg5[%c0_16, %c0_17, %c0_18, %c0_19] : memref<1x1x64x16xf32, #tpu.memory_space<vmem>>, vector<1x1x64x16xf32>
    %33 = vector.shape_cast %32 : vector<1x1x64x16xf32> to vector<64x16xf32>
    %34 = vector.shape_cast %31 : vector<64x16xf32> to vector<1x1x64x16xf32>
    tpu.vector_store %arg5[%c0_16, %c0_17, %c0_18, %c0_19], %34 {strides = array<i32>} : memref<1x1x64x16xf32, #tpu.memory_space<vmem>>, vector<1x1x64x16xf32>,
    return
  }
  func.func @transform_0(%arg0: i32, %arg1: i32) -> (i32, i32, i32, i32) {
    %c0_i32 = arith.constant 0 : i32
    %c0_i32_0 = arith.constant 0 : i32
    %c0_i32_1 = arith.constant 0 : i32
    return %arg0, %arg1, %c0_i32, %c0_i32_0 : i32, i32, i32, i32
  }
  func.func @transform_1(%arg0: i32, %arg1: i32) -> (i32, i32, i32) {
    %c0_i32 = arith.constant 0 : i32
    %c0_i32_0 = arith.constant 0 : i32
    %c0_i32_1 = arith.constant 0 : i32
    return %arg0, %c0_i32, %c0_i32_0 : i32, i32, i32
  }
  func.func @transform_2(%arg0: i32, %arg1: i32) -> (i32, i32, i32) {
    %c0_i32 = arith.constant 0 : i32
    %c0_i32_0 = arith.constant 0 : i32
    %c0_i32_1 = arith.constant 0 : i32
    return %arg0, %c0_i32, %c0_i32_0 : i32, i32, i32
  }
  func.func @transform_3(%arg0: i32, %arg1: i32) -> (i32, i32, i32, i32) {
    %c0_i32 = arith.constant 0 : i32
    %c0_i32_0 = arith.constant 0 : i32
    %c0_i32_1 = arith.constant 0 : i32
    return %arg0, %arg1, %c0_i32, %c0_i32_0 : i32, i32, i32, i32
  }
}

module attributes {stable_mosaic.version = 11 : i64} {
  func.func @_conv_block_kernel(%arg0: i32, %arg1: i32, %arg2: memref<1x1x16x144xbf16, #tpu.memory_space<vmem>>, %arg3: memref<1x144x32xbf16, #tpu.memory_space<vmem>>, %arg4: memref<1x1x32xf32, #tpu.memory_space<vmem>>, %arg5: memref<1x1x16x32xf32, #tpu.memory_space<vmem>>) attributes {dimension_semantics = [#tpu.dimension_semantics<parallel>, #tpu.dimension_semantics<parallel>], iteration_bounds = array<i64: 1, 2>, scalar_prefetch = 0 : i64, scratch_operands = 0 : i64, tpu.core_type = #tpu.core_type<tc>, window_params = [{transform_indices = @transform_0, window_bounds = array<i64: 1, 1, 16, 144>}, {transform_indices = @transform_1, window_bounds = array<i64: 1, 144, 32>}, {transform_indices = @transform_2, window_bounds = array<i64: 1, 1, 32>}, {transform_indices = @transform_3, window_bounds = array<i64: 1, 1, 16, 32>}]} {
    %c0 = arith.constant 0 : index
    %c0_0 = arith.constant 0 : index
    %c0_1 = arith.constant 0 : index
    %c0_2 = arith.constant 0 : index
    %0 = vector.load %arg2[%c0, %c0_0, %c0_1, %c0_2] : memref<1x1x16x144xbf16, #tpu.memory_space<vmem>>, vector<1x1x16x144xbf16>
    %1 = vector.shape_cast %0 : vector<1x1x16x144xbf16> to vector<16x144xbf16>
    %c0_3 = arith.constant 0 : index
    %c0_4 = arith.constant 0 : index
    %c0_5 = arith.constant 0 : index
    %2 = vector.load %arg3[%c0_3, %c0_4, %c0_5] : memref<1x144x32xbf16, #tpu.memory_space<vmem>>, vector<1x144x32xbf16>
    %3 = vector.shape_cast %2 : vector<1x144x32xbf16> to vector<144x32xbf16>
    %cst = arith.constant dense<0.000000e+00> : vector<16x32xf32>
    %4 = tpu.matmul %1, %3, %cst {dimension_numbers = #tpu.dot_dimension_numbers<[1], [0], [0], [1], [0, 0, 1, 1], [], []>} : vector<16x144xbf16>, vector<144x32xbf16>, vector<16x32xf32> -> vector<16x32xf32>
    %c0_6 = arith.constant 0 : index
    %c0_7 = arith.constant 0 : index
    %c0_8 = arith.constant 0 : index
    %5 = vector.load %arg4[%c0_6, %c0_7, %c0_8] : memref<1x1x32xf32, #tpu.memory_space<vmem>>, vector<1x1x32xf32>
    %6 = vector.shape_cast %5 : vector<1x1x32xf32> to vector<1x32xf32>
    %7 = vector.broadcast %6 : vector<1x32xf32> to vector<16x32xf32>
    %8 = arith.addf %4, %7 : vector<16x32xf32>
    %cst_9 = arith.constant dense<0.000000e+00> : vector<32xf32>
    %9 = vector.multi_reduction <add>, %8, %cst_9 [0] : vector<16x32xf32> to vector<32xf32>
    %10 = vector.shape_cast %9 : vector<32xf32> to vector<1x32xf32>
    %cst_10 = arith.constant 1.600000e+01 : f32
    %11 = vector.broadcast %cst_10 : f32 to vector<1x32xf32>
    %12 = arith.divf %10, %11 : vector<1x32xf32>
    %13 = vector.broadcast %12 : vector<1x32xf32> to vector<16x32xf32>
    %14 = arith.subf %8, %13 : vector<16x32xf32>
    %15 = arith.mulf %14, %14 : vector<16x32xf32>
    %cst_11 = arith.constant dense<0.000000e+00> : vector<32xf32>
    %16 = vector.multi_reduction <add>, %15, %cst_11 [0] : vector<16x32xf32> to vector<32xf32>
    %17 = vector.shape_cast %16 : vector<32xf32> to vector<1x32xf32>
    %cst_12 = arith.constant 1.600000e+01 : f32
    %18 = vector.broadcast %cst_12 : f32 to vector<1x32xf32>
    %19 = arith.divf %17, %18 : vector<1x32xf32>
    %20 = vector.broadcast %12 : vector<1x32xf32> to vector<16x32xf32>
    %21 = arith.subf %8, %20 : vector<16x32xf32>
    %cst_13 = arith.constant 9.99999974E-6 : f32
    %22 = vector.broadcast %cst_13 : f32 to vector<1x32xf32>
    %23 = arith.addf %19, %22 : vector<1x32xf32>
    %24 = math.rsqrt %23 : vector<1x32xf32>
    %25 = vector.broadcast %24 : vector<1x32xf32> to vector<16x32xf32>
    %26 = arith.mulf %21, %25 : vector<16x32xf32>
    %cst_14 = arith.constant 0.000000e+00 : f32
    %27 = vector.broadcast %cst_14 : f32 to vector<16x32xf32>
    %28 = arith.cmpf oge, %26, %27 : vector<16x32xf32>
    %cst_15 = arith.constant 2.000000e-01 : f32
    %29 = vector.broadcast %cst_15 : f32 to vector<16x32xf32>
    %30 = arith.mulf %29, %26 : vector<16x32xf32>
    %31 = arith.select %28, %26, %30 : vector<16x32xi1>, vector<16x32xf32>
    %c0_16 = arith.constant 0 : index
    %c0_17 = arith.constant 0 : index
    %c0_18 = arith.constant 0 : index
    %c0_19 = arith.constant 0 : index
    %32 = vector.load %arg5[%c0_16, %c0_17, %c0_18, %c0_19] : memref<1x1x16x32xf32, #tpu.memory_space<vmem>>, vector<1x1x16x32xf32>
    %33 = vector.shape_cast %32 : vector<1x1x16x32xf32> to vector<16x32xf32>
    %34 = vector.shape_cast %31 : vector<16x32xf32> to vector<1x1x16x32xf32>
    tpu.vector_store %arg5[%c0_16, %c0_17, %c0_18, %c0_19], %34 {strides = array<i32>} : memref<1x1x16x32xf32, #tpu.memory_space<vmem>>, vector<1x1x16x32xf32>,
    return
  }
  func.func @transform_0(%arg0: i32, %arg1: i32) -> (i32, i32, i32, i32) {
    %c0_i32 = arith.constant 0 : i32
    %c0_i32_0 = arith.constant 0 : i32
    %c0_i32_1 = arith.constant 0 : i32
    return %arg0, %arg1, %c0_i32, %c0_i32_0 : i32, i32, i32, i32
  }
  func.func @transform_1(%arg0: i32, %arg1: i32) -> (i32, i32, i32) {
    %c0_i32 = arith.constant 0 : i32
    %c0_i32_0 = arith.constant 0 : i32
    %c0_i32_1 = arith.constant 0 : i32
    return %arg0, %c0_i32, %c0_i32_0 : i32, i32, i32
  }
  func.func @transform_2(%arg0: i32, %arg1: i32) -> (i32, i32, i32) {
    %c0_i32 = arith.constant 0 : i32
    %c0_i32_0 = arith.constant 0 : i32
    %c0_i32_1 = arith.constant 0 : i32
    return %arg0, %c0_i32, %c0_i32_0 : i32, i32, i32
  }
  func.func @transform_3(%arg0: i32, %arg1: i32) -> (i32, i32, i32, i32) {
    %c0_i32 = arith.constant 0 : i32
    %c0_i32_0 = arith.constant 0 : i32
    %c0_i32_1 = arith.constant 0 : i32
    return %arg0, %arg1, %c0_i32, %c0_i32_0 : i32, i32, i32, i32
  }
}

module attributes {stable_mosaic.version = 11 : i64} {
  func.func @_conv_block_kernel(%arg0: i32, %arg1: i32, %arg2: memref<1x1x4x288xbf16, #tpu.memory_space<vmem>>, %arg3: memref<1x288x64xbf16, #tpu.memory_space<vmem>>, %arg4: memref<1x1x64xf32, #tpu.memory_space<vmem>>, %arg5: memref<1x1x4x64xf32, #tpu.memory_space<vmem>>) attributes {dimension_semantics = [#tpu.dimension_semantics<parallel>, #tpu.dimension_semantics<parallel>], iteration_bounds = array<i64: 2, 2>, scalar_prefetch = 0 : i64, scratch_operands = 0 : i64, tpu.core_type = #tpu.core_type<tc>, window_params = [{transform_indices = @transform_0, window_bounds = array<i64: 1, 1, 4, 288>}, {transform_indices = @transform_1, window_bounds = array<i64: 1, 288, 64>}, {transform_indices = @transform_2, window_bounds = array<i64: 1, 1, 64>}, {transform_indices = @transform_3, window_bounds = array<i64: 1, 1, 4, 64>}]} {
    %c0 = arith.constant 0 : index
    %c0_0 = arith.constant 0 : index
    %c0_1 = arith.constant 0 : index
    %c0_2 = arith.constant 0 : index
    %0 = vector.load %arg2[%c0, %c0_0, %c0_1, %c0_2] : memref<1x1x4x288xbf16, #tpu.memory_space<vmem>>, vector<1x1x4x288xbf16>
    %1 = vector.shape_cast %0 : vector<1x1x4x288xbf16> to vector<4x288xbf16>
    %c0_3 = arith.constant 0 : index
    %c0_4 = arith.constant 0 : index
    %c0_5 = arith.constant 0 : index
    %2 = vector.load %arg3[%c0_3, %c0_4, %c0_5] : memref<1x288x64xbf16, #tpu.memory_space<vmem>>, vector<1x288x64xbf16>
    %3 = vector.shape_cast %2 : vector<1x288x64xbf16> to vector<288x64xbf16>
    %cst = arith.constant dense<0.000000e+00> : vector<4x64xf32>
    %4 = tpu.matmul %1, %3, %cst {dimension_numbers = #tpu.dot_dimension_numbers<[1], [0], [0], [1], [0, 0, 1, 1], [], []>} : vector<4x288xbf16>, vector<288x64xbf16>, vector<4x64xf32> -> vector<4x64xf32>
    %c0_6 = arith.constant 0 : index
    %c0_7 = arith.constant 0 : index
    %c0_8 = arith.constant 0 : index
    %5 = vector.load %arg4[%c0_6, %c0_7, %c0_8] : memref<1x1x64xf32, #tpu.memory_space<vmem>>, vector<1x1x64xf32>
    %6 = vector.shape_cast %5 : vector<1x1x64xf32> to vector<1x64xf32>
    %7 = vector.broadcast %6 : vector<1x64xf32> to vector<4x64xf32>
    %8 = arith.addf %4, %7 : vector<4x64xf32>
    %cst_9 = arith.constant dense<0.000000e+00> : vector<64xf32>
    %9 = vector.multi_reduction <add>, %8, %cst_9 [0] : vector<4x64xf32> to vector<64xf32>
    %10 = vector.shape_cast %9 : vector<64xf32> to vector<1x64xf32>
    %cst_10 = arith.constant 4.000000e+00 : f32
    %11 = vector.broadcast %cst_10 : f32 to vector<1x64xf32>
    %12 = arith.divf %10, %11 : vector<1x64xf32>
    %13 = vector.broadcast %12 : vector<1x64xf32> to vector<4x64xf32>
    %14 = arith.subf %8, %13 : vector<4x64xf32>
    %15 = arith.mulf %14, %14 : vector<4x64xf32>
    %cst_11 = arith.constant dense<0.000000e+00> : vector<64xf32>
    %16 = vector.multi_reduction <add>, %15, %cst_11 [0] : vector<4x64xf32> to vector<64xf32>
    %17 = vector.shape_cast %16 : vector<64xf32> to vector<1x64xf32>
    %cst_12 = arith.constant 4.000000e+00 : f32
    %18 = vector.broadcast %cst_12 : f32 to vector<1x64xf32>
    %19 = arith.divf %17, %18 : vector<1x64xf32>
    %20 = vector.broadcast %12 : vector<1x64xf32> to vector<4x64xf32>
    %21 = arith.subf %8, %20 : vector<4x64xf32>
    %cst_13 = arith.constant 9.99999974E-6 : f32
    %22 = vector.broadcast %cst_13 : f32 to vector<1x64xf32>
    %23 = arith.addf %19, %22 : vector<1x64xf32>
    %24 = math.rsqrt %23 : vector<1x64xf32>
    %25 = vector.broadcast %24 : vector<1x64xf32> to vector<4x64xf32>
    %26 = arith.mulf %21, %25 : vector<4x64xf32>
    %cst_14 = arith.constant 0.000000e+00 : f32
    %27 = vector.broadcast %cst_14 : f32 to vector<4x64xf32>
    %28 = arith.cmpf oge, %26, %27 : vector<4x64xf32>
    %cst_15 = arith.constant 2.000000e-01 : f32
    %29 = vector.broadcast %cst_15 : f32 to vector<4x64xf32>
    %30 = arith.mulf %29, %26 : vector<4x64xf32>
    %31 = arith.select %28, %26, %30 : vector<4x64xi1>, vector<4x64xf32>
    %c0_16 = arith.constant 0 : index
    %c0_17 = arith.constant 0 : index
    %c0_18 = arith.constant 0 : index
    %c0_19 = arith.constant 0 : index
    %32 = vector.load %arg5[%c0_16, %c0_17, %c0_18, %c0_19] : memref<1x1x4x64xf32, #tpu.memory_space<vmem>>, vector<1x1x4x64xf32>
    %33 = vector.shape_cast %32 : vector<1x1x4x64xf32> to vector<4x64xf32>
    %34 = vector.shape_cast %31 : vector<4x64xf32> to vector<1x1x4x64xf32>
    tpu.vector_store %arg5[%c0_16, %c0_17, %c0_18, %c0_19], %34 {strides = array<i32>} : memref<1x1x4x64xf32, #tpu.memory_space<vmem>>, vector<1x1x4x64xf32>,
    return
  }
  func.func @transform_0(%arg0: i32, %arg1: i32) -> (i32, i32, i32, i32) {
    %c0_i32 = arith.constant 0 : i32
    %c0_i32_0 = arith.constant 0 : i32
    %c0_i32_1 = arith.constant 0 : i32
    return %arg0, %arg1, %c0_i32, %c0_i32_0 : i32, i32, i32, i32
  }
  func.func @transform_1(%arg0: i32, %arg1: i32) -> (i32, i32, i32) {
    %c0_i32 = arith.constant 0 : i32
    %c0_i32_0 = arith.constant 0 : i32
    %c0_i32_1 = arith.constant 0 : i32
    return %arg0, %c0_i32, %c0_i32_0 : i32, i32, i32
  }
  func.func @transform_2(%arg0: i32, %arg1: i32) -> (i32, i32, i32) {
    %c0_i32 = arith.constant 0 : i32
    %c0_i32_0 = arith.constant 0 : i32
    %c0_i32_1 = arith.constant 0 : i32
    return %arg0, %c0_i32, %c0_i32_0 : i32, i32, i32
  }
  func.func @transform_3(%arg0: i32, %arg1: i32) -> (i32, i32, i32, i32) {
    %c0_i32 = arith.constant 0 : i32
    %c0_i32_0 = arith.constant 0 : i32
    %c0_i32_1 = arith.constant 0 : i32
    return %arg0, %arg1, %c0_i32, %c0_i32_0 : i32, i32, i32, i32
  }
}

module attributes {stable_mosaic.version = 11 : i64} {
  func.func @_conv_block_kernel(%arg0: i32, %arg1: i32, %arg2: memref<1x1x1x576xbf16, #tpu.memory_space<vmem>>, %arg3: memref<1x576x1xbf16, #tpu.memory_space<vmem>>, %arg4: memref<1x1x1xf32, #tpu.memory_space<vmem>>, %arg5: memref<1x1x1x1xf32, #tpu.memory_space<vmem>>) attributes {dimension_semantics = [#tpu.dimension_semantics<parallel>, #tpu.dimension_semantics<parallel>], iteration_bounds = array<i64: 2, 2>, scalar_prefetch = 0 : i64, scratch_operands = 0 : i64, tpu.core_type = #tpu.core_type<tc>, window_params = [{transform_indices = @transform_0, window_bounds = array<i64: 1, 1, 1, 576>}, {transform_indices = @transform_1, window_bounds = array<i64: 1, 576, 1>}, {transform_indices = @transform_2, window_bounds = array<i64: 1, 1, 1>}, {transform_indices = @transform_3, window_bounds = array<i64: 1, 1, 1, 1>}]} {
    %c0 = arith.constant 0 : index
    %c0_0 = arith.constant 0 : index
    %c0_1 = arith.constant 0 : index
    %c0_2 = arith.constant 0 : index
    %0 = vector.load %arg2[%c0, %c0_0, %c0_1, %c0_2] : memref<1x1x1x576xbf16, #tpu.memory_space<vmem>>, vector<1x1x1x576xbf16>
    %1 = vector.shape_cast %0 : vector<1x1x1x576xbf16> to vector<1x576xbf16>
    %c0_3 = arith.constant 0 : index
    %c0_4 = arith.constant 0 : index
    %c0_5 = arith.constant 0 : index
    %2 = vector.load %arg3[%c0_3, %c0_4, %c0_5] : memref<1x576x1xbf16, #tpu.memory_space<vmem>>, vector<1x576x1xbf16>
    %3 = vector.shape_cast %2 : vector<1x576x1xbf16> to vector<576x1xbf16>
    %cst = arith.constant dense<0.000000e+00> : vector<1x1xf32>
    %4 = tpu.matmul %1, %3, %cst {dimension_numbers = #tpu.dot_dimension_numbers<[1], [0], [0], [1], [0, 0, 1, 1], [], []>} : vector<1x576xbf16>, vector<576x1xbf16>, vector<1x1xf32> -> vector<1x1xf32>
    %c0_6 = arith.constant 0 : index
    %c0_7 = arith.constant 0 : index
    %c0_8 = arith.constant 0 : index
    %5 = vector.load %arg4[%c0_6, %c0_7, %c0_8] : memref<1x1x1xf32, #tpu.memory_space<vmem>>, vector<1x1x1xf32>
    %6 = vector.shape_cast %5 : vector<1x1x1xf32> to vector<1x1xf32>
    %7 = arith.addf %4, %6 : vector<1x1xf32>
    %c0_9 = arith.constant 0 : index
    %c0_10 = arith.constant 0 : index
    %c0_11 = arith.constant 0 : index
    %c0_12 = arith.constant 0 : index
    %8 = vector.load %arg5[%c0_9, %c0_10, %c0_11, %c0_12] : memref<1x1x1x1xf32, #tpu.memory_space<vmem>>, vector<1x1x1x1xf32>
    %9 = vector.shape_cast %8 : vector<1x1x1x1xf32> to vector<1x1xf32>
    %10 = vector.shape_cast %7 : vector<1x1xf32> to vector<1x1x1x1xf32>
    tpu.vector_store %arg5[%c0_9, %c0_10, %c0_11, %c0_12], %10 {strides = array<i32>} : memref<1x1x1x1xf32, #tpu.memory_space<vmem>>, vector<1x1x1x1xf32>,
    return
  }
  func.func @transform_0(%arg0: i32, %arg1: i32) -> (i32, i32, i32, i32) {
    %c0_i32 = arith.constant 0 : i32
    %c0_i32_0 = arith.constant 0 : i32
    %c0_i32_1 = arith.constant 0 : i32
    return %arg0, %arg1, %c0_i32, %c0_i32_0 : i32, i32, i32, i32
  }
  func.func @transform_1(%arg0: i32, %arg1: i32) -> (i32, i32, i32) {
    %c0_i32 = arith.constant 0 : i32
    %c0_i32_0 = arith.constant 0 : i32
    %c0_i32_1 = arith.constant 0 : i32
    return %arg0, %c0_i32, %c0_i32_0 : i32, i32, i32
  }
  func.func @transform_2(%arg0: i32, %arg1: i32) -> (i32, i32, i32) {
    %c0_i32 = arith.constant 0 : i32
    %c0_i32_0 = arith.constant 0 : i32
    %c0_i32_1 = arith.constant 0 : i32
    return %arg0, %c0_i32, %c0_i32_0 : i32, i32, i32
  }
  func.func @transform_3(%arg0: i32, %arg1: i32) -> (i32, i32, i32, i32) {
    %c0_i32 = arith.constant 0 : i32
    %c0_i32_0 = arith.constant 0 : i32
    %c0_i32_1 = arith.constant 0 : i32
    return %arg0, %arg1, %c0_i32, %c0_i32_0 : i32, i32, i32, i32
  }
}

</mosaic_0001>

<llo_original>
// kernel: discriminator_forward.5
$region0: #{discriminator_forward.5}
  #allocation0 [shape = 'u32[]', space=smem, size = 0x4, offset = 0x4, fixed_abs, tag = 'smem constant byte address 0x4 - core index']
  #allocation1 [shape = 'u32[144,128]{1,0:T(1,128)}', space=vmem, size = 0x12000, scoped, tag = 'internal scratch']
  %s0 = inlined_call_operand.vmem [shape: bf16[1,2,256,147], index: 0, kind: input, shape index: {}]
  %s1 = inlined_call_operand.vmem [shape: bf16[1,147,8], index: 1, kind: input, shape index: {}]
  %s2 = inlined_call_operand.vmem [shape: f32[1,1,8], index: 2, kind: input, shape index: {}]
  %s3 = inlined_call_operand.vmem [shape: f32[1,2,256,8], index: 3, kind: output, shape index: {}]
  %s4 = sld [smem:[#allocation0]]
  $region45: #{discriminator_forward.5} parent=0
    _
  %s6 = ssub.s32 1, %s4
  %s7 = scalar_select 0, %s6, %s4
  loop: start=0, step=1, limit=4
  $region2: #{discriminator_forward.5} parent=0 // loop_pre_header
    _
  $region3: #{discriminator_forward.5} parent=0 // loop_header
    %s9 = sphi 0, %s13
    %p10 = scmp.ge.s32.totalorder %s9, 4
    %s16 = sphi 0, %s28
    %s17 = sphi 0, %s24
    %s18 = sphi 0, %s16
    %s19 = sphi 0, %s17
    %s20 = sphi 0, %s18
    %s21 = sphi 0, %s19
    %s33 = sphi 0, %s35
    %s36 = sphi 0, %s33
    %s37 = sphi 0, %s36
    %s53 = sphi 0, %s37
    %s59 = sphi 0, %s61
    %s62 = sphi 0, %s59
    %s63 = sphi 0, %s62
    %s79 = sphi 0, %s63
    %s85 = sphi 0, %s87
    %s88 = sphi 0, %s85
    %s89 = sphi 0, %s88
    %s105 = sphi 0, %s89
    %s113 = sphi 0, %s115
    %s116 = sphi 0, %s113
    %s117 = sphi 0, %s116
    %s133 = sphi 0, %s117
  $region4: #{discriminator_forward.5} parent=0 // loop_header_branch
    %12 = sbr.rel (%p10) target = $region8
  $region5: #{discriminator_forward.5} parent=0 // loop_body
    %s14 = ssub.s32 %s9, 1
    %s15 = ssub.s32 %s9, 2
    %s22 = sadd.s32 1, %s17
    %p23 = scmp.ge.s32.totalorder %s22, 2
    %s24 = scalar_select %p23, 0, %s22
    %s25 = sadd.s32 1, %s16
    %s26 = scalar_select %p23, %s25, %s16
    %p27 = scmp.ge.s32.totalorder %s26, 1
    %s28 = scalar_select %p27, 0, %s26
    %s29 = ssub.s32 %s16, %s28
    %s30 = ssub.s32 %s17, %s24
    %s31 = sor.u32 %s29, %s30
    %p32 = scmp.eq.s32.totalorder %s31, 0
    %s34 = sadd.s32 %s33, 1
    %s35 = scalar_select %p32, %s33, %s34
    %p38 = pneg %p32
    %p39 = scmp.eq.s32.totalorder %s9, 1
    %p40 = por %p38, %p39
    %p41 = scmp.ne.s32.totalorder %s33, %s36
    %p42 = scmp.eq.s32.totalorder %s9, 0
    %p43 = por %p41, %p42
    %p44 = scmp.ne.s32.totalorder %s33, %s36
    %p45 = scmp.eq.s32.totalorder %s14, 1
    %p46 = por %p44, %p45
    %p47 = scmp.ne.s32.totalorder %s36, %s37
    %p48 = scmp.eq.s32.totalorder %s14, 0
    %p49 = por %p47, %p48
    %p50 = scmp.ne.s32.totalorder %s36, %s37
    %p51 = scmp.eq.s32.totalorder %s15, 1
    %p52 = por %p50, %p51
    %p54 = scmp.ne.s32.totalorder %s37, %s53
    %p55 = scmp.eq.s32.totalorder %s15, 0
    %p56 = por %p54, %p55
    %s57 = ssub.s32 %s16, %s28
    %p58 = scmp.eq.s32.totalorder %s57, 0
    %s60 = sadd.s32 %s59, 1
    %s61 = scalar_select %p58, %s59, %s60
    %p64 = pneg %p58
    %p65 = scmp.eq.s32.totalorder %s9, 1
    %p66 = por %p64, %p65
    %p67 = scmp.ne.s32.totalorder %s59, %s62
    %p68 = scmp.eq.s32.totalorder %s9, 0
    %p69 = por %p67, %p68
    %p70 = scmp.ne.s32.totalorder %s59, %s62
    %p71 = scmp.eq.s32.totalorder %s14, 1
    %p72 = por %p70, %p71
    %p73 = scmp.ne.s32.totalorder %s62, %s63
    %p74 = scmp.eq.s32.totalorder %s14, 0
    %p75 = por %p73, %p74
    %p76 = scmp.ne.s32.totalorder %s62, %s63
    %p77 = scmp.eq.s32.totalorder %s15, 1
    %p78 = por %p76, %p77
    %p80 = scmp.ne.s32.totalorder %s63, %s79
    %p81 = scmp.eq.s32.totalorder %s15, 0
    %p82 = por %p80, %p81
    %s83 = ssub.s32 %s16, %s28
    %p84 = scmp.eq.s32.totalorder %s83, 0
    %s86 = sadd.s32 %s85, 1
    %s87 = scalar_select %p84, %s85, %s86
    %p90 = pneg %p84
    %p91 = scmp.eq.s32.totalorder %s9, 1
    %p92 = por %p90, %p91
    %p93 = scmp.ne.s32.totalorder %s85, %s88
    %p94 = scmp.eq.s32.totalorder %s9, 0
    %p95 = por %p93, %p94
    %p96 = scmp.ne.s32.totalorder %s85, %s88
    %p97 = scmp.eq.s32.totalorder %s14, 1
    %p98 = por %p96, %p97
    %p99 = scmp.ne.s32.totalorder %s88, %s89
    %p100 = scmp.eq.s32.totalorder %s14, 0
    %p101 = por %p99, %p100
    %p102 = scmp.ne.s32.totalorder %s88, %s89
    %p103 = scmp.eq.s32.totalorder %s15, 1
    %p104 = por %p102, %p103
    %p106 = scmp.ne.s32.totalorder %s89, %s105
    %p107 = scmp.eq.s32.totalorder %s15, 0
    %p108 = por %p106, %p107
    %s109 = ssub.s32 %s16, %s28
    %s110 = ssub.s32 %s17, %s24
    %s111 = sor.u32 %s109, %s110
    %p112 = scmp.eq.s32.totalorder %s111, 0
    %s114 = sadd.s32 %s113, 1
    %s115 = scalar_select %p112, %s113, %s114
    %p118 = pneg %p112
    %p119 = scmp.eq.s32.totalorder %s9, 1
    %p120 = por %p118, %p119
    %p121 = scmp.ne.s32.totalorder %s113, %s116
    %p122 = scmp.eq.s32.totalorder %s9, 0
    %p123 = por %p121, %p122
    %p124 = scmp.ne.s32.totalorder %s113, %s116
    %p125 = scmp.eq.s32.totalorder %s14, 1
    %p126 = por %p124, %p125
    %p127 = scmp.ne.s32.totalorder %s116, %s117
    %p128 = scmp.eq.s32.totalorder %s14, 0
    %p129 = por %p127, %p128
    %p130 = scmp.ne.s32.totalorder %s116, %s117
    %p131 = scmp.eq.s32.totalorder %s15, 1
    %p132 = por %p130, %p131
    %p134 = scmp.ne.s32.totalorder %s117, %s133
    %p135 = scmp.eq.s32.totalorder %s15, 0
    %p136 = por %p134, %p135
    %p137 = scmp.le.s32.totalorder 1, %s9
    %p138 = scmp.lt.s32.totalorder %s9, 3
    %p139 = pnand %p137, %p138
    %p140 = pneg %p139
    // Predicated region
    $region9: #{discriminator_forward.5} parent=5 // pred_check
      _
    $region10: #{discriminator_forward.5} parent=5 // pred_check_branch
      %142 = sbr.rel (%p139) target = $region12
    $region11: #{discriminator_forward.5} parent=5 // pred_region
      %s143 = ssub.s32 %s9, 1
      // Predicated region
      $region13: #{discriminator_forward.5} parent=11 // pred_check
        %p144 = pneg %p75
      $region14: #{discriminator_forward.5} parent=11 // pred_check_branch
        %146 = sbr.rel (%p144) target = $region16
      $region15: #{discriminator_forward.5} parent=11 // pred_region
        %p147 = scmp.lt.s32.totalorder %s18, 0
        %s148 = scalar_select %p147, %s18, 0
        %s149 = smul.addr %s148, 19
        %s150 = smul.addr %s149, 4
        %s151 = scalar_lea.vmem %s1, %s150
      $region16: #{discriminator_forward.5} parent=11 // pred_fallthru
        _
      // Predicated region
      $region17: #{discriminator_forward.5} parent=11 // pred_check
        %p152 = pneg %p101
      $region18: #{discriminator_forward.5} parent=11 // pred_check_branch
        %154 = sbr.rel (%p152) target = $region20
      $region19: #{discriminator_forward.5} parent=11 // pred_region
        %p155 = scmp.lt.s32.totalorder %s18, 0
        %s156 = scalar_select %p155, %s18, 0
        %s157 = scalar_lea.vmem %s2, %s156
      $region20: #{discriminator_forward.5} parent=11 // pred_fallthru
        _
    $region12: #{discriminator_forward.5} parent=5 // pred_fallthru
      _
    %p158 = scmp.lt.s32.totalorder %s9, 2
    // Predicated region
    $region21: #{discriminator_forward.5} parent=5 // pred_check
      %p159 = pneg %p158
    $region22: #{discriminator_forward.5} parent=5 // pred_check_branch
      %161 = sbr.rel (%p159) target = $region24
    $region23: #{discriminator_forward.5} parent=5 // pred_region
      // Predicated region
      $region25: #{discriminator_forward.5} parent=23 // pred_check
        %p162 = pneg %p43
      $region26: #{discriminator_forward.5} parent=23 // pred_check_branch
        %164 = sbr.rel (%p162) target = $region28
      $region27: #{discriminator_forward.5} parent=23 // pred_region
        %p165 = scmp.lt.s32.totalorder %s16, 0
        %s166 = scalar_select %p165, %s16, 0
        %p167 = scmp.lt.s32.totalorder %s17, 1
        %s168 = scalar_select %p167, %s17, 1
        %s169 = smul.addr %s168, 64
        %s170 = smul.addr %s166, 128
        %s171 = sadd.s32 %s169, %s170
        %s172 = smul.addr %s171, 4
        %s173 = scalar_lea.vmem %s0, %s172
      $region28: #{discriminator_forward.5} parent=23 // pred_fallthru
        _
    $region24: #{discriminator_forward.5} parent=5 // pred_fallthru
      _
    %p174 = scmp.le.s32.totalorder 1, %s9
    %p175 = scmp.lt.s32.totalorder %s9, 3
    %p176 = pnand %p174, %p175
    %p177 = pneg %p176
    // Predicated region
    $region29: #{discriminator_forward.5} parent=5 // pred_check
      _
    $region30: #{discriminator_forward.5} parent=5 // pred_check_branch
      %179 = sbr.rel (%p176) target = $region32
    $region31: #{discriminator_forward.5} parent=5 // pred_region
      %s180 = ssub.s32 %s9, 1
      %p181 = scmp.lt.s32.totalorder %s18, 0
      %s182 = scalar_select %p181, %s18, 0
      %p183 = scmp.lt.s32.totalorder %s19, 1
      %s184 = scalar_select %p183, %s19, 1
      %s185 = smul.addr %s184, 64
      %s186 = smul.addr %s182, 128
      %s187 = sadd.s32 %s185, %s186
      %s188 = smul.addr %s187, 4
      %s189 = scalar_lea.vmem %s0, %s188
      %p190 = pneg %p49
      %p191 = pneg %p46
      %p192 = scmp.lt.s32.totalorder %s18, 0
      %s193 = scalar_select %p192, %s18, 0
      %s194 = smul.addr %s193, 19
      %s195 = smul.addr %s194, 4
      %s196 = scalar_lea.vmem %s1, %s195
      %p197 = pneg %p75
      %p198 = pneg %p72
      %p199 = scmp.lt.s32.totalorder %s18, 0
      %s200 = scalar_select %p199, %s18, 0
      %s201 = scalar_lea.vmem %s2, %s200
      %p202 = pneg %p101
      %p203 = pneg %p98
      %p204 = pneg %p129
      %p205 = pneg %p126
      %p206 = scmp.lt.s32.totalorder %s18, 0
      %s207 = scalar_select %p206, %s18, 0
      %p208 = scmp.lt.s32.totalorder %s19, 1
      %s209 = scalar_select %p208, %s19, 1
      %s210 = smul.addr %s209, 32
      %s211 = smul.addr %s207, 64
      %s212 = sadd.s32 %s210, %s211
      %s213 = smul.addr %s212, 8
      %s214 = scalar_lea.vmem %s3, %s213
      %p215 = scmp.lt.s32.totalorder %s18, 0
      %s216 = scalar_select %p215, %s18, 0
      %p217 = scmp.lt.s32.totalorder %s19, 1
      %s218 = scalar_select %p217, %s19, 1
      %s219 = smul.addr %s218, 64
      %s220 = smul.addr %s216, 128
      %s221 = sadd.s32 %s219, %s220
      %s222 = smul.addr %s221, 4
      %s223 = scalar_lea.vmem %s0, %s222
      %p224 = scmp.lt.s32.totalorder %s18, 0
      %s225 = scalar_select %p224, %s18, 0
      %s226 = smul.addr %s225, 19
      %s227 = smul.addr %s226, 4
      %s228 = scalar_lea.vmem %s1, %s227
      %p229 = scmp.lt.s32.totalorder %s18, 0
      %s230 = scalar_select %p229, %s18, 0
      %s231 = scalar_lea.vmem %s2, %s230
      %p232 = scmp.lt.s32.totalorder %s18, 0
      %s233 = scalar_select %p232, %s18, 0
      %p234 = scmp.lt.s32.totalorder %s19, 1
      %s235 = scalar_select %p234, %s19, 1
      %s236 = smul.addr %s235, 32
      %s237 = smul.addr %s233, 64
      %s238 = sadd.s32 %s236, %s237
      %s239 = smul.addr %s238, 8
      %s240 = scalar_lea.vmem %s3, %s239
      %v242 = vld [vmem:[%s223] sm:$0xff]
      %v243 = vld [vmem:[%s223 + $0x8] sm:$0xff]
      %v244 = vld [vmem:[%s223 + $0x10] sm:$0xff]
      %v245 = vld [vmem:[%s223 + $0x18] sm:$0xff]
      %v246 = vld [vmem:[%s223 + $0x20] sm:$0xff]
      %v247 = vld [vmem:[%s223 + $0x28] sm:$0xff]
      %v248 = vld [vmem:[%s223 + $0x30] sm:$0xff]
      %v249 = vld [vmem:[%s223 + $0x38] sm:$0xff]
      %v250 = vld [vmem:[%s223 + $0x40] sm:$0xff]
      %v251 = vld [vmem:[%s223 + $0x48] sm:$0xff]
      %v252 = vld [vmem:[%s223 + $0x50] sm:$0xff]
      %v253 = vld [vmem:[%s223 + $0x58] sm:$0xff]
      %v254 = vld [vmem:[%s223 + $0x60] sm:$0xff]
      %v255 = vld [vmem:[%s223 + $0x68] sm:$0xff]
      %v256 = vld [vmem:[%s223 + $0x70] sm:$0xff]
      %v257 = vld [vmem:[%s223 + $0x78] sm:$0xff]
      %v258 = vld [vmem:[%s223 + $0x80] sm:$0xff]
      %v259 = vld [vmem:[%s223 + $0x88] sm:$0xff]
      %v260 = vld [vmem:[%s223 + $0x90] sm:$0xff]
      %v261 = vld [vmem:[%s223 + $0x98] sm:$0xff]
      %v262 = vld [vmem:[%s223 + $0xa0] sm:$0xff]
      %v263 = vld [vmem:[%s223 + $0xa8] sm:$0xff]
      %v264 = vld [vmem:[%s223 + $0xb0] sm:$0xff]
      %v265 = vld [vmem:[%s223 + $0xb8] sm:$0xff]
      %v266 = vld [vmem:[%s223 + $0xc0] sm:$0xff]
      %v267 = vld [vmem:[%s223 + $0xc8] sm:$0xff]
      %v268 = vld [vmem:[%s223 + $0xd0] sm:$0xff]
      %v269 = vld [vmem:[%s223 + $0xd8] sm:$0xff]
      %v270 = vld [vmem:[%s223 + $0xe0] sm:$0xff]
      %v271 = vld [vmem:[%s223 + $0xe8] sm:$0xff]
      %v272 = vld [vmem:[%s223 + $0xf0] sm:$0xff]
      %v273 = vld [vmem:[%s223 + $0xf8] sm:$0xff]
      %v274 = vld [vmem:[%s228] sm:$0xf]
      %v275 = vld [vmem:[%s228 + $0x4] sm:$0xf]
      %v276 = vld [vmem:[%s228 + $0x8] sm:$0xf]
      %v277 = vld [vmem:[%s228 + $0xc] sm:$0xf]
      %v278 = vld [vmem:[%s228 + $0x10] sm:$0xf]
      %v279 = vld [vmem:[%s228 + $0x14] sm:$0xf]
      %v280 = vld [vmem:[%s228 + $0x18] sm:$0xf]
      %v281 = vld [vmem:[%s228 + $0x1c] sm:$0xf]
      %v282 = vld [vmem:[%s228 + $0x20] sm:$0xf]
      %v283 = vld [vmem:[%s228 + $0x24] sm:$0xf]
      %v284 = vld [vmem:[%s228 + $0x28] sm:$0xf]
      %v285 = vld [vmem:[%s228 + $0x2c] sm:$0xf]
      %v286 = vld [vmem:[%s228 + $0x30] sm:$0xf]
      %v287 = vld [vmem:[%s228 + $0x34] sm:$0xf]
      %v288 = vld [vmem:[%s228 + $0x38] sm:$0xf]
      %v289 = vld [vmem:[%s228 + $0x3c] sm:$0xf]
      %v290 = vld [vmem:[%s228 + $0x40] sm:$0xf]
      %v291 = vld [vmem:[%s228 + $0x44] sm:$0xf]
      %v292 = vld [vmem:[%s228 + $0x48] sm:$0x3]
      %v293 = vld [vmem:[%s231] sm:$0x1]
      %v295 = vlaneseq
      %v296 = vshrl.u32 %v295, 7
      %v297 = vsub.s32 0, %v296
      %v298 = vrot.slane %v293, %v297
      %v332 = vunpack.c.l.b16 %v242
      %v333 = vunpack.c.h.b16 %v242
      %v334 = vunpack.c.l.b16 %v243
      %v335 = vunpack.c.h.b16 %v243
      %v336 = vunpack.c.l.b16 %v244
      %v337 = vunpack.c.h.b16 %v244
      %v338 = vunpack.c.l.b16 %v245
      %v339 = vunpack.c.h.b16 %v245
      %v340 = vunpack.c.l.b16 %v246
      %v341 = vunpack.c.h.b16 %v246
      %v342 = vunpack.c.l.b16 %v247
      %v343 = vunpack.c.h.b16 %v247
      %v344 = vunpack.c.l.b16 %v248
      %v345 = vunpack.c.h.b16 %v248
      %v346 = vunpack.c.l.b16 %v249
      %v347 = vunpack.c.h.b16 %v249
      %v348 = vunpack.c.l.b16 %v250
      %v349 = vunpack.c.h.b16 %v250
      %v350 = vunpack.c.l.b16 %v251
      %v351 = vunpack.c.h.b16 %v251
      %v352 = vunpack.c.l.b16 %v252
      %v353 = vunpack.c.h.b16 %v252
      %v354 = vunpack.c.l.b16 %v253
      %v355 = vunpack.c.h.b16 %v253
      %v356 = vunpack.c.l.b16 %v254
      %v357 = vunpack.c.h.b16 %v254
      %v358 = vunpack.c.l.b16 %v255
      %v359 = vunpack.c.h.b16 %v255
      %v360 = vunpack.c.l.b16 %v256
      %v361 = vunpack.c.h.b16 %v256
      %v362 = vunpack.c.l.b16 %v257
      %v363 = vunpack.c.h.b16 %v257
      %v364 = vunpack.c.l.b16 %v258
      %v365 = vunpack.c.h.b16 %v258
      %v366 = vunpack.c.l.b16 %v259
      %v367 = vunpack.c.h.b16 %v259
      %v368 = vunpack.c.l.b16 %v260
      %v369 = vunpack.c.h.b16 %v260
      %v370 = vunpack.c.l.b16 %v261
      %v371 = vunpack.c.h.b16 %v261
      %v372 = vunpack.c.l.b16 %v262
      %v373 = vunpack.c.h.b16 %v262
      %v374 = vunpack.c.l.b16 %v263
      %v375 = vunpack.c.h.b16 %v263
      %v376 = vunpack.c.l.b16 %v264
      %v377 = vunpack.c.h.b16 %v264
      %v378 = vunpack.c.l.b16 %v265
      %v379 = vunpack.c.h.b16 %v265
      %v380 = vunpack.c.l.b16 %v266
      %v381 = vunpack.c.h.b16 %v266
      %v382 = vunpack.c.l.b16 %v267
      %v383 = vunpack.c.h.b16 %v267
      %v384 = vunpack.c.l.b16 %v268
      %v385 = vunpack.c.h.b16 %v268
      %v386 = vunpack.c.l.b16 %v269
      %v387 = vunpack.c.h.b16 %v269
      %v388 = vunpack.c.l.b16 %v270
      %v389 = vunpack.c.h.b16 %v270
      %v390 = vunpack.c.l.b16 %v271
      %v391 = vunpack.c.h.b16 %v271
      %v392 = vunpack.c.l.b16 %v272
      %v393 = vunpack.c.h.b16 %v272
      %v394 = vunpack.c.l.b16 %v273
      %v395 = vunpack.c.h.b16 %v273
      %v396 = vpack.c.b16 %v334, %v332
      %v397 = vpack.c.b16 %v335, %v333
      %v398 = vpack.c.b16 %v338, %v336
      %v399 = vpack.c.b16 %v339, %v337
      %v400 = vpack.c.b16 %v342, %v340
      %v401 = vpack.c.b16 %v343, %v341
      %v402 = vpack.c.b16 %v346, %v344
      %v403 = vpack.c.b16 %v347, %v345
      %v404 = vpack.c.b16 %v350, %v348
      %v405 = vpack.c.b16 %v351, %v349
      %v406 = vpack.c.b16 %v354, %v352
      %v407 = vpack.c.b16 %v355, %v353
      %v408 = vpack.c.b16 %v358, %v356
      %v409 = vpack.c.b16 %v359, %v357
      %v410 = vpack.c.b16 %v362, %v360
      %v411 = vpack.c.b16 %v363, %v361
      %v412 = vpack.c.b16 %v366, %v364
      %v413 = vpack.c.b16 %v367, %v365
      %v414 = vpack.c.b16 %v370, %v368
      %v415 = vpack.c.b16 %v371, %v369
      %v416 = vpack.c.b16 %v374, %v372
      %v417 = vpack.c.b16 %v375, %v373
      %v418 = vpack.c.b16 %v378, %v376
      %v419 = vpack.c.b16 %v379, %v377
      %v420 = vpack.c.b16 %v382, %v380
      %v421 = vpack.c.b16 %v383, %v381
      %v422 = vpack.c.b16 %v386, %v384
      %v423 = vpack.c.b16 %v387, %v385
      %v424 = vpack.c.b16 %v390, %v388
      %v425 = vpack.c.b16 %v391, %v389
      %v426 = vpack.c.b16 %v394, %v392
      %v427 = vpack.c.b16 %v395, %v393
      %v463 = vunpack.c.l.b16 %v274
      %v464 = vunpack.c.l.b16 %v275
      %v465 = vunpack.c.l.b16 %v276
      %v466 = vunpack.c.l.b16 %v277
      %v467 = vunpack.c.l.b16 %v278
      %v468 = vunpack.c.l.b16 %v279
      %v469 = vunpack.c.l.b16 %v280
      %v470 = vunpack.c.l.b16 %v281
      %v471 = vunpack.c.l.b16 %v282
      %v472 = vunpack.c.l.b16 %v283
      %v473 = vunpack.c.l.b16 %v284
      %v474 = vunpack.c.l.b16 %v285
      %v475 = vunpack.c.l.b16 %v286
      %v476 = vunpack.c.l.b16 %v287
      %v477 = vunpack.c.l.b16 %v288
      %v478 = vunpack.c.l.b16 %v289
      %v479 = vunpack.c.l.b16 %v290
      %v480 = vunpack.c.l.b16 %v291
      %v481 = vunpack.c.l.b16 %v292
      %v482 = vpack.c.b16 %v464, %v463
      %v483 = vpack.c.b16 %v466, %v465
      %v484 = vpack.c.b16 %v468, %v467
      %v485 = vpack.c.b16 %v470, %v469
      %v486 = vpack.c.b16 %v472, %v471
      %v487 = vpack.c.b16 %v474, %v473
      %v488 = vpack.c.b16 %v476, %v475
      %v489 = vpack.c.b16 %v478, %v477
      %v490 = vpack.c.b16 %v480, %v479
      %v491 = vpack.c.b16 %v481, %v481
      %vm501 = vcmask 154624
      %v503 = vsel %vm501, %v397, 0
      %v506 = vsel %vm501, %v399, 0
      %v509 = vsel %vm501, %v401, 0
      %v512 = vsel %vm501, %v403, 0
      %v515 = vsel %vm501, %v405, 0
      %v518 = vsel %vm501, %v407, 0
      %v521 = vsel %vm501, %v409, 0
      %v524 = vsel %vm501, %v411, 0
      %v527 = vsel %vm501, %v413, 0
      %v530 = vsel %vm501, %v415, 0
      %v533 = vsel %vm501, %v417, 0
      %v536 = vsel %vm501, %v419, 0
      %v539 = vsel %vm501, %v421, 0
      %v542 = vsel %vm501, %v423, 0
      %v545 = vsel %vm501, %v425, 0
      %v548 = vsel %vm501, %v427, 0
      %vm550 = vcmask 1040384
      %vm551 = vcmask 1041408
      %v552 = vsel %vm550, 4294967295, 65535
      %v553 = vsel %vm551, %v552, 0
      %v555 = vand.u32 %v491, %v553
      %557 = vmatprep.subr.bf16.mxu0 0
      %558 = vmatpush1.bf16.msra.mxu0 %v482
      %559 = vmatprep.subr.bf16.mxu0 0
      %560 = vmatpush1.bf16.msra.mxu0 %v483
      %561 = vmatprep.subr.bf16.mxu0 0
      %562 = vmatpush1.bf16.msra.mxu0 %v484
      %563 = vmatprep.subr.bf16.mxu0 0
      %564 = vmatpush1.bf16.msra.mxu0 %v485
      %565 = vmatprep.subr.bf16.mxu0 0
      %566 = vmatpush1.bf16.msra.mxu0 %v486
      %567 = vmatprep.subr.bf16.mxu0 0
      %568 = vmatpush1.bf16.msra.mxu0 %v487
      %569 = vmatprep.subr.bf16.mxu0 0
      %570 = vmatpush1.bf16.msra.mxu0 %v488
      %571 = vmatprep.subr.bf16.mxu0 0
      %572 = vmatpush1.bf16.msra.mxu0 %v489
      %573 = vmatprep.subr.bf16.mxu0 0
      %574 = vmatpush1.bf16.msra.mxu0 %v490
      %575 = vmatprep.subr.bf16.mxu0 0
      %576 = vmatpush1.bf16.msra.mxu0 %v555
      %577 = vmatprep.subr.bf16.mxu0 0
      %578 = vmatpush1.bf16.msra.mxu0 0
      %579 = vmatprep.subr.bf16.mxu0 0
      %580 = vmatpush1.bf16.msra.mxu0 0
      %581 = vmatprep.subr.bf16.mxu0 0
      %582 = vmatpush1.bf16.msra.mxu0 0
      %583 = vmatprep.subr.bf16.mxu0 0
      %584 = vmatpush1.bf16.msra.mxu0 0
      %585 = vmatprep.subr.bf16.mxu0 0
      %586 = vmatpush1.bf16.msra.mxu0 0
      %587 = vmatprep.subr.bf16.mxu0 0
      %588 = vmatpush1.bf16.msra.mxu0 0
      %589 = vmatprep.mubr.bf16.mxu0 %v503
      %590 = vmatmul.mubr.bf16.gmra.mrb[0].mxu0 %v396
      %v591 = vpop.f32.mrb[0].mxu0
      %v592 = vadd.f32 %v298, %v591
      %v593 = vpop.f32.mrb[0].mxu0
      %v594 = vpop.f32.mrb[0].mxu0
      %v595 = vadd.f32 %v298, %v594
      %v596 = vpop.f32.mrb[0].mxu0
      %597 = vmatprep.mubr.bf16.mxu0 %v506
      %598 = vmatmul.mubr.bf16.gmra.mrb[0].mxu0 %v398
      %v599 = vpop.f32.mrb[0].mxu0
      %v600 = vadd.f32 %v298, %v599
      %v601 = vpop.f32.mrb[0].mxu0
      %v602 = vpop.f32.mrb[0].mxu0
      %v603 = vadd.f32 %v298, %v602
      %v604 = vpop.f32.mrb[0].mxu0
      %605 = vmatprep.mubr.bf16.mxu0 %v509
      %606 = vmatmul.mubr.bf16.gmra.mrb[0].mxu0 %v400
      %v607 = vpop.f32.mrb[0].mxu0
      %v608 = vadd.f32 %v298, %v607
      %v609 = vpop.f32.mrb[0].mxu0
      %v610 = vpop.f32.mrb[0].mxu0
      %v611 = vadd.f32 %v298, %v610
      %v612 = vpop.f32.mrb[0].mxu0
      %613 = vmatprep.mubr.bf16.mxu0 %v512
      %614 = vmatmul.mubr.bf16.gmra.mrb[0].mxu0 %v402
      %v615 = vpop.f32.mrb[0].mxu0
      %v616 = vadd.f32 %v298, %v615
      %v617 = vpop.f32.mrb[0].mxu0
      %v618 = vpop.f32.mrb[0].mxu0
      %v619 = vadd.f32 %v298, %v618
      %v620 = vpop.f32.mrb[0].mxu0
      %621 = vmatprep.mubr.bf16.mxu0 %v515
      %622 = vmatmul.mubr.bf16.gmra.mrb[0].mxu0 %v404
      %v623 = vpop.f32.mrb[0].mxu0
      %v624 = vadd.f32 %v298, %v623
      %v625 = vpop.f32.mrb[0].mxu0
      %v626 = vpop.f32.mrb[0].mxu0
      %v627 = vadd.f32 %v298, %v626
      %v628 = vpop.f32.mrb[0].mxu0
      %629 = vmatprep.mubr.bf16.mxu0 %v518
      %630 = vmatmul.mubr.bf16.gmra.mrb[0].mxu0 %v406
      %v631 = vpop.f32.mrb[0].mxu0
      %v632 = vadd.f32 %v298, %v631
      %v633 = vpop.f32.mrb[0].mxu0
      %v634 = vpop.f32.mrb[0].mxu0
      %v635 = vadd.f32 %v298, %v634
      %v636 = vpop.f32.mrb[0].mxu0
      %637 = vmatprep.mubr.bf16.mxu0 %v521
      %638 = vmatmul.mubr.bf16.gmra.mrb[0].mxu0 %v408
      %v639 = vpop.f32.mrb[0].mxu0
      %v640 = vadd.f32 %v298, %v639
      %v641 = vpop.f32.mrb[0].mxu0
      %v642 = vpop.f32.mrb[0].mxu0
      %v643 = vadd.f32 %v298, %v642
      %v644 = vpop.f32.mrb[0].mxu0
      %645 = vmatprep.mubr.bf16.mxu0 %v524
      %646 = vmatmul.mubr.bf16.gmra.mrb[0].mxu0 %v410
      %v647 = vpop.f32.mrb[0].mxu0
      %v648 = vadd.f32 %v298, %v647
      %v649 = vpop.f32.mrb[0].mxu0
      %v650 = vpop.f32.mrb[0].mxu0
      %v651 = vadd.f32 %v298, %v650
      %v652 = vpop.f32.mrb[0].mxu0
      %653 = vmatprep.mubr.bf16.mxu0 %v527
      %654 = vmatmul.mubr.bf16.gmra.mrb[0].mxu0 %v412
      %v655 = vpop.f32.mrb[0].mxu0
      %v656 = vadd.f32 %v298, %v655
      %v657 = vpop.f32.mrb[0].mxu0
      %v658 = vpop.f32.mrb[0].mxu0
      %v659 = vadd.f32 %v298, %v658
      %v660 = vpop.f32.mrb[0].mxu0
      %661 = vmatprep.mubr.bf16.mxu0 %v530
      %662 = vmatmul.mubr.bf16.gmra.mrb[0].mxu0 %v414
      %v663 = vpop.f32.mrb[0].mxu0
      %v664 = vadd.f32 %v298, %v663
      %v665 = vpop.f32.mrb[0].mxu0
      %v666 = vpop.f32.mrb[0].mxu0
      %v667 = vadd.f32 %v298, %v666
      %v668 = vpop.f32.mrb[0].mxu0
      %669 = vmatprep.mubr.bf16.mxu0 %v533
      %670 = vmatmul.mubr.bf16.gmra.mrb[0].mxu0 %v416
      %v671 = vpop.f32.mrb[0].mxu0
      %v672 = vadd.f32 %v298, %v671
      %v673 = vpop.f32.mrb[0].mxu0
      %v674 = vpop.f32.mrb[0].mxu0
      %v675 = vadd.f32 %v298, %v674
      %v676 = vpop.f32.mrb[0].mxu0
      %677 = vmatprep.mubr.bf16.mxu0 %v536
      %678 = vmatmul.mubr.bf16.gmra.mrb[0].mxu0 %v418
      %v679 = vpop.f32.mrb[0].mxu0
      %v680 = vadd.f32 %v298, %v679
      %v681 = vpop.f32.mrb[0].mxu0
      %v682 = vpop.f32.mrb[0].mxu0
      %v683 = vadd.f32 %v298, %v682
      %v684 = vpop.f32.mrb[0].mxu0
      %685 = vmatprep.mubr.bf16.mxu0 %v539
      %686 = vmatmul.mubr.bf16.gmra.mrb[0].mxu0 %v420
      %v687 = vpop.f32.mrb[0].mxu0
      %v688 = vadd.f32 %v298, %v687
      %v689 = vpop.f32.mrb[0].mxu0
      %v690 = vpop.f32.mrb[0].mxu0
      %v691 = vadd.f32 %v298, %v690
      %v692 = vpop.f32.mrb[0].mxu0
      %693 = vmatprep.mubr.bf16.mxu0 %v542
      %694 = vmatmul.mubr.bf16.gmra.mrb[0].mxu0 %v422
      %v695 = vpop.f32.mrb[0].mxu0
      %v696 = vadd.f32 %v298, %v695
      %v697 = vpop.f32.mrb[0].mxu0
      %v698 = vpop.f32.mrb[0].mxu0
      %v699 = vadd.f32 %v298, %v698
      %v700 = vpop.f32.mrb[0].mxu0
      %701 = vmatprep.mubr.bf16.mxu0 %v545
      %702 = vmatmul.mubr.bf16.gmra.mrb[0].mxu0 %v424
      %v703 = vpop.f32.mrb[0].mxu0
      %v704 = vadd.f32 %v298, %v703
      %v705 = vpop.f32.mrb[0].mxu0
      %v706 = vpop.f32.mrb[0].mxu0
      %v707 = vadd.f32 %v298, %v706
      %v708 = vpop.f32.mrb[0].mxu0
      %709 = vmatprep.mubr.bf16.mxu0 %v548
      %710 = vmatmul.mubr.bf16.gmra.mrb[0].mxu0 %v426
      %v711 = vpop.f32.mrb[0].mxu0
      %v712 = vadd.f32 %v298, %v711
      %v713 = vpop.f32.mrb[0].mxu0
      %v714 = vpop.f32.mrb[0].mxu0
      %v715 = vadd.f32 %v298, %v714
      %v716 = vpop.f32.mrb[0].mxu0
      %717 = vdwg.mxu0
      %vm718 = vcmp.ge.f32.partialorder %v592, 0.0
      %vm719 = vcmp.ge.f32.partialorder %v595, 0.0
      %vm720 = vcmp.ge.f32.partialorder %v600, 0.0
      %vm721 = vcmp.ge.f32.partialorder %v603, 0.0
      %vm722 = vcmp.ge.f32.partialorder %v608, 0.0
      %vm723 = vcmp.ge.f32.partialorder %v611, 0.0
      %vm724 = vcmp.ge.f32.partialorder %v616, 0.0
      %vm725 = vcmp.ge.f32.partialorder %v619, 0.0
      %vm726 = vcmp.ge.f32.partialorder %v624, 0.0
      %vm727 = vcmp.ge.f32.partialorder %v627, 0.0
      %vm728 = vcmp.ge.f32.partialorder %v632, 0.0
      %vm729 = vcmp.ge.f32.partialorder %v635, 0.0
      %vm730 = vcmp.ge.f32.partialorder %v640, 0.0
      %vm731 = vcmp.ge.f32.partialorder %v643, 0.0
      %vm732 = vcmp.ge.f32.partialorder %v648, 0.0
      %vm733 = vcmp.ge.f32.partialorder %v651, 0.0
      %vm734 = vcmp.ge.f32.partialorder %v656, 0.0
      %vm735 = vcmp.ge.f32.partialorder %v659, 0.0
      %vm736 = vcmp.ge.f32.partialorder %v664, 0.0
      %vm737 = vcmp.ge.f32.partialorder %v667, 0.0
      %vm738 = vcmp.ge.f32.partialorder %v672, 0.0
      %vm739 = vcmp.ge.f32.partialorder %v675, 0.0
      %vm740 = vcmp.ge.f32.partialorder %v680, 0.0
      %vm741 = vcmp.ge.f32.partialorder %v683, 0.0
      %vm742 = vcmp.ge.f32.partialorder %v688, 0.0
      %vm743 = vcmp.ge.f32.partialorder %v691, 0.0
      %vm744 = vcmp.ge.f32.partialorder %v696, 0.0
      %vm745 = vcmp.ge.f32.partialorder %v699, 0.0
      %vm746 = vcmp.ge.f32.partialorder %v704, 0.0
      %vm747 = vcmp.ge.f32.partialorder %v707, 0.0
      %vm748 = vcmp.ge.f32.partialorder %v712, 0.0
      %vm749 = vcmp.ge.f32.partialorder %v715, 0.0
      %v750 = vmul.f32 %v592, 0.2
      %v751 = vmul.f32 %v595, 0.2
      %v752 = vmul.f32 %v600, 0.2
      %v753 = vmul.f32 %v603, 0.2
      %v754 = vmul.f32 %v608, 0.2
      %v755 = vmul.f32 %v611, 0.2
      %v756 = vmul.f32 %v616, 0.2
      %v757 = vmul.f32 %v619, 0.2
      %v758 = vmul.f32 %v624, 0.2
      %v759 = vmul.f32 %v627, 0.2
      %v760 = vmul.f32 %v632, 0.2
      %v761 = vmul.f32 %v635, 0.2
      %v762 = vmul.f32 %v640, 0.2
      %v763 = vmul.f32 %v643, 0.2
      %v764 = vmul.f32 %v648, 0.2
      %v765 = vmul.f32 %v651, 0.2
      %v766 = vmul.f32 %v656, 0.2
      %v767 = vmul.f32 %v659, 0.2
      %v768 = vmul.f32 %v664, 0.2
      %v769 = vmul.f32 %v667, 0.2
      %v770 = vmul.f32 %v672, 0.2
      %v771 = vmul.f32 %v675, 0.2
      %v772 = vmul.f32 %v680, 0.2
      %v773 = vmul.f32 %v683, 0.2
      %v774 = vmul.f32 %v688, 0.2
      %v775 = vmul.f32 %v691, 0.2
      %v776 = vmul.f32 %v696, 0.2
      %v777 = vmul.f32 %v699, 0.2
      %v778 = vmul.f32 %v704, 0.2
      %v779 = vmul.f32 %v707, 0.2
      %v780 = vmul.f32 %v712, 0.2
      %v781 = vmul.f32 %v715, 0.2
      %v782 = vsel %vm718, %v592, %v750
      %v783 = vsel %vm719, %v595, %v751
      %v784 = vsel %vm720, %v600, %v752
      %v785 = vsel %vm721, %v603, %v753
      %v786 = vsel %vm722, %v608, %v754
      %v787 = vsel %vm723, %v611, %v755
      %v788 = vsel %vm724, %v616, %v756
      %v789 = vsel %vm725, %v619, %v757
      %v790 = vsel %vm726, %v624, %v758
      %v791 = vsel %vm727, %v627, %v759
      %v792 = vsel %vm728, %v632, %v760
      %v793 = vsel %vm729, %v635, %v761
      %v794 = vsel %vm730, %v640, %v762
      %v795 = vsel %vm731, %v643, %v763
      %v796 = vsel %vm732, %v648, %v764
      %v797 = vsel %vm733, %v651, %v765
      %v798 = vsel %vm734, %v656, %v766
      %v799 = vsel %vm735, %v659, %v767
      %v800 = vsel %vm736, %v664, %v768
      %v801 = vsel %vm737, %v667, %v769
      %v802 = vsel %vm738, %v672, %v770
      %v803 = vsel %vm739, %v675, %v771
      %v804 = vsel %vm740, %v680, %v772
      %v805 = vsel %vm741, %v683, %v773
      %v806 = vsel %vm742, %v688, %v774
      %v807 = vsel %vm743, %v691, %v775
      %v808 = vsel %vm744, %v696, %v776
      %v809 = vsel %vm745, %v699, %v777
      %v810 = vsel %vm746, %v704, %v778
      %v811 = vsel %vm747, %v707, %v779
      %v812 = vsel %vm748, %v712, %v780
      %v813 = vsel %vm749, %v715, %v781
      %vm814 = vcmask 64512
      %815 = vst.msk [vmem:[%s240] sm:$0xff] %vm814, %v782
      %816 = vst.msk [vmem:[%s240 + $0x8] sm:$0xff] %vm814, %v783
      %817 = vst.msk [vmem:[%s240 + $0x10] sm:$0xff] %vm814, %v784
      %818 = vst.msk [vmem:[%s240 + $0x18] sm:$0xff] %vm814, %v785
      %819 = vst.msk [vmem:[%s240 + $0x20] sm:$0xff] %vm814, %v786
      %820 = vst.msk [vmem:[%s240 + $0x28] sm:$0xff] %vm814, %v787
      %821 = vst.msk [vmem:[%s240 + $0x30] sm:$0xff] %vm814, %v788
      %822 = vst.msk [vmem:[%s240 + $0x38] sm:$0xff] %vm814, %v789
      %823 = vst.msk [vmem:[%s240 + $0x40] sm:$0xff] %vm814, %v790
      %824 = vst.msk [vmem:[%s240 + $0x48] sm:$0xff] %vm814, %v791
      %825 = vst.msk [vmem:[%s240 + $0x50] sm:$0xff] %vm814, %v792
      %826 = vst.msk [vmem:[%s240 + $0x58] sm:$0xff] %vm814, %v793
      %827 = vst.msk [vmem:[%s240 + $0x60] sm:$0xff] %vm814, %v794
      %828 = vst.msk [vmem:[%s240 + $0x68] sm:$0xff] %vm814, %v795
      %829 = vst.msk [vmem:[%s240 + $0x70] sm:$0xff] %vm814, %v796
      %830 = vst.msk [vmem:[%s240 + $0x78] sm:$0xff] %vm814, %v797
      %831 = vst.msk [vmem:[%s240 + $0x80] sm:$0xff] %vm814, %v798
      %832 = vst.msk [vmem:[%s240 + $0x88] sm:$0xff] %vm814, %v799
      %833 = vst.msk [vmem:[%s240 + $0x90] sm:$0xff] %vm814, %v800
      %834 = vst.msk [vmem:[%s240 + $0x98] sm:$0xff] %vm814, %v801
      %835 = vst.msk [vmem:[%s240 + $0xa0] sm:$0xff] %vm814, %v802
      %836 = vst.msk [vmem:[%s240 + $0xa8] sm:$0xff] %vm814, %v803
      %837 = vst.msk [vmem:[%s240 + $0xb0] sm:$0xff] %vm814, %v804
      %838 = vst.msk [vmem:[%s240 + $0xb8] sm:$0xff] %vm814, %v805
      %839 = vst.msk [vmem:[%s240 + $0xc0] sm:$0xff] %vm814, %v806
      %840 = vst.msk [vmem:[%s240 + $0xc8] sm:$0xff] %vm814, %v807
      %841 = vst.msk [vmem:[%s240 + $0xd0] sm:$0xff] %vm814, %v808
      %842 = vst.msk [vmem:[%s240 + $0xd8] sm:$0xff] %vm814, %v809
      %843 = vst.msk [vmem:[%s240 + $0xe0] sm:$0xff] %vm814, %v810
      %844 = vst.msk [vmem:[%s240 + $0xe8] sm:$0xff] %vm814, %v811
      %845 = vst.msk [vmem:[%s240 + $0xf0] sm:$0xff] %vm814, %v812
      %846 = vst.msk [vmem:[%s240 + $0xf8] sm:$0xff] %vm814, %v813
      %p847 = scmp.lt.s32.totalorder %s18, 0
      %s848 = scalar_select %p847, %s18, 0
      %p849 = scmp.lt.s32.totalorder %s19, 1
      %s850 = scalar_select %p849, %s19, 1
      %s851 = smul.addr %s850, 32
      %s852 = smul.addr %s848, 64
      %s853 = sadd.s32 %s851, %s852
      %s854 = smul.addr %s853, 8
      %s855 = scalar_lea.vmem %s3, %s854
      // Predicated region
      $region33: #{discriminator_forward.5} parent=31 // pred_check
        %p856 = pneg %p126
      $region34: #{discriminator_forward.5} parent=31 // pred_check_branch
        %858 = sbr.rel (%p856) target = $region36
      $region35: #{discriminator_forward.5} parent=31 // pred_region
        _
      $region36: #{discriminator_forward.5} parent=31 // pred_fallthru
        _
    $region32: #{discriminator_forward.5} parent=5 // pred_fallthru
      _
    %p859 = scmp.le.s32.totalorder 2, %s9
    // Predicated region
    $region37: #{discriminator_forward.5} parent=5 // pred_check
      %p860 = pneg %p859
    $region38: #{discriminator_forward.5} parent=5 // pred_check_branch
      %862 = sbr.rel (%p860) target = $region40
    $region39: #{discriminator_forward.5} parent=5 // pred_region
      %s863 = ssub.s32 %s9, 2
      // Predicated region
      $region41: #{discriminator_forward.5} parent=39 // pred_check
        %p864 = pneg %p132
      $region42: #{discriminator_forward.5} parent=39 // pred_check_branch
        %866 = sbr.rel (%p864) target = $region44
      $region43: #{discriminator_forward.5} parent=39 // pred_region
        %p867 = scmp.lt.s32.totalorder %s20, 0
        %s868 = scalar_select %p867, %s20, 0
        %p869 = scmp.lt.s32.totalorder %s21, 1
        %s870 = scalar_select %p869, %s21, 1
        %s871 = smul.addr %s870, 32
        %s872 = smul.addr %s868, 64
        %s873 = sadd.s32 %s871, %s872
        %s874 = smul.addr %s873, 8
        %s875 = scalar_lea.vmem %s3, %s874
      $region44: #{discriminator_forward.5} parent=39 // pred_fallthru
        _
    $region40: #{discriminator_forward.5} parent=5 // pred_fallthru
      _
  $region6: #{discriminator_forward.5} parent=0 // loop_footer
    %s13 = sadd.s32 1, %s9
  $region7: #{discriminator_forward.5} parent=0 // loop_footer_branch
    %8 = sbr.rel target = $region3
  $region8: #{discriminator_forward.5} parent=0 // loop_exit
    _

// kernel: discriminator_forward.6
$region0: #{discriminator_forward.6}
  #allocation0 [shape = 'u32[]', space=smem, size = 0x4, offset = 0x4, fixed_abs, tag = 'smem constant byte address 0x4 - core index']
  #allocation1 [shape = 'u32[144,128]{1,0:T(1,128)}', space=vmem, size = 0x12000, scoped, tag = 'internal scratch']
  %s0 = inlined_call_operand.vmem [shape: bf16[1,2,64,72], index: 0, kind: input, shape index: {}]
  %s1 = inlined_call_operand.vmem [shape: bf16[1,72,16], index: 1, kind: input, shape index: {}]
  %s2 = inlined_call_operand.vmem [shape: f32[1,1,16], index: 2, kind: input, shape index: {}]
  %s3 = inlined_call_operand.vmem [shape: f32[1,2,64,16], index: 3, kind: output, shape index: {}]
  %s4 = sld [smem:[#allocation0]]
  $region45: #{discriminator_forward.6} parent=0
    _
  %s6 = ssub.s32 1, %s4
  %s7 = scalar_select 0, %s6, %s4
  loop: start=0, step=1, limit=4
  $region2: #{discriminator_forward.6} parent=0 // loop_pre_header
    _
  $region3: #{discriminator_forward.6} parent=0 // loop_header
    %s9 = sphi 0, %s13
    %p10 = scmp.ge.s32.totalorder %s9, 4
    %s16 = sphi 0, %s28
    %s17 = sphi 0, %s24
    %s18 = sphi 0, %s16
    %s19 = sphi 0, %s17
    %s20 = sphi 0, %s18
    %s21 = sphi 0, %s19
    %s33 = sphi 0, %s35
    %s36 = sphi 0, %s33
    %s37 = sphi 0, %s36
    %s53 = sphi 0, %s37
    %s59 = sphi 0, %s61
    %s62 = sphi 0, %s59
    %s63 = sphi 0, %s62
    %s79 = sphi 0, %s63
    %s85 = sphi 0, %s87
    %s88 = sphi 0, %s85
    %s89 = sphi 0, %s88
    %s105 = sphi 0, %s89
    %s113 = sphi 0, %s115
    %s116 = sphi 0, %s113
    %s117 = sphi 0, %s116
    %s133 = sphi 0, %s117
  $region4: #{discriminator_forward.6} parent=0 // loop_header_branch
    %12 = sbr.rel (%p10) target = $region8
  $region5: #{discriminator_forward.6} parent=0 // loop_body
    %s14 = ssub.s32 %s9, 1
    %s15 = ssub.s32 %s9, 2
    %s22 = sadd.s32 1, %s17
    %p23 = scmp.ge.s32.totalorder %s22, 2
    %s24 = scalar_select %p23, 0, %s22
    %s25 = sadd.s32 1, %s16
    %s26 = scalar_select %p23, %s25, %s16
    %p27 = scmp.ge.s32.totalorder %s26, 1
    %s28 = scalar_select %p27, 0, %s26
    %s29 = ssub.s32 %s16, %s28
    %s30 = ssub.s32 %s17, %s24
    %s31 = sor.u32 %s29, %s30
    %p32 = scmp.eq.s32.totalorder %s31, 0
    %s34 = sadd.s32 %s33, 1
    %s35 = scalar_select %p32, %s33, %s34
    %p38 = pneg %p32
    %p39 = scmp.eq.s32.totalorder %s9, 1
    %p40 = por %p38, %p39
    %p41 = scmp.ne.s32.totalorder %s33, %s36
    %p42 = scmp.eq.s32.totalorder %s9, 0
    %p43 = por %p41, %p42
    %p44 = scmp.ne.s32.totalorder %s33, %s36
    %p45 = scmp.eq.s32.totalorder %s14, 1
    %p46 = por %p44, %p45
    %p47 = scmp.ne.s32.totalorder %s36, %s37
    %p48 = scmp.eq.s32.totalorder %s14, 0
    %p49 = por %p47, %p48
    %p50 = scmp.ne.s32.totalorder %s36, %s37
    %p51 = scmp.eq.s32.totalorder %s15, 1
    %p52 = por %p50, %p51
    %p54 = scmp.ne.s32.totalorder %s37, %s53
    %p55 = scmp.eq.s32.totalorder %s15, 0
    %p56 = por %p54, %p55
    %s57 = ssub.s32 %s16, %s28
    %p58 = scmp.eq.s32.totalorder %s57, 0
    %s60 = sadd.s32 %s59, 1
    %s61 = scalar_select %p58, %s59, %s60
    %p64 = pneg %p58
    %p65 = scmp.eq.s32.totalorder %s9, 1
    %p66 = por %p64, %p65
    %p67 = scmp.ne.s32.totalorder %s59, %s62
    %p68 = scmp.eq.s32.totalorder %s9, 0
    %p69 = por %p67, %p68
    %p70 = scmp.ne.s32.totalorder %s59, %s62
    %p71 = scmp.eq.s32.totalorder %s14, 1
    %p72 = por %p70, %p71
    %p73 = scmp.ne.s32.totalorder %s62, %s63
    %p74 = scmp.eq.s32.totalorder %s14, 0
    %p75 = por %p73, %p74
    %p76 = scmp.ne.s32.totalorder %s62, %s63
    %p77 = scmp.eq.s32.totalorder %s15, 1
    %p78 = por %p76, %p77
    %p80 = scmp.ne.s32.totalorder %s63, %s79
    %p81 = scmp.eq.s32.totalorder %s15, 0
    %p82 = por %p80, %p81
    %s83 = ssub.s32 %s16, %s28
    %p84 = scmp.eq.s32.totalorder %s83, 0
    %s86 = sadd.s32 %s85, 1
    %s87 = scalar_select %p84, %s85, %s86
    %p90 = pneg %p84
    %p91 = scmp.eq.s32.totalorder %s9, 1
    %p92 = por %p90, %p91
    %p93 = scmp.ne.s32.totalorder %s85, %s88
    %p94 = scmp.eq.s32.totalorder %s9, 0
    %p95 = por %p93, %p94
    %p96 = scmp.ne.s32.totalorder %s85, %s88
    %p97 = scmp.eq.s32.totalorder %s14, 1
    %p98 = por %p96, %p97
    %p99 = scmp.ne.s32.totalorder %s88, %s89
    %p100 = scmp.eq.s32.totalorder %s14, 0
    %p101 = por %p99, %p100
    %p102 = scmp.ne.s32.totalorder %s88, %s89
    %p103 = scmp.eq.s32.totalorder %s15, 1
    %p104 = por %p102, %p103
    %p106 = scmp.ne.s32.totalorder %s89, %s105
    %p107 = scmp.eq.s32.totalorder %s15, 0
    %p108 = por %p106, %p107
    %s109 = ssub.s32 %s16, %s28
    %s110 = ssub.s32 %s17, %s24
    %s111 = sor.u32 %s109, %s110
    %p112 = scmp.eq.s32.totalorder %s111, 0
    %s114 = sadd.s32 %s113, 1
    %s115 = scalar_select %p112, %s113, %s114
    %p118 = pneg %p112
    %p119 = scmp.eq.s32.totalorder %s9, 1
    %p120 = por %p118, %p119
    %p121 = scmp.ne.s32.totalorder %s113, %s116
    %p122 = scmp.eq.s32.totalorder %s9, 0
    %p123 = por %p121, %p122
    %p124 = scmp.ne.s32.totalorder %s113, %s116
    %p125 = scmp.eq.s32.totalorder %s14, 1
    %p126 = por %p124, %p125
    %p127 = scmp.ne.s32.totalorder %s116, %s117
    %p128 = scmp.eq.s32.totalorder %s14, 0
    %p129 = por %p127, %p128
    %p130 = scmp.ne.s32.totalorder %s116, %s117
    %p131 = scmp.eq.s32.totalorder %s15, 1
    %p132 = por %p130, %p131
    %p134 = scmp.ne.s32.totalorder %s117, %s133
    %p135 = scmp.eq.s32.totalorder %s15, 0
    %p136 = por %p134, %p135
    %p137 = scmp.le.s32.totalorder 1, %s9
    %p138 = scmp.lt.s32.totalorder %s9, 3
    %p139 = pnand %p137, %p138
    %p140 = pneg %p139
    // Predicated region
    $region9: #{discriminator_forward.6} parent=5 // pred_check
      _
    $region10: #{discriminator_forward.6} parent=5 // pred_check_branch
      %142 = sbr.rel (%p139) target = $region12
    $region11: #{discriminator_forward.6} parent=5 // pred_region
      %s143 = ssub.s32 %s9, 1
      // Predicated region
      $region13: #{discriminator_forward.6} parent=11 // pred_check
        %p144 = pneg %p75
      $region14: #{discriminator_forward.6} parent=11 // pred_check_branch
        %146 = sbr.rel (%p144) target = $region16
      $region15: #{discriminator_forward.6} parent=11 // pred_region
        %p147 = scmp.lt.s32.totalorder %s18, 0
        %s148 = scalar_select %p147, %s18, 0
        %s149 = smul.addr %s148, 9
        %s150 = smul.addr %s149, 4
        %s151 = scalar_lea.vmem %s1, %s150
      $region16: #{discriminator_forward.6} parent=11 // pred_fallthru
        _
      // Predicated region
      $region17: #{discriminator_forward.6} parent=11 // pred_check
        %p152 = pneg %p101
      $region18: #{discriminator_forward.6} parent=11 // pred_check_branch
        %154 = sbr.rel (%p152) target = $region20
      $region19: #{discriminator_forward.6} parent=11 // pred_region
        %p155 = scmp.lt.s32.totalorder %s18, 0
        %s156 = scalar_select %p155, %s18, 0
        %s157 = scalar_lea.vmem %s2, %s156
      $region20: #{discriminator_forward.6} parent=11 // pred_fallthru
        _
    $region12: #{discriminator_forward.6} parent=5 // pred_fallthru
      _
    %p158 = scmp.lt.s32.totalorder %s9, 2
    // Predicated region
    $region21: #{discriminator_forward.6} parent=5 // pred_check
      %p159 = pneg %p158
    $region22: #{discriminator_forward.6} parent=5 // pred_check_branch
      %161 = sbr.rel (%p159) target = $region24
    $region23: #{discriminator_forward.6} parent=5 // pred_region
      // Predicated region
      $region25: #{discriminator_forward.6} parent=23 // pred_check
        %p162 = pneg %p43
      $region26: #{discriminator_forward.6} parent=23 // pred_check_branch
        %164 = sbr.rel (%p162) target = $region28
      $region27: #{discriminator_forward.6} parent=23 // pred_region
        %p165 = scmp.lt.s32.totalorder %s16, 0
        %s166 = scalar_select %p165, %s16, 0
        %p167 = scmp.lt.s32.totalorder %s17, 1
        %s168 = scalar_select %p167, %s17, 1
        %s169 = smul.addr %s168, 8
        %s170 = smul.addr %s166, 16
        %s171 = sadd.s32 %s169, %s170
        %s172 = smul.addr %s171, 4
        %s173 = scalar_lea.vmem %s0, %s172
      $region28: #{discriminator_forward.6} parent=23 // pred_fallthru
        _
    $region24: #{discriminator_forward.6} parent=5 // pred_fallthru
      _
    %p174 = scmp.le.s32.totalorder 1, %s9
    %p175 = scmp.lt.s32.totalorder %s9, 3
    %p176 = pnand %p174, %p175
    %p177 = pneg %p176
    // Predicated region
    $region29: #{discriminator_forward.6} parent=5 // pred_check
      _
    $region30: #{discriminator_forward.6} parent=5 // pred_check_branch
      %179 = sbr.rel (%p176) target = $region32
    $region31: #{discriminator_forward.6} parent=5 // pred_region
      %s180 = ssub.s32 %s9, 1
      %p181 = scmp.lt.s32.totalorder %s18, 0
      %s182 = scalar_select %p181, %s18, 0
      %p183 = scmp.lt.s32.totalorder %s19, 1
      %s184 = scalar_select %p183, %s19, 1
      %s185 = smul.addr %s184, 8
      %s186 = smul.addr %s182, 16
      %s187 = sadd.s32 %s185, %s186
      %s188 = smul.addr %s187, 4
      %s189 = scalar_lea.vmem %s0, %s188
      %p190 = pneg %p49
      %p191 = pneg %p46
      %p192 = scmp.lt.s32.totalorder %s18, 0
      %s193 = scalar_select %p192, %s18, 0
      %s194 = smul.addr %s193, 9
      %s195 = smul.addr %s194, 4
      %s196 = scalar_lea.vmem %s1, %s195
      %p197 = pneg %p75
      %p198 = pneg %p72
      %p199 = scmp.lt.s32.totalorder %s18, 0
      %s200 = scalar_select %p199, %s18, 0
      %s201 = scalar_lea.vmem %s2, %s200
      %p202 = pneg %p101
      %p203 = pneg %p98
      %p204 = pneg %p129
      %p205 = pneg %p126
      %p206 = scmp.lt.s32.totalorder %s18, 0
      %s207 = scalar_select %p206, %s18, 0
      %p208 = scmp.lt.s32.totalorder %s19, 1
      %s209 = scalar_select %p208, %s19, 1
      %s210 = smul.addr %s209, 8
      %s211 = smul.addr %s207, 16
      %s212 = sadd.s32 %s210, %s211
      %s213 = smul.addr %s212, 8
      %s214 = scalar_lea.vmem %s3, %s213
      %p215 = scmp.lt.s32.totalorder %s18, 0
      %s216 = scalar_select %p215, %s18, 0
      %p217 = scmp.lt.s32.totalorder %s19, 1
      %s218 = scalar_select %p217, %s19, 1
      %s219 = smul.addr %s218, 8
      %s220 = smul.addr %s216, 16
      %s221 = sadd.s32 %s219, %s220
      %s222 = smul.addr %s221, 4
      %s223 = scalar_lea.vmem %s0, %s222
      %p224 = scmp.lt.s32.totalorder %s18, 0
      %s225 = scalar_select %p224, %s18, 0
      %s226 = smul.addr %s225, 9
      %s227 = smul.addr %s226, 4
      %s228 = scalar_lea.vmem %s1, %s227
      %p229 = scmp.lt.s32.totalorder %s18, 0
      %s230 = scalar_select %p229, %s18, 0
      %s231 = scalar_lea.vmem %s2, %s230
      %p232 = scmp.lt.s32.totalorder %s18, 0
      %s233 = scalar_select %p232, %s18, 0
      %p234 = scmp.lt.s32.totalorder %s19, 1
      %s235 = scalar_select %p234, %s19, 1
      %s236 = smul.addr %s235, 8
      %s237 = smul.addr %s233, 16
      %s238 = sadd.s32 %s236, %s237
      %s239 = smul.addr %s238, 8
      %s240 = scalar_lea.vmem %s3, %s239
      %v242 = vld [vmem:[%s223] sm:$0xf]
      %v243 = vld [vmem:[%s223 + $0x4] sm:$0xf]
      %v244 = vld [vmem:[%s223 + $0x8] sm:$0xf]
      %v245 = vld [vmem:[%s223 + $0xc] sm:$0xf]
      %v246 = vld [vmem:[%s223 + $0x10] sm:$0xf]
      %v247 = vld [vmem:[%s223 + $0x14] sm:$0xf]
      %v248 = vld [vmem:[%s223 + $0x18] sm:$0xf]
      %v249 = vld [vmem:[%s223 + $0x1c] sm:$0xf]
      %v250 = vld [vmem:[%s228] sm:$0xf]
      %v251 = vld [vmem:[%s228 + $0x4] sm:$0xf]
      %v252 = vld [vmem:[%s228 + $0x8] sm:$0xf]
      %v253 = vld [vmem:[%s228 + $0xc] sm:$0xf]
      %v254 = vld [vmem:[%s228 + $0x10] sm:$0xf]
      %v255 = vld [vmem:[%s228 + $0x14] sm:$0xf]
      %v256 = vld [vmem:[%s228 + $0x18] sm:$0xf]
      %v257 = vld [vmem:[%s228 + $0x1c] sm:$0xf]
      %v258 = vld [vmem:[%s228 + $0x20] sm:$0xf]
      %v259 = vld [vmem:[%s231] sm:$0x1]
      %v261 = vlaneseq
      %v262 = vshrl.u32 %v261, 7
      %v263 = vsub.s32 0, %v262
      %v264 = vrot.slane %v259, %v263
      %v274 = vunpack.c.l.b16 %v242
      %v275 = vunpack.c.l.b16 %v243
      %v276 = vunpack.c.l.b16 %v244
      %v277 = vunpack.c.l.b16 %v245
      %v278 = vunpack.c.l.b16 %v246
      %v279 = vunpack.c.l.b16 %v247
      %v280 = vunpack.c.l.b16 %v248
      %v281 = vunpack.c.l.b16 %v249
      %v282 = vpack.c.b16 %v275, %v274
      %v283 = vpack.c.b16 %v277, %v276
      %v284 = vpack.c.b16 %v279, %v278
      %v285 = vpack.c.b16 %v281, %v280
      %v295 = vunpack.c.l.b16 %v250
      %v296 = vunpack.c.l.b16 %v251
      %v297 = vunpack.c.l.b16 %v252
      %v298 = vunpack.c.l.b16 %v253
      %v299 = vunpack.c.l.b16 %v254
      %v300 = vunpack.c.l.b16 %v255
      %v301 = vunpack.c.l.b16 %v256
      %v302 = vunpack.c.l.b16 %v257
      %v303 = vunpack.c.l.b16 %v258
      %v304 = vpack.c.b16 %v296, %v295
      %v305 = vpack.c.b16 %v298, %v297
      %v306 = vpack.c.b16 %v300, %v299
      %v307 = vpack.c.b16 %v302, %v301
      %v308 = vpack.c.b16 %v303, %v303
      %vm313 = vcmask 588800
      %v315 = vsel %vm313, %v282, 0
      %v318 = vsel %vm313, %v283, 0
      %v321 = vsel %vm313, %v284, 0
      %v324 = vsel %vm313, %v285, 0
      %vm326 = vcmask 1043456
      %v328 = vsel %vm326, %v308, 0
      %330 = vmatprep.subr.bf16.mxu0 0
      %331 = vmatpush1.bf16.msra.mxu0 %v304
      %332 = vmatprep.subr.bf16.mxu0 0
      %333 = vmatpush1.bf16.msra.mxu0 %v305
      %334 = vmatprep.subr.bf16.mxu0 0
      %335 = vmatpush1.bf16.msra.mxu0 %v306
      %336 = vmatprep.subr.bf16.mxu0 0
      %337 = vmatpush1.bf16.msra.mxu0 %v307
      %338 = vmatprep.subr.bf16.mxu0 0
      %339 = vmatpush1.bf16.msra.mxu0 %v328
      %340 = vmatprep.subr.bf16.mxu0 0
      %341 = vmatpush1.bf16.msra.mxu0 0
      %342 = vmatprep.subr.bf16.mxu0 0
      %343 = vmatpush1.bf16.msra.mxu0 0
      %344 = vmatprep.subr.bf16.mxu0 0
      %345 = vmatpush1.bf16.msra.mxu0 0
      %346 = vmatprep.subr.bf16.mxu0 0
      %347 = vmatpush1.bf16.msra.mxu0 0
      %348 = vmatprep.subr.bf16.mxu0 0
      %349 = vmatpush1.bf16.msra.mxu0 0
      %350 = vmatprep.subr.bf16.mxu0 0
      %351 = vmatpush1.bf16.msra.mxu0 0
      %352 = vmatprep.subr.bf16.mxu0 0
      %353 = vmatpush1.bf16.msra.mxu0 0
      %354 = vmatprep.subr.bf16.mxu0 0
      %355 = vmatpush1.bf16.msra.mxu0 0
      %356 = vmatprep.subr.bf16.mxu0 0
      %357 = vmatpush1.bf16.msra.mxu0 0
      %358 = vmatprep.subr.bf16.mxu0 0
      %359 = vmatpush1.bf16.msra.mxu0 0
      %360 = vmatprep.subr.bf16.mxu0 0
      %361 = vmatpush1.bf16.msra.mxu0 0
      %362 = vmatprep.mubr.bf16.mxu0 0
      %363 = vmatmul.mubr.bf16.gmra.mrb[0].mxu0 %v315
      %v364 = vpop.f32.mrb[0].mxu0
      %v365 = vadd.f32 %v264, %v364
      %v366 = vpop.f32.mrb[0].mxu0
      %v367 = vpop.f32.mrb[0].mxu0
      %v368 = vadd.f32 %v264, %v367
      %v369 = vpop.f32.mrb[0].mxu0
      %370 = vmatprep.mubr.bf16.mxu0 0
      %371 = vmatmul.mubr.bf16.gmra.mrb[0].mxu0 %v318
      %v372 = vpop.f32.mrb[0].mxu0
      %v373 = vadd.f32 %v264, %v372
      %v374 = vpop.f32.mrb[0].mxu0
      %v375 = vpop.f32.mrb[0].mxu0
      %v376 = vadd.f32 %v264, %v375
      %v377 = vpop.f32.mrb[0].mxu0
      %378 = vmatprep.mubr.bf16.mxu0 0
      %379 = vmatmul.mubr.bf16.gmra.mrb[0].mxu0 %v321
      %v380 = vpop.f32.mrb[0].mxu0
      %v381 = vadd.f32 %v264, %v380
      %v382 = vpop.f32.mrb[0].mxu0
      %v383 = vpop.f32.mrb[0].mxu0
      %v384 = vadd.f32 %v264, %v383
      %v385 = vpop.f32.mrb[0].mxu0
      %386 = vmatprep.mubr.bf16.mxu0 0
      %387 = vmatmul.mubr.bf16.gmra.mrb[0].mxu0 %v324
      %v388 = vpop.f32.mrb[0].mxu0
      %v389 = vadd.f32 %v264, %v388
      %v390 = vpop.f32.mrb[0].mxu0
      %v391 = vpop.f32.mrb[0].mxu0
      %v392 = vadd.f32 %v264, %v391
      %v393 = vpop.f32.mrb[0].mxu0
      %394 = vdwg.mxu0
      %vm395 = vcmask 130048
      %v396 = vsel %vm395, %v365, 0.0
      %v397 = vsel %vm395, %v368, 0.0
      %v398 = vadd.f32 %v396, %v397
      %v399 = vsel %vm395, %v373, 0.0
      %v400 = vadd.f32 %v398, %v399
      %v401 = vsel %vm395, %v376, 0.0
      %v402 = vadd.f32 %v400, %v401
      %v403 = vsel %vm395, %v381, 0.0
      %v404 = vadd.f32 %v402, %v403
      %v405 = vsel %vm395, %v384, 0.0
      %v406 = vadd.f32 %v404, %v405
      %v407 = vsel %vm395, %v389, 0.0
      %v408 = vadd.f32 %v406, %v407
      %v409 = vsel %vm395, %v392, 0.0
      %v410 = vadd.f32 %v408, %v409
      %v411 = vrot.slane %v410, 4
      %v412 = vadd.f32 %v410, %v411
      %v413 = vrot.slane %v412, 2
      %v414 = vadd.f32 %v412, %v413
      %v415 = vrot.slane %v414, 1
      %v416 = vadd.f32 %v414, %v415
      %v417 = vrcp.pop 64.0
      %v418 = vmul.f32 %v416, %v417
      %v419 = vsub.f32 %v365, %v418
      %v420 = vsub.f32 %v368, %v418
      %v421 = vsub.f32 %v373, %v418
      %v422 = vsub.f32 %v376, %v418
      %v423 = vsub.f32 %v381, %v418
      %v424 = vsub.f32 %v384, %v418
      %v425 = vsub.f32 %v389, %v418
      %v426 = vsub.f32 %v392, %v418
      %v427 = vmul.f32 %v419, %v419
      %v428 = vmul.f32 %v420, %v420
      %v429 = vmul.f32 %v421, %v421
      %v430 = vmul.f32 %v422, %v422
      %v431 = vmul.f32 %v423, %v423
      %v432 = vmul.f32 %v424, %v424
      %v433 = vmul.f32 %v425, %v425
      %v434 = vmul.f32 %v426, %v426
      %v435 = vsel %vm395, %v427, 0.0
      %v436 = vsel %vm395, %v428, 0.0
      %v437 = vadd.f32 %v435, %v436
      %v438 = vsel %vm395, %v429, 0.0
      %v439 = vadd.f32 %v437, %v438
      %v440 = vsel %vm395, %v430, 0.0
      %v441 = vadd.f32 %v439, %v440
      %v442 = vsel %vm395, %v431, 0.0
      %v443 = vadd.f32 %v441, %v442
      %v444 = vsel %vm395, %v432, 0.0
      %v445 = vadd.f32 %v443, %v444
      %v446 = vsel %vm395, %v433, 0.0
      %v447 = vadd.f32 %v445, %v446
      %v448 = vsel %vm395, %v434, 0.0
      %v449 = vadd.f32 %v447, %v448
      %v450 = vrot.slane %v449, 4
      %v451 = vadd.f32 %v449, %v450
      %v452 = vrot.slane %v451, 2
      %v453 = vadd.f32 %v451, %v452
      %v454 = vrot.slane %v453, 1
      %v455 = vadd.f32 %v453, %v454
      %v456 = vmul.f32 %v455, %v417
      %v457 = vadd.f32 %v456, 1e-05
      %v458 = vrsqrt.pop %v457
      %v459 = vmul.f32 %v419, %v458
      %v460 = vmul.f32 %v420, %v458
      %v461 = vmul.f32 %v421, %v458
      %v462 = vmul.f32 %v422, %v458
      %v463 = vmul.f32 %v423, %v458
      %v464 = vmul.f32 %v424, %v458
      %v465 = vmul.f32 %v425, %v458
      %v466 = vmul.f32 %v426, %v458
      %vm467 = vcmp.ge.f32.partialorder %v459, 0.0
      %vm468 = vcmp.ge.f32.partialorder %v460, 0.0
      %vm469 = vcmp.ge.f32.partialorder %v461, 0.0
      %vm470 = vcmp.ge.f32.partialorder %v462, 0.0
      %vm471 = vcmp.ge.f32.partialorder %v463, 0.0
      %vm472 = vcmp.ge.f32.partialorder %v464, 0.0
      %vm473 = vcmp.ge.f32.partialorder %v465, 0.0
      %vm474 = vcmp.ge.f32.partialorder %v466, 0.0
      %v475 = vmul.f32 %v459, 0.2
      %v476 = vmul.f32 %v460, 0.2
      %v477 = vmul.f32 %v461, 0.2
      %v478 = vmul.f32 %v462, 0.2
      %v479 = vmul.f32 %v463, 0.2
      %v480 = vmul.f32 %v464, 0.2
      %v481 = vmul.f32 %v465, 0.2
      %v482 = vmul.f32 %v466, 0.2
      %v483 = vsel %vm467, %v459, %v475
      %v484 = vsel %vm468, %v460, %v476
      %v485 = vsel %vm469, %v461, %v477
      %v486 = vsel %vm470, %v462, %v478
      %v487 = vsel %vm471, %v463, %v479
      %v488 = vsel %vm472, %v464, %v480
      %v489 = vsel %vm473, %v465, %v481
      %v490 = vsel %vm474, %v466, %v482
      %491 = vst.msk [vmem:[%s240] sm:$0xff] %vm395, %v483
      %492 = vst.msk [vmem:[%s240 + $0x8] sm:$0xff] %vm395, %v484
      %493 = vst.msk [vmem:[%s240 + $0x10] sm:$0xff] %vm395, %v485
      %494 = vst.msk [vmem:[%s240 + $0x18] sm:$0xff] %vm395, %v486
      %495 = vst.msk [vmem:[%s240 + $0x20] sm:$0xff] %vm395, %v487
      %496 = vst.msk [vmem:[%s240 + $0x28] sm:$0xff] %vm395, %v488
      %497 = vst.msk [vmem:[%s240 + $0x30] sm:$0xff] %vm395, %v489
      %498 = vst.msk [vmem:[%s240 + $0x38] sm:$0xff] %vm395, %v490
      %p499 = scmp.lt.s32.totalorder %s18, 0
      %s500 = scalar_select %p499, %s18, 0
      %p501 = scmp.lt.s32.totalorder %s19, 1
      %s502 = scalar_select %p501, %s19, 1
      %s503 = smul.addr %s502, 8
      %s504 = smul.addr %s500, 16
      %s505 = sadd.s32 %s503, %s504
      %s506 = smul.addr %s505, 8
      %s507 = scalar_lea.vmem %s3, %s506
      // Predicated region
      $region33: #{discriminator_forward.6} parent=31 // pred_check
        %p508 = pneg %p126
      $region34: #{discriminator_forward.6} parent=31 // pred_check_branch
        %510 = sbr.rel (%p508) target = $region36
      $region35: #{discriminator_forward.6} parent=31 // pred_region
        _
      $region36: #{discriminator_forward.6} parent=31 // pred_fallthru
        _
    $region32: #{discriminator_forward.6} parent=5 // pred_fallthru
      _
    %p511 = scmp.le.s32.totalorder 2, %s9
    // Predicated region
    $region37: #{discriminator_forward.6} parent=5 // pred_check
      %p512 = pneg %p511
    $region38: #{discriminator_forward.6} parent=5 // pred_check_branch
      %514 = sbr.rel (%p512) target = $region40
    $region39: #{discriminator_forward.6} parent=5 // pred_region
      %s515 = ssub.s32 %s9, 2
      // Predicated region
      $region41: #{discriminator_forward.6} parent=39 // pred_check
        %p516 = pneg %p132
      $region42: #{discriminator_forward.6} parent=39 // pred_check_branch
        %518 = sbr.rel (%p516) target = $region44
      $region43: #{discriminator_forward.6} parent=39 // pred_region
        %p519 = scmp.lt.s32.totalorder %s20, 0
        %s520 = scalar_select %p519, %s20, 0
        %p521 = scmp.lt.s32.totalorder %s21, 1
        %s522 = scalar_select %p521, %s21, 1
        %s523 = smul.addr %s522, 8
        %s524 = smul.addr %s520, 16
        %s525 = sadd.s32 %s523, %s524
        %s526 = smul.addr %s525, 8
        %s527 = scalar_lea.vmem %s3, %s526
      $region44: #{discriminator_forward.6} parent=39 // pred_fallthru
        _
    $region40: #{discriminator_forward.6} parent=5 // pred_fallthru
      _
  $region6: #{discriminator_forward.6} parent=0 // loop_footer
    %s13 = sadd.s32 1, %s9
  $region7: #{discriminator_forward.6} parent=0 // loop_footer_branch
    %8 = sbr.rel target = $region3
  $region8: #{discriminator_forward.6} parent=0 // loop_exit
    _

// kernel: discriminator_forward.7
$region0: #{discriminator_forward.7}
  #allocation0 [shape = 'u32[]', space=smem, size = 0x4, offset = 0x4, fixed_abs, tag = 'smem constant byte address 0x4 - core index']
  #allocation1 [shape = 'u32[144,128]{1,0:T(1,128)}', space=vmem, size = 0x12000, scoped, tag = 'internal scratch']
  %s0 = inlined_call_operand.vmem [shape: bf16[1,2,16,144], index: 0, kind: input, shape index: {}]
  %s1 = inlined_call_operand.vmem [shape: bf16[1,144,32], index: 1, kind: input, shape index: {}]
  %s2 = inlined_call_operand.vmem [shape: f32[1,1,32], index: 2, kind: input, shape index: {}]
  %s3 = inlined_call_operand.vmem [shape: f32[1,2,16,32], index: 3, kind: output, shape index: {}]
  %s4 = sld [smem:[#allocation0]]
  $region45: #{discriminator_forward.7} parent=0
    _
  %s6 = ssub.s32 1, %s4
  %s7 = scalar_select 0, %s6, %s4
  loop: start=0, step=1, limit=4
  $region2: #{discriminator_forward.7} parent=0 // loop_pre_header
    _
  $region3: #{discriminator_forward.7} parent=0 // loop_header
    %s9 = sphi 0, %s13
    %p10 = scmp.ge.s32.totalorder %s9, 4
    %s16 = sphi 0, %s28
    %s17 = sphi 0, %s24
    %s18 = sphi 0, %s16
    %s19 = sphi 0, %s17
    %s20 = sphi 0, %s18
    %s21 = sphi 0, %s19
    %s33 = sphi 0, %s35
    %s36 = sphi 0, %s33
    %s37 = sphi 0, %s36
    %s53 = sphi 0, %s37
    %s59 = sphi 0, %s61
    %s62 = sphi 0, %s59
    %s63 = sphi 0, %s62
    %s79 = sphi 0, %s63
    %s85 = sphi 0, %s87
    %s88 = sphi 0, %s85
    %s89 = sphi 0, %s88
    %s105 = sphi 0, %s89
    %s113 = sphi 0, %s115
    %s116 = sphi 0, %s113
    %s117 = sphi 0, %s116
    %s133 = sphi 0, %s117
  $region4: #{discriminator_forward.7} parent=0 // loop_header_branch
    %12 = sbr.rel (%p10) target = $region8
  $region5: #{discriminator_forward.7} parent=0 // loop_body
    %s14 = ssub.s32 %s9, 1
    %s15 = ssub.s32 %s9, 2
    %s22 = sadd.s32 1, %s17
    %p23 = scmp.ge.s32.totalorder %s22, 2
    %s24 = scalar_select %p23, 0, %s22
    %s25 = sadd.s32 1, %s16
    %s26 = scalar_select %p23, %s25, %s16
    %p27 = scmp.ge.s32.totalorder %s26, 1
    %s28 = scalar_select %p27, 0, %s26
    %s29 = ssub.s32 %s16, %s28
    %s30 = ssub.s32 %s17, %s24
    %s31 = sor.u32 %s29, %s30
    %p32 = scmp.eq.s32.totalorder %s31, 0
    %s34 = sadd.s32 %s33, 1
    %s35 = scalar_select %p32, %s33, %s34
    %p38 = pneg %p32
    %p39 = scmp.eq.s32.totalorder %s9, 1
    %p40 = por %p38, %p39
    %p41 = scmp.ne.s32.totalorder %s33, %s36
    %p42 = scmp.eq.s32.totalorder %s9, 0
    %p43 = por %p41, %p42
    %p44 = scmp.ne.s32.totalorder %s33, %s36
    %p45 = scmp.eq.s32.totalorder %s14, 1
    %p46 = por %p44, %p45
    %p47 = scmp.ne.s32.totalorder %s36, %s37
    %p48 = scmp.eq.s32.totalorder %s14, 0
    %p49 = por %p47, %p48
    %p50 = scmp.ne.s32.totalorder %s36, %s37
    %p51 = scmp.eq.s32.totalorder %s15, 1
    %p52 = por %p50, %p51
    %p54 = scmp.ne.s32.totalorder %s37, %s53
    %p55 = scmp.eq.s32.totalorder %s15, 0
    %p56 = por %p54, %p55
    %s57 = ssub.s32 %s16, %s28
    %p58 = scmp.eq.s32.totalorder %s57, 0
    %s60 = sadd.s32 %s59, 1
    %s61 = scalar_select %p58, %s59, %s60
    %p64 = pneg %p58
    %p65 = scmp.eq.s32.totalorder %s9, 1
    %p66 = por %p64, %p65
    %p67 = scmp.ne.s32.totalorder %s59, %s62
    %p68 = scmp.eq.s32.totalorder %s9, 0
    %p69 = por %p67, %p68
    %p70 = scmp.ne.s32.totalorder %s59, %s62
    %p71 = scmp.eq.s32.totalorder %s14, 1
    %p72 = por %p70, %p71
    %p73 = scmp.ne.s32.totalorder %s62, %s63
    %p74 = scmp.eq.s32.totalorder %s14, 0
    %p75 = por %p73, %p74
    %p76 = scmp.ne.s32.totalorder %s62, %s63
    %p77 = scmp.eq.s32.totalorder %s15, 1
    %p78 = por %p76, %p77
    %p80 = scmp.ne.s32.totalorder %s63, %s79
    %p81 = scmp.eq.s32.totalorder %s15, 0
    %p82 = por %p80, %p81
    %s83 = ssub.s32 %s16, %s28
    %p84 = scmp.eq.s32.totalorder %s83, 0
    %s86 = sadd.s32 %s85, 1
    %s87 = scalar_select %p84, %s85, %s86
    %p90 = pneg %p84
    %p91 = scmp.eq.s32.totalorder %s9, 1
    %p92 = por %p90, %p91
    %p93 = scmp.ne.s32.totalorder %s85, %s88
    %p94 = scmp.eq.s32.totalorder %s9, 0
    %p95 = por %p93, %p94
    %p96 = scmp.ne.s32.totalorder %s85, %s88
    %p97 = scmp.eq.s32.totalorder %s14, 1
    %p98 = por %p96, %p97
    %p99 = scmp.ne.s32.totalorder %s88, %s89
    %p100 = scmp.eq.s32.totalorder %s14, 0
    %p101 = por %p99, %p100
    %p102 = scmp.ne.s32.totalorder %s88, %s89
    %p103 = scmp.eq.s32.totalorder %s15, 1
    %p104 = por %p102, %p103
    %p106 = scmp.ne.s32.totalorder %s89, %s105
    %p107 = scmp.eq.s32.totalorder %s15, 0
    %p108 = por %p106, %p107
    %s109 = ssub.s32 %s16, %s28
    %s110 = ssub.s32 %s17, %s24
    %s111 = sor.u32 %s109, %s110
    %p112 = scmp.eq.s32.totalorder %s111, 0
    %s114 = sadd.s32 %s113, 1
    %s115 = scalar_select %p112, %s113, %s114
    %p118 = pneg %p112
    %p119 = scmp.eq.s32.totalorder %s9, 1
    %p120 = por %p118, %p119
    %p121 = scmp.ne.s32.totalorder %s113, %s116
    %p122 = scmp.eq.s32.totalorder %s9, 0
    %p123 = por %p121, %p122
    %p124 = scmp.ne.s32.totalorder %s113, %s116
    %p125 = scmp.eq.s32.totalorder %s14, 1
    %p126 = por %p124, %p125
    %p127 = scmp.ne.s32.totalorder %s116, %s117
    %p128 = scmp.eq.s32.totalorder %s14, 0
    %p129 = por %p127, %p128
    %p130 = scmp.ne.s32.totalorder %s116, %s117
    %p131 = scmp.eq.s32.totalorder %s15, 1
    %p132 = por %p130, %p131
    %p134 = scmp.ne.s32.totalorder %s117, %s133
    %p135 = scmp.eq.s32.totalorder %s15, 0
    %p136 = por %p134, %p135
    %p137 = scmp.le.s32.totalorder 1, %s9
    %p138 = scmp.lt.s32.totalorder %s9, 3
    %p139 = pnand %p137, %p138
    %p140 = pneg %p139
    // Predicated region
    $region9: #{discriminator_forward.7} parent=5 // pred_check
      _
    $region10: #{discriminator_forward.7} parent=5 // pred_check_branch
      %142 = sbr.rel (%p139) target = $region12
    $region11: #{discriminator_forward.7} parent=5 // pred_region
      %s143 = ssub.s32 %s9, 1
      // Predicated region
      $region13: #{discriminator_forward.7} parent=11 // pred_check
        %p144 = pneg %p75
      $region14: #{discriminator_forward.7} parent=11 // pred_check_branch
        %146 = sbr.rel (%p144) target = $region16
      $region15: #{discriminator_forward.7} parent=11 // pred_region
        %p147 = scmp.lt.s32.totalorder %s18, 0
        %s148 = scalar_select %p147, %s18, 0
        %s149 = smul.addr %s148, 18
        %s150 = smul.addr %s149, 4
        %s151 = scalar_lea.vmem %s1, %s150
      $region16: #{discriminator_forward.7} parent=11 // pred_fallthru
        _
      // Predicated region
      $region17: #{discriminator_forward.7} parent=11 // pred_check
        %p152 = pneg %p101
      $region18: #{discriminator_forward.7} parent=11 // pred_check_branch
        %154 = sbr.rel (%p152) target = $region20
      $region19: #{discriminator_forward.7} parent=11 // pred_region
        %p155 = scmp.lt.s32.totalorder %s18, 0
        %s156 = scalar_select %p155, %s18, 0
        %s157 = scalar_lea.vmem %s2, %s156
      $region20: #{discriminator_forward.7} parent=11 // pred_fallthru
        _
    $region12: #{discriminator_forward.7} parent=5 // pred_fallthru
      _
    %p158 = scmp.lt.s32.totalorder %s9, 2
    // Predicated region
    $region21: #{discriminator_forward.7} parent=5 // pred_check
      %p159 = pneg %p158
    $region22: #{discriminator_forward.7} parent=5 // pred_check_branch
      %161 = sbr.rel (%p159) target = $region24
    $region23: #{discriminator_forward.7} parent=5 // pred_region
      // Predicated region
      $region25: #{discriminator_forward.7} parent=23 // pred_check
        %p162 = pneg %p43
      $region26: #{discriminator_forward.7} parent=23 // pred_check_branch
        %164 = sbr.rel (%p162) target = $region28
      $region27: #{discriminator_forward.7} parent=23 // pred_region
        %p165 = scmp.lt.s32.totalorder %s16, 0
        %s166 = scalar_select %p165, %s16, 0
        %p167 = scmp.lt.s32.totalorder %s17, 1
        %s168 = scalar_select %p167, %s17, 1
        %s169 = smul.addr %s168, 4
        %s170 = smul.addr %s166, 8
        %s171 = sadd.s32 %s169, %s170
        %s172 = smul.addr %s171, 4
        %s173 = scalar_lea.vmem %s0, %s172
      $region28: #{discriminator_forward.7} parent=23 // pred_fallthru
        _
    $region24: #{discriminator_forward.7} parent=5 // pred_fallthru
      _
    %p174 = scmp.le.s32.totalorder 1, %s9
    %p175 = scmp.lt.s32.totalorder %s9, 3
    %p176 = pnand %p174, %p175
    %p177 = pneg %p176
    // Predicated region
    $region29: #{discriminator_forward.7} parent=5 // pred_check
      _
    $region30: #{discriminator_forward.7} parent=5 // pred_check_branch
      %179 = sbr.rel (%p176) target = $region32
    $region31: #{discriminator_forward.7} parent=5 // pred_region
      %s180 = ssub.s32 %s9, 1
      %p181 = scmp.lt.s32.totalorder %s18, 0
      %s182 = scalar_select %p181, %s18, 0
      %p183 = scmp.lt.s32.totalorder %s19, 1
      %s184 = scalar_select %p183, %s19, 1
      %s185 = smul.addr %s184, 4
      %s186 = smul.addr %s182, 8
      %s187 = sadd.s32 %s185, %s186
      %s188 = smul.addr %s187, 4
      %s189 = scalar_lea.vmem %s0, %s188
      %p190 = pneg %p49
      %p191 = pneg %p46
      %p192 = scmp.lt.s32.totalorder %s18, 0
      %s193 = scalar_select %p192, %s18, 0
      %s194 = smul.addr %s193, 18
      %s195 = smul.addr %s194, 4
      %s196 = scalar_lea.vmem %s1, %s195
      %p197 = pneg %p75
      %p198 = pneg %p72
      %p199 = scmp.lt.s32.totalorder %s18, 0
      %s200 = scalar_select %p199, %s18, 0
      %s201 = scalar_lea.vmem %s2, %s200
      %p202 = pneg %p101
      %p203 = pneg %p98
      %p204 = pneg %p129
      %p205 = pneg %p126
      %p206 = scmp.lt.s32.totalorder %s18, 0
      %s207 = scalar_select %p206, %s18, 0
      %p208 = scmp.lt.s32.totalorder %s19, 1
      %s209 = scalar_select %p208, %s19, 1
      %s210 = smul.addr %s209, 2
      %s211 = smul.addr %s207, 4
      %s212 = sadd.s32 %s210, %s211
      %s213 = smul.addr %s212, 8
      %s214 = scalar_lea.vmem %s3, %s213
      %p215 = scmp.lt.s32.totalorder %s18, 0
      %s216 = scalar_select %p215, %s18, 0
      %p217 = scmp.lt.s32.totalorder %s19, 1
      %s218 = scalar_select %p217, %s19, 1
      %s219 = smul.addr %s218, 4
      %s220 = smul.addr %s216, 8
      %s221 = sadd.s32 %s219, %s220
      %s222 = smul.addr %s221, 4
      %s223 = scalar_lea.vmem %s0, %s222
      %p224 = scmp.lt.s32.totalorder %s18, 0
      %s225 = scalar_select %p224, %s18, 0
      %s226 = smul.addr %s225, 18
      %s227 = smul.addr %s226, 4
      %s228 = scalar_lea.vmem %s1, %s227
      %p229 = scmp.lt.s32.totalorder %s18, 0
      %s230 = scalar_select %p229, %s18, 0
      %s231 = scalar_lea.vmem %s2, %s230
      %p232 = scmp.lt.s32.totalorder %s18, 0
      %s233 = scalar_select %p232, %s18, 0
      %p234 = scmp.lt.s32.totalorder %s19, 1
      %s235 = scalar_select %p234, %s19, 1
      %s236 = smul.addr %s235, 2
      %s237 = smul.addr %s233, 4
      %s238 = sadd.s32 %s236, %s237
      %s239 = smul.addr %s238, 8
      %s240 = scalar_lea.vmem %s3, %s239
      %v242 = vld [vmem:[%s223] sm:$0xff]
      %v243 = vld [vmem:[%s223 + $0x8] sm:$0xff]
      %v244 = vld [vmem:[%s228] sm:$0xf]
      %v245 = vld [vmem:[%s228 + $0x4] sm:$0xf]
      %v246 = vld [vmem:[%s228 + $0x8] sm:$0xf]
      %v247 = vld [vmem:[%s228 + $0xc] sm:$0xf]
      %v248 = vld [vmem:[%s228 + $0x10] sm:$0xf]
      %v249 = vld [vmem:[%s228 + $0x14] sm:$0xf]
      %v250 = vld [vmem:[%s228 + $0x18] sm:$0xf]
      %v251 = vld [vmem:[%s228 + $0x1c] sm:$0xf]
      %v252 = vld [vmem:[%s228 + $0x20] sm:$0xf]
      %v253 = vld [vmem:[%s228 + $0x24] sm:$0xf]
      %v254 = vld [vmem:[%s228 + $0x28] sm:$0xf]
      %v255 = vld [vmem:[%s228 + $0x2c] sm:$0xf]
      %v256 = vld [vmem:[%s228 + $0x30] sm:$0xf]
      %v257 = vld [vmem:[%s228 + $0x34] sm:$0xf]
      %v258 = vld [vmem:[%s228 + $0x38] sm:$0xf]
      %v259 = vld [vmem:[%s228 + $0x3c] sm:$0xf]
      %v260 = vld [vmem:[%s228 + $0x40] sm:$0xf]
      %v261 = vld [vmem:[%s228 + $0x44] sm:$0xf]
      %v262 = vld [vmem:[%s231] sm:$0x1]
      %v264 = vlaneseq
      %v265 = vshrl.u32 %v264, 7
      %v266 = vsub.s32 0, %v265
      %v267 = vrot.slane %v262, %v266
      %v271 = vunpack.c.l.b16 %v242
      %v272 = vunpack.c.h.b16 %v242
      %v273 = vunpack.c.l.b16 %v243
      %v274 = vunpack.c.h.b16 %v243
      %v275 = vpack.c.b16 %v273, %v271
      %v276 = vpack.c.b16 %v274, %v272
      %v296 = vunpack.c.l.b16 %v244
      %v297 = vunpack.c.l.b16 %v245
      %v298 = vunpack.c.l.b16 %v246
      %v299 = vunpack.c.l.b16 %v247
      %v300 = vunpack.c.l.b16 %v248
      %v301 = vunpack.c.l.b16 %v249
      %v302 = vunpack.c.l.b16 %v250
      %v303 = vunpack.c.l.b16 %v251
      %v304 = vunpack.c.l.b16 %v252
      %v305 = vunpack.c.l.b16 %v253
      %v306 = vunpack.c.l.b16 %v254
      %v307 = vunpack.c.l.b16 %v255
      %v308 = vunpack.c.l.b16 %v256
      %v309 = vunpack.c.l.b16 %v257
      %v310 = vunpack.c.l.b16 %v258
      %v311 = vunpack.c.l.b16 %v259
      %v312 = vunpack.c.l.b16 %v260
      %v313 = vunpack.c.l.b16 %v261
      %v314 = vpack.c.b16 %v297, %v296
      %v315 = vpack.c.b16 %v299, %v298
      %v316 = vpack.c.b16 %v301, %v300
      %v317 = vpack.c.b16 %v303, %v302
      %v318 = vpack.c.b16 %v305, %v304
      %v319 = vpack.c.b16 %v307, %v306
      %v320 = vpack.c.b16 %v309, %v308
      %v321 = vpack.c.b16 %v311, %v310
      %v322 = vpack.c.b16 %v313, %v312
      %vm332 = vcmask 130048
      %v334 = vsel %vm332, %v276, 0
      %336 = vmatprep.subr.bf16.mxu0 0
      %337 = vmatpush1.bf16.msra.mxu0 %v314
      %338 = vmatprep.subr.bf16.mxu0 0
      %339 = vmatpush1.bf16.msra.mxu0 %v315
      %340 = vmatprep.subr.bf16.mxu0 0
      %341 = vmatpush1.bf16.msra.mxu0 %v316
      %342 = vmatprep.subr.bf16.mxu0 0
      %343 = vmatpush1.bf16.msra.mxu0 %v317
      %344 = vmatprep.subr.bf16.mxu0 0
      %345 = vmatpush1.bf16.msra.mxu0 %v318
      %346 = vmatprep.subr.bf16.mxu0 0
      %347 = vmatpush1.bf16.msra.mxu0 %v319
      %348 = vmatprep.subr.bf16.mxu0 0
      %349 = vmatpush1.bf16.msra.mxu0 %v320
      %350 = vmatprep.subr.bf16.mxu0 0
      %351 = vmatpush1.bf16.msra.mxu0 %v321
      %352 = vmatprep.subr.bf16.mxu0 0
      %353 = vmatpush1.bf16.msra.mxu0 %v322
      %354 = vmatprep.subr.bf16.mxu0 0
      %355 = vmatpush1.bf16.msra.mxu0 0
      %356 = vmatprep.subr.bf16.mxu0 0
      %357 = vmatpush1.bf16.msra.mxu0 0
      %358 = vmatprep.subr.bf16.mxu0 0
      %359 = vmatpush1.bf16.msra.mxu0 0
      %360 = vmatprep.subr.bf16.mxu0 0
      %361 = vmatpush1.bf16.msra.mxu0 0
      %362 = vmatprep.subr.bf16.mxu0 0
      %363 = vmatpush1.bf16.msra.mxu0 0
      %364 = vmatprep.subr.bf16.mxu0 0
      %365 = vmatpush1.bf16.msra.mxu0 0
      %366 = vmatprep.subr.bf16.mxu0 0
      %367 = vmatpush1.bf16.msra.mxu0 0
      %368 = vmatprep.mubr.bf16.mxu0 %v334
      %369 = vmatmul.mubr.bf16.gmra.mrb[0].mxu0 %v275
      %v370 = vpop.f32.mrb[0].mxu0
      %v371 = vadd.f32 %v267, %v370
      %v372 = vpop.f32.mrb[0].mxu0
      %v373 = vpop.f32.mrb[0].mxu0
      %v374 = vadd.f32 %v267, %v373
      %v375 = vpop.f32.mrb[0].mxu0
      %376 = vdwg.mxu0
      %vm377 = vcmask 261120
      %v378 = vsel %vm377, %v371, 0.0
      %v379 = vsel %vm377, %v374, 0.0
      %v380 = vadd.f32 %v378, %v379
      %v381 = vrot.slane %v380, 4
      %v382 = vadd.f32 %v380, %v381
      %v383 = vrot.slane %v382, 2
      %v384 = vadd.f32 %v382, %v383
      %v385 = vrot.slane %v384, 1
      %v386 = vadd.f32 %v384, %v385
      %v387 = vrcp.pop 16.0
      %v388 = vmul.f32 %v386, %v387
      %v389 = vsub.f32 %v371, %v388
      %v390 = vsub.f32 %v374, %v388
      %v391 = vmul.f32 %v389, %v389
      %v392 = vmul.f32 %v390, %v390
      %v393 = vsel %vm377, %v391, 0.0
      %v394 = vsel %vm377, %v392, 0.0
      %v395 = vadd.f32 %v393, %v394
      %v396 = vrot.slane %v395, 4
      %v397 = vadd.f32 %v395, %v396
      %v398 = vrot.slane %v397, 2
      %v399 = vadd.f32 %v397, %v398
      %v400 = vrot.slane %v399, 1
      %v401 = vadd.f32 %v399, %v400
      %v402 = vmul.f32 %v401, %v387
      %v403 = vadd.f32 %v402, 1e-05
      %v404 = vrsqrt.pop %v403
      %v405 = vmul.f32 %v389, %v404
      %v406 = vmul.f32 %v390, %v404
      %vm407 = vcmp.ge.f32.partialorder %v405, 0.0
      %vm408 = vcmp.ge.f32.partialorder %v406, 0.0
      %v409 = vmul.f32 %v405, 0.2
      %v410 = vmul.f32 %v406, 0.2
      %v411 = vsel %vm407, %v405, %v409
      %v412 = vsel %vm408, %v406, %v410
      %413 = vst.msk [vmem:[%s240] sm:$0xff] %vm377, %v411
      %414 = vst.msk [vmem:[%s240 + $0x8] sm:$0xff] %vm377, %v412
      %p415 = scmp.lt.s32.totalorder %s18, 0
      %s416 = scalar_select %p415, %s18, 0
      %p417 = scmp.lt.s32.totalorder %s19, 1
      %s418 = scalar_select %p417, %s19, 1
      %s419 = smul.addr %s418, 2
      %s420 = smul.addr %s416, 4
      %s421 = sadd.s32 %s419, %s420
      %s422 = smul.addr %s421, 8
      %s423 = scalar_lea.vmem %s3, %s422
      // Predicated region
      $region33: #{discriminator_forward.7} parent=31 // pred_check
        %p424 = pneg %p126
      $region34: #{discriminator_forward.7} parent=31 // pred_check_branch
        %426 = sbr.rel (%p424) target = $region36
      $region35: #{discriminator_forward.7} parent=31 // pred_region
        _
      $region36: #{discriminator_forward.7} parent=31 // pred_fallthru
        _
    $region32: #{discriminator_forward.7} parent=5 // pred_fallthru
      _
    %p427 = scmp.le.s32.totalorder 2, %s9
    // Predicated region
    $region37: #{discriminator_forward.7} parent=5 // pred_check
      %p428 = pneg %p427
    $region38: #{discriminator_forward.7} parent=5 // pred_check_branch
      %430 = sbr.rel (%p428) target = $region40
    $region39: #{discriminator_forward.7} parent=5 // pred_region
      %s431 = ssub.s32 %s9, 2
      // Predicated region
      $region41: #{discriminator_forward.7} parent=39 // pred_check
        %p432 = pneg %p132
      $region42: #{discriminator_forward.7} parent=39 // pred_check_branch
        %434 = sbr.rel (%p432) target = $region44
      $region43: #{discriminator_forward.7} parent=39 // pred_region
        %p435 = scmp.lt.s32.totalorder %s20, 0
        %s436 = scalar_select %p435, %s20, 0
        %p437 = scmp.lt.s32.totalorder %s21, 1
        %s438 = scalar_select %p437, %s21, 1
        %s439 = smul.addr %s438, 2
        %s440 = smul.addr %s436, 4
        %s441 = sadd.s32 %s439, %s440
        %s442 = smul.addr %s441, 8
        %s443 = scalar_lea.vmem %s3, %s442
      $region44: #{discriminator_forward.7} parent=39 // pred_fallthru
        _
    $region40: #{discriminator_forward.7} parent=5 // pred_fallthru
      _
  $region6: #{discriminator_forward.7} parent=0 // loop_footer
    %s13 = sadd.s32 1, %s9
  $region7: #{discriminator_forward.7} parent=0 // loop_footer_branch
    %8 = sbr.rel target = $region3
  $region8: #{discriminator_forward.7} parent=0 // loop_exit
    _

// kernel: discriminator_forward.8
$region0: #{discriminator_forward.8}
  #allocation0 [shape = 'u32[]', space=smem, size = 0x4, offset = 0x4, fixed_abs, tag = 'smem constant byte address 0x4 - core index']
  #allocation1 [shape = 'u32[144,128]{1,0:T(1,128)}', space=vmem, size = 0x12000, scoped, tag = 'internal scratch']
  %s0 = inlined_call_operand.vmem [shape: bf16[2,2,4,288], index: 0, kind: input, shape index: {}]
  %s1 = inlined_call_operand.vmem [shape: bf16[2,288,64], index: 1, kind: input, shape index: {}]
  %s2 = inlined_call_operand.vmem [shape: f32[2,1,64], index: 2, kind: input, shape index: {}]
  %s3 = inlined_call_operand.vmem [shape: f32[2,2,4,64], index: 3, kind: output, shape index: {}]
  %s4 = sld [smem:[#allocation0]]
  $region45: #{discriminator_forward.8} parent=0
    _
  %s6 = ssub.s32 1, %s4
  %s7 = scalar_select 0, %s6, %s4
  loop: start=0, step=1, limit=6
  $region2: #{discriminator_forward.8} parent=0 // loop_pre_header
    _
  $region3: #{discriminator_forward.8} parent=0 // loop_header
    %s9 = sphi 0, %s13
    %p10 = scmp.ge.s32.totalorder %s9, 6
    %s16 = sphi 0, %s28
    %s17 = sphi 0, %s24
    %s18 = sphi 0, %s16
    %s19 = sphi 0, %s17
    %s20 = sphi 0, %s18
    %s21 = sphi 0, %s19
    %s33 = sphi 0, %s35
    %s36 = sphi 0, %s33
    %s37 = sphi 0, %s36
    %s53 = sphi 0, %s37
    %s59 = sphi 0, %s61
    %s62 = sphi 0, %s59
    %s63 = sphi 0, %s62
    %s79 = sphi 0, %s63
    %s85 = sphi 0, %s87
    %s88 = sphi 0, %s85
    %s89 = sphi 0, %s88
    %s105 = sphi 0, %s89
    %s113 = sphi 0, %s115
    %s116 = sphi 0, %s113
    %s117 = sphi 0, %s116
    %s133 = sphi 0, %s117
  $region4: #{discriminator_forward.8} parent=0 // loop_header_branch
    %12 = sbr.rel (%p10) target = $region8
  $region5: #{discriminator_forward.8} parent=0 // loop_body
    %s14 = ssub.s32 %s9, 1
    %s15 = ssub.s32 %s9, 2
    %s22 = sadd.s32 1, %s17
    %p23 = scmp.ge.s32.totalorder %s22, 2
    %s24 = scalar_select %p23, 0, %s22
    %s25 = sadd.s32 1, %s16
    %s26 = scalar_select %p23, %s25, %s16
    %p27 = scmp.ge.s32.totalorder %s26, 2
    %s28 = scalar_select %p27, 0, %s26
    %s29 = ssub.s32 %s16, %s28
    %s30 = ssub.s32 %s17, %s24
    %s31 = sor.u32 %s29, %s30
    %p32 = scmp.eq.s32.totalorder %s31, 0
    %s34 = sadd.s32 %s33, 1
    %s35 = scalar_select %p32, %s33, %s34
    %p38 = pneg %p32
    %p39 = scmp.eq.s32.totalorder %s9, 3
    %p40 = por %p38, %p39
    %p41 = scmp.ne.s32.totalorder %s33, %s36
    %p42 = scmp.eq.s32.totalorder %s9, 0
    %p43 = por %p41, %p42
    %p44 = scmp.ne.s32.totalorder %s33, %s36
    %p45 = scmp.eq.s32.totalorder %s14, 3
    %p46 = por %p44, %p45
    %p47 = scmp.ne.s32.totalorder %s36, %s37
    %p48 = scmp.eq.s32.totalorder %s14, 0
    %p49 = por %p47, %p48
    %p50 = scmp.ne.s32.totalorder %s36, %s37
    %p51 = scmp.eq.s32.totalorder %s15, 3
    %p52 = por %p50, %p51
    %p54 = scmp.ne.s32.totalorder %s37, %s53
    %p55 = scmp.eq.s32.totalorder %s15, 0
    %p56 = por %p54, %p55
    %s57 = ssub.s32 %s16, %s28
    %p58 = scmp.eq.s32.totalorder %s57, 0
    %s60 = sadd.s32 %s59, 1
    %s61 = scalar_select %p58, %s59, %s60
    %p64 = pneg %p58
    %p65 = scmp.eq.s32.totalorder %s9, 3
    %p66 = por %p64, %p65
    %p67 = scmp.ne.s32.totalorder %s59, %s62
    %p68 = scmp.eq.s32.totalorder %s9, 0
    %p69 = por %p67, %p68
    %p70 = scmp.ne.s32.totalorder %s59, %s62
    %p71 = scmp.eq.s32.totalorder %s14, 3
    %p72 = por %p70, %p71
    %p73 = scmp.ne.s32.totalorder %s62, %s63
    %p74 = scmp.eq.s32.totalorder %s14, 0
    %p75 = por %p73, %p74
    %p76 = scmp.ne.s32.totalorder %s62, %s63
    %p77 = scmp.eq.s32.totalorder %s15, 3
    %p78 = por %p76, %p77
    %p80 = scmp.ne.s32.totalorder %s63, %s79
    %p81 = scmp.eq.s32.totalorder %s15, 0
    %p82 = por %p80, %p81
    %s83 = ssub.s32 %s16, %s28
    %p84 = scmp.eq.s32.totalorder %s83, 0
    %s86 = sadd.s32 %s85, 1
    %s87 = scalar_select %p84, %s85, %s86
    %p90 = pneg %p84
    %p91 = scmp.eq.s32.totalorder %s9, 3
    %p92 = por %p90, %p91
    %p93 = scmp.ne.s32.totalorder %s85, %s88
    %p94 = scmp.eq.s32.totalorder %s9, 0
    %p95 = por %p93, %p94
    %p96 = scmp.ne.s32.totalorder %s85, %s88
    %p97 = scmp.eq.s32.totalorder %s14, 3
    %p98 = por %p96, %p97
    %p99 = scmp.ne.s32.totalorder %s88, %s89
    %p100 = scmp.eq.s32.totalorder %s14, 0
    %p101 = por %p99, %p100
    %p102 = scmp.ne.s32.totalorder %s88, %s89
    %p103 = scmp.eq.s32.totalorder %s15, 3
    %p104 = por %p102, %p103
    %p106 = scmp.ne.s32.totalorder %s89, %s105
    %p107 = scmp.eq.s32.totalorder %s15, 0
    %p108 = por %p106, %p107
    %s109 = ssub.s32 %s16, %s28
    %s110 = ssub.s32 %s17, %s24
    %s111 = sor.u32 %s109, %s110
    %p112 = scmp.eq.s32.totalorder %s111, 0
    %s114 = sadd.s32 %s113, 1
    %s115 = scalar_select %p112, %s113, %s114
    %p118 = pneg %p112
    %p119 = scmp.eq.s32.totalorder %s9, 3
    %p120 = por %p118, %p119
    %p121 = scmp.ne.s32.totalorder %s113, %s116
    %p122 = scmp.eq.s32.totalorder %s9, 0
    %p123 = por %p121, %p122
    %p124 = scmp.ne.s32.totalorder %s113, %s116
    %p125 = scmp.eq.s32.totalorder %s14, 3
    %p126 = por %p124, %p125
    %p127 = scmp.ne.s32.totalorder %s116, %s117
    %p128 = scmp.eq.s32.totalorder %s14, 0
    %p129 = por %p127, %p128
    %p130 = scmp.ne.s32.totalorder %s116, %s117
    %p131 = scmp.eq.s32.totalorder %s15, 3
    %p132 = por %p130, %p131
    %p134 = scmp.ne.s32.totalorder %s117, %s133
    %p135 = scmp.eq.s32.totalorder %s15, 0
    %p136 = por %p134, %p135
    %p137 = scmp.le.s32.totalorder 1, %s9
    %p138 = scmp.lt.s32.totalorder %s9, 5
    %p139 = pnand %p137, %p138
    %p140 = pneg %p139
    // Predicated region
    $region9: #{discriminator_forward.8} parent=5 // pred_check
      _
    $region10: #{discriminator_forward.8} parent=5 // pred_check_branch
      %142 = sbr.rel (%p139) target = $region12
    $region11: #{discriminator_forward.8} parent=5 // pred_region
      %s143 = ssub.s32 %s9, 1
    $region12: #{discriminator_forward.8} parent=5 // pred_fallthru
      _
    %p144 = scmp.lt.s32.totalorder %s9, 4
    // Predicated region
    $region13: #{discriminator_forward.8} parent=5 // pred_check
      %p145 = pneg %p144
    $region14: #{discriminator_forward.8} parent=5 // pred_check_branch
      %147 = sbr.rel (%p145) target = $region16
    $region15: #{discriminator_forward.8} parent=5 // pred_region
      // Predicated region
      $region17: #{discriminator_forward.8} parent=15 // pred_check
        %p148 = pneg %p43
      $region18: #{discriminator_forward.8} parent=15 // pred_check_branch
        %150 = sbr.rel (%p148) target = $region20
      $region19: #{discriminator_forward.8} parent=15 // pred_region
        %p151 = scmp.lt.s32.totalorder %s16, 1
        %s152 = scalar_select %p151, %s16, 1
        %p153 = scmp.lt.s32.totalorder %s17, 1
        %s154 = scalar_select %p153, %s17, 1
        %s155 = smul.addr %s154, 3
        %s156 = smul.addr %s152, 6
        %s157 = sadd.s32 %s155, %s156
        %s158 = smul.addr %s157, 2
        %s159 = scalar_lea.vmem %s0, %s158
      $region20: #{discriminator_forward.8} parent=15 // pred_fallthru
        _
      // Predicated region
      $region21: #{discriminator_forward.8} parent=15 // pred_check
        %p160 = pneg %p69
      $region22: #{discriminator_forward.8} parent=15 // pred_check_branch
        %162 = sbr.rel (%p160) target = $region24
      $region23: #{discriminator_forward.8} parent=15 // pred_region
        %p163 = scmp.lt.s32.totalorder %s16, 1
        %s164 = scalar_select %p163, %s16, 1
        %s165 = smul.addr %s164, 36
        %s166 = smul.addr %s165, 4
        %s167 = scalar_lea.vmem %s1, %s166
      $region24: #{discriminator_forward.8} parent=15 // pred_fallthru
        _
      // Predicated region
      $region25: #{discriminator_forward.8} parent=15 // pred_check
        %p168 = pneg %p95
      $region26: #{discriminator_forward.8} parent=15 // pred_check_branch
        %170 = sbr.rel (%p168) target = $region28
      $region27: #{discriminator_forward.8} parent=15 // pred_region
        %p171 = scmp.lt.s32.totalorder %s16, 1
        %s172 = scalar_select %p171, %s16, 1
        %s173 = scalar_lea.vmem %s2, %s172
      $region28: #{discriminator_forward.8} parent=15 // pred_fallthru
        _
    $region16: #{discriminator_forward.8} parent=5 // pred_fallthru
      _
    %p174 = scmp.le.s32.totalorder 1, %s9
    %p175 = scmp.lt.s32.totalorder %s9, 5
    %p176 = pnand %p174, %p175
    %p177 = pneg %p176
    // Predicated region
    $region29: #{discriminator_forward.8} parent=5 // pred_check
      _
    $region30: #{discriminator_forward.8} parent=5 // pred_check_branch
      %179 = sbr.rel (%p176) target = $region32
    $region31: #{discriminator_forward.8} parent=5 // pred_region
      %s180 = ssub.s32 %s9, 1
      %p181 = scmp.lt.s32.totalorder %s18, 1
      %s182 = scalar_select %p181, %s18, 1
      %p183 = scmp.lt.s32.totalorder %s19, 1
      %s184 = scalar_select %p183, %s19, 1
      %s185 = smul.addr %s184, 3
      %s186 = smul.addr %s182, 6
      %s187 = sadd.s32 %s185, %s186
      %s188 = smul.addr %s187, 2
      %s189 = scalar_lea.vmem %s0, %s188
      %p190 = pneg %p49
      %p191 = pneg %p46
      %p192 = scmp.lt.s32.totalorder %s18, 1
      %s193 = scalar_select %p192, %s18, 1
      %s194 = smul.addr %s193, 36
      %s195 = smul.addr %s194, 4
      %s196 = scalar_lea.vmem %s1, %s195
      %p197 = pneg %p75
      %p198 = pneg %p72
      %p199 = scmp.lt.s32.totalorder %s18, 1
      %s200 = scalar_select %p199, %s18, 1
      %s201 = scalar_lea.vmem %s2, %s200
      %p202 = pneg %p101
      %p203 = pneg %p98
      %p204 = pneg %p129
      %p205 = pneg %p126
      %p206 = scmp.lt.s32.totalorder %s18, 1
      %s207 = scalar_select %p206, %s18, 1
      %p208 = scmp.lt.s32.totalorder %s19, 1
      %s209 = scalar_select %p208, %s19, 1
      %s210 = smul.addr %s207, 2
      %s211 = sadd.s32 %s209, %s210
      %s212 = smul.addr %s211, 4
      %s213 = scalar_lea.vmem %s3, %s212
      %p214 = scmp.lt.s32.totalorder %s18, 1
      %s215 = scalar_select %p214, %s18, 1
      %p216 = scmp.lt.s32.totalorder %s19, 1
      %s217 = scalar_select %p216, %s19, 1
      %s218 = smul.addr %s217, 3
      %s219 = smul.addr %s215, 6
      %s220 = sadd.s32 %s218, %s219
      %s221 = smul.addr %s220, 2
      %s222 = scalar_lea.vmem %s0, %s221
      %p223 = scmp.lt.s32.totalorder %s18, 1
      %s224 = scalar_select %p223, %s18, 1
      %s225 = smul.addr %s224, 36
      %s226 = smul.addr %s225, 4
      %s227 = scalar_lea.vmem %s1, %s226
      %p228 = scmp.lt.s32.totalorder %s18, 1
      %s229 = scalar_select %p228, %s18, 1
      %s230 = scalar_lea.vmem %s2, %s229
      %p231 = scmp.lt.s32.totalorder %s18, 1
      %s232 = scalar_select %p231, %s18, 1
      %p233 = scmp.lt.s32.totalorder %s19, 1
      %s234 = scalar_select %p233, %s19, 1
      %s235 = smul.addr %s232, 2
      %s236 = sadd.s32 %s234, %s235
      %s237 = smul.addr %s236, 4
      %s238 = scalar_lea.vmem %s3, %s237
      %v240 = vld [vmem:[%s222] sm:$0x3f]
      %v241 = vld [vmem:[%s227] sm:$0xf]
      %v242 = vld [vmem:[%s227 + $0x4] sm:$0xf]
      %v243 = vld [vmem:[%s227 + $0x8] sm:$0xf]
      %v244 = vld [vmem:[%s227 + $0xc] sm:$0xf]
      %v245 = vld [vmem:[%s227 + $0x10] sm:$0xf]
      %v246 = vld [vmem:[%s227 + $0x14] sm:$0xf]
      %v247 = vld [vmem:[%s227 + $0x18] sm:$0xf]
      %v248 = vld [vmem:[%s227 + $0x1c] sm:$0xf]
      %v249 = vld [vmem:[%s227 + $0x20] sm:$0xf]
      %v250 = vld [vmem:[%s227 + $0x24] sm:$0xf]
      %v251 = vld [vmem:[%s227 + $0x28] sm:$0xf]
      %v252 = vld [vmem:[%s227 + $0x2c] sm:$0xf]
      %v253 = vld [vmem:[%s227 + $0x30] sm:$0xf]
      %v254 = vld [vmem:[%s227 + $0x34] sm:$0xf]
      %v255 = vld [vmem:[%s227 + $0x38] sm:$0xf]
      %v256 = vld [vmem:[%s227 + $0x3c] sm:$0xf]
      %v257 = vld [vmem:[%s227 + $0x40] sm:$0xf]
      %v258 = vld [vmem:[%s227 + $0x44] sm:$0xf]
      %v259 = vld [vmem:[%s227 + $0x48] sm:$0xf]
      %v260 = vld [vmem:[%s227 + $0x4c] sm:$0xf]
      %v261 = vld [vmem:[%s227 + $0x50] sm:$0xf]
      %v262 = vld [vmem:[%s227 + $0x54] sm:$0xf]
      %v263 = vld [vmem:[%s227 + $0x58] sm:$0xf]
      %v264 = vld [vmem:[%s227 + $0x5c] sm:$0xf]
      %v265 = vld [vmem:[%s227 + $0x60] sm:$0xf]
      %v266 = vld [vmem:[%s227 + $0x64] sm:$0xf]
      %v267 = vld [vmem:[%s227 + $0x68] sm:$0xf]
      %v268 = vld [vmem:[%s227 + $0x6c] sm:$0xf]
      %v269 = vld [vmem:[%s227 + $0x70] sm:$0xf]
      %v270 = vld [vmem:[%s227 + $0x74] sm:$0xf]
      %v271 = vld [vmem:[%s227 + $0x78] sm:$0xf]
      %v272 = vld [vmem:[%s227 + $0x7c] sm:$0xf]
      %v273 = vld [vmem:[%s227 + $0x80] sm:$0xf]
      %v274 = vld [vmem:[%s227 + $0x84] sm:$0xf]
      %v275 = vld [vmem:[%s227 + $0x88] sm:$0xf]
      %v276 = vld [vmem:[%s227 + $0x8c] sm:$0xf]
      %v277 = vld [vmem:[%s230] sm:$0x1]
      %v279 = vlaneseq
      %v280 = vshrl.u32 %v279, 7
      %v281 = vsub.s32 0, %v280
      %v282 = vrot.slane %v277, %v281
      %v285 = vcombine.high %v240, %v240
      %v287 = vunpack.c.l.s4 1983009808
      %v288 = vunpack.c.0.s8 %v287
      %v289 = vlaneseq
      %v290 = vshrl.u32 %v289, 7
      %v291 = vsub.s32 %v288, %v290
      %v292 = vrot.slane %v240, %v291
      %v294 = vunpack.c.l.s4 1983009808
      %v295 = vunpack.c.0.s8 %v294
      %v296 = vlaneseq
      %v297 = vshrl.u32 %v296, 7
      %v298 = vsub.s32 %v295, %v297
      %v299 = vrot.slane %v285, %v298
      %v300 = vcombine.high %v292, %v292
      %v339 = vunpack.c.l.b16 %v241
      %v340 = vunpack.c.l.b16 %v242
      %v341 = vunpack.c.l.b16 %v243
      %v342 = vunpack.c.l.b16 %v244
      %v343 = vunpack.c.l.b16 %v245
      %v344 = vunpack.c.l.b16 %v246
      %v345 = vunpack.c.l.b16 %v247
      %v346 = vunpack.c.l.b16 %v248
      %v347 = vunpack.c.l.b16 %v249
      %v348 = vunpack.c.l.b16 %v250
      %v349 = vunpack.c.l.b16 %v251
      %v350 = vunpack.c.l.b16 %v252
      %v351 = vunpack.c.l.b16 %v253
      %v352 = vunpack.c.l.b16 %v254
      %v353 = vunpack.c.l.b16 %v255
      %v354 = vunpack.c.l.b16 %v256
      %v355 = vunpack.c.l.b16 %v257
      %v356 = vunpack.c.l.b16 %v258
      %v357 = vunpack.c.l.b16 %v259
      %v358 = vunpack.c.l.b16 %v260
      %v359 = vunpack.c.l.b16 %v261
      %v360 = vunpack.c.l.b16 %v262
      %v361 = vunpack.c.l.b16 %v263
      %v362 = vunpack.c.l.b16 %v264
      %v363 = vunpack.c.l.b16 %v265
      %v364 = vunpack.c.l.b16 %v266
      %v365 = vunpack.c.l.b16 %v267
      %v366 = vunpack.c.l.b16 %v268
      %v367 = vunpack.c.l.b16 %v269
      %v368 = vunpack.c.l.b16 %v270
      %v369 = vunpack.c.l.b16 %v271
      %v370 = vunpack.c.l.b16 %v272
      %v371 = vunpack.c.l.b16 %v273
      %v372 = vunpack.c.l.b16 %v274
      %v373 = vunpack.c.l.b16 %v275
      %v374 = vunpack.c.l.b16 %v276
      %v375 = vpack.c.b16 %v340, %v339
      %v376 = vpack.c.b16 %v342, %v341
      %v377 = vpack.c.b16 %v344, %v343
      %v378 = vpack.c.b16 %v346, %v345
      %v379 = vpack.c.b16 %v348, %v347
      %v380 = vpack.c.b16 %v350, %v349
      %v381 = vpack.c.b16 %v352, %v351
      %v382 = vpack.c.b16 %v354, %v353
      %v383 = vpack.c.b16 %v356, %v355
      %v384 = vpack.c.b16 %v358, %v357
      %v385 = vpack.c.b16 %v360, %v359
      %v386 = vpack.c.b16 %v362, %v361
      %v387 = vpack.c.b16 %v364, %v363
      %v388 = vpack.c.b16 %v366, %v365
      %v389 = vpack.c.b16 %v368, %v367
      %v390 = vpack.c.b16 %v370, %v369
      %v391 = vpack.c.b16 %v372, %v371
      %v392 = vpack.c.b16 %v374, %v373
      %vm411 = vcmask 261120
      %v413 = vsel %vm411, %v299, 0
      %415 = vmatprep.subr.bf16.mxu0 0
      %416 = vmatpush1.bf16.msra.mxu0 %v375
      %417 = vmatprep.subr.bf16.mxu0 0
      %418 = vmatpush1.bf16.msra.mxu0 %v376
      %419 = vmatprep.subr.bf16.mxu0 0
      %420 = vmatpush1.bf16.msra.mxu0 %v377
      %421 = vmatprep.subr.bf16.mxu0 0
      %422 = vmatpush1.bf16.msra.mxu0 %v378
      %423 = vmatprep.subr.bf16.mxu0 0
      %424 = vmatpush1.bf16.msra.mxu0 %v379
      %425 = vmatprep.subr.bf16.mxu0 0
      %426 = vmatpush1.bf16.msra.mxu0 %v380
      %427 = vmatprep.subr.bf16.mxu0 0
      %428 = vmatpush1.bf16.msra.mxu0 %v381
      %429 = vmatprep.subr.bf16.mxu0 0
      %430 = vmatpush1.bf16.msra.mxu0 %v382
      %431 = vmatprep.subr.bf16.mxu0 0
      %432 = vmatpush1.bf16.msra.mxu0 %v383
      %433 = vmatprep.subr.bf16.mxu0 0
      %434 = vmatpush1.bf16.msra.mxu0 %v384
      %435 = vmatprep.subr.bf16.mxu0 0
      %436 = vmatpush1.bf16.msra.mxu0 %v385
      %437 = vmatprep.subr.bf16.mxu0 0
      %438 = vmatpush1.bf16.msra.mxu0 %v386
      %439 = vmatprep.subr.bf16.mxu0 0
      %440 = vmatpush1.bf16.msra.mxu0 %v387
      %441 = vmatprep.subr.bf16.mxu0 0
      %442 = vmatpush1.bf16.msra.mxu0 %v388
      %443 = vmatprep.subr.bf16.mxu0 0
      %444 = vmatpush1.bf16.msra.mxu0 %v389
      %445 = vmatprep.subr.bf16.mxu0 0
      %446 = vmatpush1.bf16.msra.mxu0 %v390
      %447 = vmatprep.mubr.bf16.mxu0 %v300
      %448 = vmatmul.mubr.bf16.gmra.mrb[0].mxu0 %v292
      %v449 = vpop.f32.mrb[0].mxu0
      %v450 = vadd.f32 %v282, %v449
      %v451 = vpop.f32.mrb[0].mxu0
      %v452 = vpop.f32.mrb[0].mxu0
      %v453 = vpop.f32.mrb[0].mxu0
      %454 = vdwg.mxu0
      %455 = vmatprep.subr.bf16.mxu0 0
      %456 = vmatpush1.bf16.msra.mxu0 %v391
      %457 = vmatprep.subr.bf16.mxu0 0
      %458 = vmatpush1.bf16.msra.mxu0 %v392
      %459 = vmatprep.subr.bf16.mxu0 0
      %460 = vmatpush1.bf16.msra.mxu0 0
      %461 = vmatprep.subr.bf16.mxu0 0
      %462 = vmatpush1.bf16.msra.mxu0 0
      %463 = vmatprep.subr.bf16.mxu0 0
      %464 = vmatpush1.bf16.msra.mxu0 0
      %465 = vmatprep.subr.bf16.mxu0 0
      %466 = vmatpush1.bf16.msra.mxu0 0
      %467 = vmatprep.subr.bf16.mxu0 0
      %468 = vmatpush1.bf16.msra.mxu0 0
      %469 = vmatprep.subr.bf16.mxu0 0
      %470 = vmatpush1.bf16.msra.mxu0 0
      %471 = vmatprep.subr.bf16.mxu0 0
      %472 = vmatpush1.bf16.msra.mxu0 0
      %473 = vmatprep.subr.bf16.mxu0 0
      %474 = vmatpush1.bf16.msra.mxu0 0
      %475 = vmatprep.subr.bf16.mxu0 0
      %476 = vmatpush1.bf16.msra.mxu0 0
      %477 = vmatprep.subr.bf16.mxu0 0
      %478 = vmatpush1.bf16.msra.mxu0 0
      %479 = vmatprep.subr.bf16.mxu0 0
      %480 = vmatpush1.bf16.msra.mxu0 0
      %481 = vmatprep.subr.bf16.mxu0 0
      %482 = vmatpush1.bf16.msra.mxu0 0
      %483 = vmatprep.subr.bf16.mxu0 0
      %484 = vmatpush1.bf16.msra.mxu0 0
      %485 = vmatprep.subr.bf16.mxu0 0
      %486 = vmatpush1.bf16.msra.mxu0 0
      %487 = vmatprep.mubr.bf16.mxu0 0
      %488 = vmatmul.mubr.bf16.gmra.mrb[0].mxu0 %v413
      %v489 = vpop.f32.mrb[0].mxu0
      %v490 = vadd.f32 %v450, %v489
      %v491 = vpop.f32.mrb[0].mxu0
      %v492 = vpop.f32.mrb[0].mxu0
      %v493 = vpop.f32.mrb[0].mxu0
      %494 = vdwg.mxu0
      %vm495 = vcmask 519168
      %v496 = vsel %vm495, %v490, 0.0
      %v497 = vrot.slane %v496, 4
      %v498 = vadd.f32 %v496, %v497
      %v499 = vrot.slane %v498, 2
      %v500 = vadd.f32 %v498, %v499
      %v501 = vrot.slane %v500, 1
      %v502 = vadd.f32 %v500, %v501
      %v503 = vrcp.pop 4.0
      %v504 = vmul.f32 %v502, %v503
      %v505 = vsub.f32 %v490, %v504
      %v506 = vmul.f32 %v505, %v505
      %v507 = vsel %vm495, %v506, 0.0
      %v508 = vrot.slane %v507, 4
      %v509 = vadd.f32 %v507, %v508
      %v510 = vrot.slane %v509, 2
      %v511 = vadd.f32 %v509, %v510
      %v512 = vrot.slane %v511, 1
      %v513 = vadd.f32 %v511, %v512
      %v514 = vmul.f32 %v513, %v503
      %v515 = vadd.f32 %v514, 1e-05
      %v516 = vrsqrt.pop %v515
      %v517 = vmul.f32 %v505, %v516
      %vm518 = vcmp.ge.f32.partialorder %v517, 0.0
      %v519 = vmul.f32 %v517, 0.2
      %v520 = vsel %vm518, %v517, %v519
      %521 = vst.msk [vmem:[%s238] sm:$0xf] %vm495, %v520
      %p522 = scmp.lt.s32.totalorder %s18, 1
      %s523 = scalar_select %p522, %s18, 1
      %p524 = scmp.lt.s32.totalorder %s19, 1
      %s525 = scalar_select %p524, %s19, 1
      %s526 = smul.addr %s523, 2
      %s527 = sadd.s32 %s525, %s526
      %s528 = smul.addr %s527, 4
      %s529 = scalar_lea.vmem %s3, %s528
      // Predicated region
      $region33: #{discriminator_forward.8} parent=31 // pred_check
        %p530 = pneg %p126
      $region34: #{discriminator_forward.8} parent=31 // pred_check_branch
        %532 = sbr.rel (%p530) target = $region36
      $region35: #{discriminator_forward.8} parent=31 // pred_region
        _
      $region36: #{discriminator_forward.8} parent=31 // pred_fallthru
        _
    $region32: #{discriminator_forward.8} parent=5 // pred_fallthru
      _
    %p533 = scmp.le.s32.totalorder 2, %s9
    // Predicated region
    $region37: #{discriminator_forward.8} parent=5 // pred_check
      %p534 = pneg %p533
    $region38: #{discriminator_forward.8} parent=5 // pred_check_branch
      %536 = sbr.rel (%p534) target = $region40
    $region39: #{discriminator_forward.8} parent=5 // pred_region
      %s537 = ssub.s32 %s9, 2
      // Predicated region
      $region41: #{discriminator_forward.8} parent=39 // pred_check
        %p538 = pneg %p132
      $region42: #{discriminator_forward.8} parent=39 // pred_check_branch
        %540 = sbr.rel (%p538) target = $region44
      $region43: #{discriminator_forward.8} parent=39 // pred_region
        %p541 = scmp.lt.s32.totalorder %s20, 1
        %s542 = scalar_select %p541, %s20, 1
        %p543 = scmp.lt.s32.totalorder %s21, 1
        %s544 = scalar_select %p543, %s21, 1
        %s545 = smul.addr %s542, 2
        %s546 = sadd.s32 %s544, %s545
        %s547 = smul.addr %s546, 4
        %s548 = scalar_lea.vmem %s3, %s547
      $region44: #{discriminator_forward.8} parent=39 // pred_fallthru
        _
    $region40: #{discriminator_forward.8} parent=5 // pred_fallthru
      _
  $region6: #{discriminator_forward.8} parent=0 // loop_footer
    %s13 = sadd.s32 1, %s9
  $region7: #{discriminator_forward.8} parent=0 // loop_footer_branch
    %8 = sbr.rel target = $region3
  $region8: #{discriminator_forward.8} parent=0 // loop_exit
    _

// kernel: discriminator_forward.9
$region0: #{discriminator_forward.9}
  #allocation0 [shape = 'u32[]', space=smem, size = 0x4, offset = 0x4, fixed_abs, tag = 'smem constant byte address 0x4 - core index']
  #allocation1 [shape = 'u32[144,128]{1,0:T(1,128)}', space=vmem, size = 0x12000, scoped, tag = 'internal scratch']
  %s0 = inlined_call_operand.vmem [shape: bf16[2,2,1,576], index: 0, kind: input, shape index: {}]
  %s1 = inlined_call_operand.vmem [shape: bf16[2,576,1], index: 1, kind: input, shape index: {}]
  %s2 = inlined_call_operand.vmem [shape: f32[2,1,1], index: 2, kind: input, shape index: {}]
  %s3 = inlined_call_operand.vmem [shape: f32[2,2,1,1], index: 3, kind: output, shape index: {}]
  %s4 = sld [smem:[#allocation0]]
  $region45: #{discriminator_forward.9} parent=0
    _
  %s6 = ssub.s32 1, %s4
  %s7 = scalar_select 0, %s6, %s4
  loop: start=0, step=1, limit=6
  $region2: #{discriminator_forward.9} parent=0 // loop_pre_header
    _
  $region3: #{discriminator_forward.9} parent=0 // loop_header
    %s9 = sphi 0, %s13
    %p10 = scmp.ge.s32.totalorder %s9, 6
    %s16 = sphi 0, %s28
    %s17 = sphi 0, %s24
    %s18 = sphi 0, %s16
    %s19 = sphi 0, %s17
    %s20 = sphi 0, %s18
    %s21 = sphi 0, %s19
    %s33 = sphi 0, %s35
    %s36 = sphi 0, %s33
    %s37 = sphi 0, %s36
    %s53 = sphi 0, %s37
    %s59 = sphi 0, %s61
    %s62 = sphi 0, %s59
    %s63 = sphi 0, %s62
    %s79 = sphi 0, %s63
    %s85 = sphi 0, %s87
    %s88 = sphi 0, %s85
    %s89 = sphi 0, %s88
    %s105 = sphi 0, %s89
    %s113 = sphi 0, %s115
    %s116 = sphi 0, %s113
    %s117 = sphi 0, %s116
    %s133 = sphi 0, %s117
  $region4: #{discriminator_forward.9} parent=0 // loop_header_branch
    %12 = sbr.rel (%p10) target = $region8
  $region5: #{discriminator_forward.9} parent=0 // loop_body
    %s14 = ssub.s32 %s9, 1
    %s15 = ssub.s32 %s9, 2
    %s22 = sadd.s32 1, %s17
    %p23 = scmp.ge.s32.totalorder %s22, 2
    %s24 = scalar_select %p23, 0, %s22
    %s25 = sadd.s32 1, %s16
    %s26 = scalar_select %p23, %s25, %s16
    %p27 = scmp.ge.s32.totalorder %s26, 2
    %s28 = scalar_select %p27, 0, %s26
    %s29 = ssub.s32 %s16, %s28
    %s30 = ssub.s32 %s17, %s24
    %s31 = sor.u32 %s29, %s30
    %p32 = scmp.eq.s32.totalorder %s31, 0
    %s34 = sadd.s32 %s33, 1
    %s35 = scalar_select %p32, %s33, %s34
    %p38 = pneg %p32
    %p39 = scmp.eq.s32.totalorder %s9, 3
    %p40 = por %p38, %p39
    %p41 = scmp.ne.s32.totalorder %s33, %s36
    %p42 = scmp.eq.s32.totalorder %s9, 0
    %p43 = por %p41, %p42
    %p44 = scmp.ne.s32.totalorder %s33, %s36
    %p45 = scmp.eq.s32.totalorder %s14, 3
    %p46 = por %p44, %p45
    %p47 = scmp.ne.s32.totalorder %s36, %s37
    %p48 = scmp.eq.s32.totalorder %s14, 0
    %p49 = por %p47, %p48
    %p50 = scmp.ne.s32.totalorder %s36, %s37
    %p51 = scmp.eq.s32.totalorder %s15, 3
    %p52 = por %p50, %p51
    %p54 = scmp.ne.s32.totalorder %s37, %s53
    %p55 = scmp.eq.s32.totalorder %s15, 0
    %p56 = por %p54, %p55
    %s57 = ssub.s32 %s16, %s28
    %p58 = scmp.eq.s32.totalorder %s57, 0
    %s60 = sadd.s32 %s59, 1
    %s61 = scalar_select %p58, %s59, %s60
    %p64 = pneg %p58
    %p65 = scmp.eq.s32.totalorder %s9, 3
    %p66 = por %p64, %p65
    %p67 = scmp.ne.s32.totalorder %s59, %s62
    %p68 = scmp.eq.s32.totalorder %s9, 0
    %p69 = por %p67, %p68
    %p70 = scmp.ne.s32.totalorder %s59, %s62
    %p71 = scmp.eq.s32.totalorder %s14, 3
    %p72 = por %p70, %p71
    %p73 = scmp.ne.s32.totalorder %s62, %s63
    %p74 = scmp.eq.s32.totalorder %s14, 0
    %p75 = por %p73, %p74
    %p76 = scmp.ne.s32.totalorder %s62, %s63
    %p77 = scmp.eq.s32.totalorder %s15, 3
    %p78 = por %p76, %p77
    %p80 = scmp.ne.s32.totalorder %s63, %s79
    %p81 = scmp.eq.s32.totalorder %s15, 0
    %p82 = por %p80, %p81
    %s83 = ssub.s32 %s16, %s28
    %p84 = scmp.eq.s32.totalorder %s83, 0
    %s86 = sadd.s32 %s85, 1
    %s87 = scalar_select %p84, %s85, %s86
    %p90 = pneg %p84
    %p91 = scmp.eq.s32.totalorder %s9, 3
    %p92 = por %p90, %p91
    %p93 = scmp.ne.s32.totalorder %s85, %s88
    %p94 = scmp.eq.s32.totalorder %s9, 0
    %p95 = por %p93, %p94
    %p96 = scmp.ne.s32.totalorder %s85, %s88
    %p97 = scmp.eq.s32.totalorder %s14, 3
    %p98 = por %p96, %p97
    %p99 = scmp.ne.s32.totalorder %s88, %s89
    %p100 = scmp.eq.s32.totalorder %s14, 0
    %p101 = por %p99, %p100
    %p102 = scmp.ne.s32.totalorder %s88, %s89
    %p103 = scmp.eq.s32.totalorder %s15, 3
    %p104 = por %p102, %p103
    %p106 = scmp.ne.s32.totalorder %s89, %s105
    %p107 = scmp.eq.s32.totalorder %s15, 0
    %p108 = por %p106, %p107
    %s109 = ssub.s32 %s16, %s28
    %s110 = ssub.s32 %s17, %s24
    %s111 = sor.u32 %s109, %s110
    %p112 = scmp.eq.s32.totalorder %s111, 0
    %s114 = sadd.s32 %s113, 1
    %s115 = scalar_select %p112, %s113, %s114
    %p118 = pneg %p112
    %p119 = scmp.eq.s32.totalorder %s9, 3
    %p120 = por %p118, %p119
    %p121 = scmp.ne.s32.totalorder %s113, %s116
    %p122 = scmp.eq.s32.totalorder %s9, 0
    %p123 = por %p121, %p122
    %p124 = scmp.ne.s32.totalorder %s113, %s116
    %p125 = scmp.eq.s32.totalorder %s14, 3
    %p126 = por %p124, %p125
    %p127 = scmp.ne.s32.totalorder %s116, %s117
    %p128 = scmp.eq.s32.totalorder %s14, 0
    %p129 = por %p127, %p128
    %p130 = scmp.ne.s32.totalorder %s116, %s117
    %p131 = scmp.eq.s32.totalorder %s15, 3
    %p132 = por %p130, %p131
    %p134 = scmp.ne.s32.totalorder %s117, %s133
    %p135 = scmp.eq.s32.totalorder %s15, 0
    %p136 = por %p134, %p135
    %p137 = scmp.le.s32.totalorder 1, %s9
    %p138 = scmp.lt.s32.totalorder %s9, 5
    %p139 = pnand %p137, %p138
    %p140 = pneg %p139
    // Predicated region
    $region9: #{discriminator_forward.9} parent=5 // pred_check
      _
    $region10: #{discriminator_forward.9} parent=5 // pred_check_branch
      %142 = sbr.rel (%p139) target = $region12
    $region11: #{discriminator_forward.9} parent=5 // pred_region
      %s143 = ssub.s32 %s9, 1
    $region12: #{discriminator_forward.9} parent=5 // pred_fallthru
      _
    %p144 = scmp.lt.s32.totalorder %s9, 4
    // Predicated region
    $region13: #{discriminator_forward.9} parent=5 // pred_check
      %p145 = pneg %p144
    $region14: #{discriminator_forward.9} parent=5 // pred_check_branch
      %147 = sbr.rel (%p145) target = $region16
    $region15: #{discriminator_forward.9} parent=5 // pred_region
      // Predicated region
      $region17: #{discriminator_forward.9} parent=15 // pred_check
        %p148 = pneg %p43
      $region18: #{discriminator_forward.9} parent=15 // pred_check_branch
        %150 = sbr.rel (%p148) target = $region20
      $region19: #{discriminator_forward.9} parent=15 // pred_region
        %p151 = scmp.lt.s32.totalorder %s16, 1
        %s152 = scalar_select %p151, %s16, 1
        %p153 = scmp.lt.s32.totalorder %s17, 1
        %s154 = scalar_select %p153, %s17, 1
        %s155 = smul.addr %s154, 5
        %s156 = smul.addr %s152, 10
        %s157 = sadd.s32 %s155, %s156
        %s158 = scalar_lea.vmem %s0, %s157
      $region20: #{discriminator_forward.9} parent=15 // pred_fallthru
        _
      // Predicated region
      $region21: #{discriminator_forward.9} parent=15 // pred_check
        %p159 = pneg %p69
      $region22: #{discriminator_forward.9} parent=15 // pred_check_branch
        %161 = sbr.rel (%p159) target = $region24
      $region23: #{discriminator_forward.9} parent=15 // pred_region
        %p162 = scmp.lt.s32.totalorder %s16, 1
        %s163 = scalar_select %p162, %s16, 1
        %s164 = smul.addr %s163, 72
        %s165 = smul.addr %s164, 4
        %s166 = scalar_lea.vmem %s1, %s165
      $region24: #{discriminator_forward.9} parent=15 // pred_fallthru
        _
      // Predicated region
      $region25: #{discriminator_forward.9} parent=15 // pred_check
        %p167 = pneg %p95
      $region26: #{discriminator_forward.9} parent=15 // pred_check_branch
        %169 = sbr.rel (%p167) target = $region28
      $region27: #{discriminator_forward.9} parent=15 // pred_region
        %p170 = scmp.lt.s32.totalorder %s16, 1
        %s171 = scalar_select %p170, %s16, 1
        %s172 = scalar_lea.vmem %s2, %s171
      $region28: #{discriminator_forward.9} parent=15 // pred_fallthru
        _
    $region16: #{discriminator_forward.9} parent=5 // pred_fallthru
      _
    %p173 = scmp.le.s32.totalorder 1, %s9
    %p174 = scmp.lt.s32.totalorder %s9, 5
    %p175 = pnand %p173, %p174
    %p176 = pneg %p175
    // Predicated region
    $region29: #{discriminator_forward.9} parent=5 // pred_check
      _
    $region30: #{discriminator_forward.9} parent=5 // pred_check_branch
      %178 = sbr.rel (%p175) target = $region32
    $region31: #{discriminator_forward.9} parent=5 // pred_region
      %s179 = ssub.s32 %s9, 1
      %p180 = scmp.lt.s32.totalorder %s18, 1
      %s181 = scalar_select %p180, %s18, 1
      %p182 = scmp.lt.s32.totalorder %s19, 1
      %s183 = scalar_select %p182, %s19, 1
      %s184 = smul.addr %s183, 5
      %s185 = smul.addr %s181, 10
      %s186 = sadd.s32 %s184, %s185
      %s187 = scalar_lea.vmem %s0, %s186
      %p188 = pneg %p49
      %p189 = pneg %p46
      %p190 = scmp.lt.s32.totalorder %s18, 1
      %s191 = scalar_select %p190, %s18, 1
      %s192 = smul.addr %s191, 72
      %s193 = smul.addr %s192, 4
      %s194 = scalar_lea.vmem %s1, %s193
      %p195 = pneg %p75
      %p196 = pneg %p72
      %p197 = scmp.lt.s32.totalorder %s18, 1
      %s198 = scalar_select %p197, %s18, 1
      %s199 = scalar_lea.vmem %s2, %s198
      %p200 = pneg %p101
      %p201 = pneg %p98
      %p202 = pneg %p129
      %p203 = pneg %p126
      %p204 = scmp.lt.s32.totalorder %s18, 1
      %s205 = scalar_select %p204, %s18, 1
      %p206 = scmp.lt.s32.totalorder %s19, 1
      %s207 = scalar_select %p206, %s19, 1
      %s208 = smul.addr %s205, 2
      %s209 = sadd.s32 %s207, %s208
      %s210 = scalar_lea.vmem %s3, %s209
      %p211 = scmp.lt.s32.totalorder %s18, 1
      %s212 = scalar_select %p211, %s18, 1
      %p213 = scmp.lt.s32.totalorder %s19, 1
      %s214 = scalar_select %p213, %s19, 1
      %s215 = smul.addr %s214, 5
      %s216 = smul.addr %s212, 10
      %s217 = sadd.s32 %s215, %s216
      %s218 = scalar_lea.vmem %s0, %s217
      %p219 = scmp.lt.s32.totalorder %s18, 1
      %s220 = scalar_select %p219, %s18, 1
      %s221 = smul.addr %s220, 72
      %s222 = smul.addr %s221, 4
      %s223 = scalar_lea.vmem %s1, %s222
      %p224 = scmp.lt.s32.totalorder %s18, 1
      %s225 = scalar_select %p224, %s18, 1
      %s226 = scalar_lea.vmem %s2, %s225
      %p227 = scmp.lt.s32.totalorder %s18, 1
      %s228 = scalar_select %p227, %s18, 1
      %p229 = scmp.lt.s32.totalorder %s19, 1
      %s230 = scalar_select %p229, %s19, 1
      %s231 = smul.addr %s228, 2
      %s232 = sadd.s32 %s230, %s231
      %s233 = scalar_lea.vmem %s3, %s232
      %v235 = vld [vmem:[%s218] sm:$0x1f]
      %v236 = vld [vmem:[%s223] sm:$0xf]
      %v237 = vld [vmem:[%s223 + $0x4] sm:$0xf]
      %v238 = vld [vmem:[%s223 + $0x8] sm:$0xf]
      %v239 = vld [vmem:[%s223 + $0xc] sm:$0xf]
      %v240 = vld [vmem:[%s223 + $0x10] sm:$0xf]
      %v241 = vld [vmem:[%s223 + $0x14] sm:$0xf]
      %v242 = vld [vmem:[%s223 + $0x18] sm:$0xf]
      %v243 = vld [vmem:[%s223 + $0x1c] sm:$0xf]
      %v244 = vld [vmem:[%s223 + $0x20] sm:$0xf]
      %v245 = vld [vmem:[%s223 + $0x24] sm:$0xf]
      %v246 = vld [vmem:[%s223 + $0x28] sm:$0xf]
      %v247 = vld [vmem:[%s223 + $0x2c] sm:$0xf]
      %v248 = vld [vmem:[%s223 + $0x30] sm:$0xf]
      %v249 = vld [vmem:[%s223 + $0x34] sm:$0xf]
      %v250 = vld [vmem:[%s223 + $0x38] sm:$0xf]
      %v251 = vld [vmem:[%s223 + $0x3c] sm:$0xf]
      %v252 = vld [vmem:[%s223 + $0x40] sm:$0xf]
      %v253 = vld [vmem:[%s223 + $0x44] sm:$0xf]
      %v254 = vld [vmem:[%s223 + $0x48] sm:$0xf]
      %v255 = vld [vmem:[%s223 + $0x4c] sm:$0xf]
      %v256 = vld [vmem:[%s223 + $0x50] sm:$0xf]
      %v257 = vld [vmem:[%s223 + $0x54] sm:$0xf]
      %v258 = vld [vmem:[%s223 + $0x58] sm:$0xf]
      %v259 = vld [vmem:[%s223 + $0x5c] sm:$0xf]
      %v260 = vld [vmem:[%s223 + $0x60] sm:$0xf]
      %v261 = vld [vmem:[%s223 + $0x64] sm:$0xf]
      %v262 = vld [vmem:[%s223 + $0x68] sm:$0xf]
      %v263 = vld [vmem:[%s223 + $0x6c] sm:$0xf]
      %v264 = vld [vmem:[%s223 + $0x70] sm:$0xf]
      %v265 = vld [vmem:[%s223 + $0x74] sm:$0xf]
      %v266 = vld [vmem:[%s223 + $0x78] sm:$0xf]
      %v267 = vld [vmem:[%s223 + $0x7c] sm:$0xf]
      %v268 = vld [vmem:[%s223 + $0x80] sm:$0xf]
      %v269 = vld [vmem:[%s223 + $0x84] sm:$0xf]
      %v270 = vld [vmem:[%s223 + $0x88] sm:$0xf]
      %v271 = vld [vmem:[%s223 + $0x8c] sm:$0xf]
      %v272 = vld [vmem:[%s223 + $0x90] sm:$0xf]
      %v273 = vld [vmem:[%s223 + $0x94] sm:$0xf]
      %v274 = vld [vmem:[%s223 + $0x98] sm:$0xf]
      %v275 = vld [vmem:[%s223 + $0x9c] sm:$0xf]
      %v276 = vld [vmem:[%s223 + $0xa0] sm:$0xf]
      %v277 = vld [vmem:[%s223 + $0xa4] sm:$0xf]
      %v278 = vld [vmem:[%s223 + $0xa8] sm:$0xf]
      %v279 = vld [vmem:[%s223 + $0xac] sm:$0xf]
      %v280 = vld [vmem:[%s223 + $0xb0] sm:$0xf]
      %v281 = vld [vmem:[%s223 + $0xb4] sm:$0xf]
      %v282 = vld [vmem:[%s223 + $0xb8] sm:$0xf]
      %v283 = vld [vmem:[%s223 + $0xbc] sm:$0xf]
      %v284 = vld [vmem:[%s223 + $0xc0] sm:$0xf]
      %v285 = vld [vmem:[%s223 + $0xc4] sm:$0xf]
      %v286 = vld [vmem:[%s223 + $0xc8] sm:$0xf]
      %v287 = vld [vmem:[%s223 + $0xcc] sm:$0xf]
      %v288 = vld [vmem:[%s223 + $0xd0] sm:$0xf]
      %v289 = vld [vmem:[%s223 + $0xd4] sm:$0xf]
      %v290 = vld [vmem:[%s223 + $0xd8] sm:$0xf]
      %v291 = vld [vmem:[%s223 + $0xdc] sm:$0xf]
      %v292 = vld [vmem:[%s223 + $0xe0] sm:$0xf]
      %v293 = vld [vmem:[%s223 + $0xe4] sm:$0xf]
      %v294 = vld [vmem:[%s223 + $0xe8] sm:$0xf]
      %v295 = vld [vmem:[%s223 + $0xec] sm:$0xf]
      %v296 = vld [vmem:[%s223 + $0xf0] sm:$0xf]
      %v297 = vld [vmem:[%s223 + $0xf4] sm:$0xf]
      %v298 = vld [vmem:[%s223 + $0xf8] sm:$0xf]
      %v299 = vld [vmem:[%s223 + $0xfc] sm:$0xf]
      %v300 = vld [vmem:[%s223 + $0x100] sm:$0xf]
      %v301 = vld [vmem:[%s223 + $0x104] sm:$0xf]
      %v302 = vld [vmem:[%s223 + $0x108] sm:$0xf]
      %v303 = vld [vmem:[%s223 + $0x10c] sm:$0xf]
      %v304 = vld [vmem:[%s223 + $0x110] sm:$0xf]
      %v305 = vld [vmem:[%s223 + $0x114] sm:$0xf]
      %v306 = vld [vmem:[%s223 + $0x118] sm:$0xf]
      %v307 = vld [vmem:[%s223 + $0x11c] sm:$0xf]
      %v308 = vld [vmem:[%s226] sm:$0x1]
      %v310 = vcombine.high %v235, %v235
      %v312 = vunpack.c.l.s4 1966171168
      %v313 = vunpack.c.0.s8 %v312
      %v314 = vlaneseq
      %v315 = vshrl.u32 %v314, 7
      %v316 = vsub.s32 %v313, %v315
      %v317 = vrot.slane %v235, %v316
      %v319 = vunpack.c.l.s4 1966171168
      %v320 = vunpack.c.0.s8 %v319
      %v321 = vlaneseq
      %v322 = vshrl.u32 %v321, 7
      %v323 = vsub.s32 %v320, %v322
      %v324 = vrot.slane %v310, %v323
      %v325 = vcombine.high %v317, %v317
      %v327 = vunpack.c.l.s4 1966171168
      %v328 = vunpack.c.0.s8 %v327
      %v329 = vlaneseq
      %v330 = vshrl.u32 %v329, 7
      %v331 = vsub.s32 %v328, %v330
      %v332 = vrot.slane %v317, %v331
      %v334 = vunpack.c.l.s4 1966171168
      %v335 = vunpack.c.0.s8 %v334
      %v336 = vlaneseq
      %v337 = vshrl.u32 %v336, 7
      %v338 = vsub.s32 %v335, %v337
      %v339 = vrot.slane %v324, %v338
      %v341 = vunpack.c.l.s4 1966171168
      %v342 = vunpack.c.0.s8 %v341
      %v343 = vlaneseq
      %v344 = vshrl.u32 %v343, 7
      %v345 = vsub.s32 %v342, %v344
      %v346 = vrot.slane %v325, %v345
      %v347 = vcombine.high %v332, %v332
      %v348 = vcombine.high %v346, %v346
      %v425 = vunpack.c.l.b16 %v236
      %v426 = vunpack.c.l.b16 %v237
      %v427 = vunpack.c.l.b16 %v238
      %v428 = vunpack.c.l.b16 %v239
      %v429 = vunpack.c.l.b16 %v240
      %v430 = vunpack.c.l.b16 %v241
      %v431 = vunpack.c.l.b16 %v242
      %v432 = vunpack.c.l.b16 %v243
      %v433 = vunpack.c.l.b16 %v244
      %v434 = vunpack.c.l.b16 %v245
      %v435 = vunpack.c.l.b16 %v246
      %v436 = vunpack.c.l.b16 %v247
      %v437 = vunpack.c.l.b16 %v248
      %v438 = vunpack.c.l.b16 %v249
      %v439 = vunpack.c.l.b16 %v250
      %v440 = vunpack.c.l.b16 %v251
      %v441 = vunpack.c.l.b16 %v252
      %v442 = vunpack.c.l.b16 %v253
      %v443 = vunpack.c.l.b16 %v254
      %v444 = vunpack.c.l.b16 %v255
      %v445 = vunpack.c.l.b16 %v256
      %v446 = vunpack.c.l.b16 %v257
      %v447 = vunpack.c.l.b16 %v258
      %v448 = vunpack.c.l.b16 %v259
      %v449 = vunpack.c.l.b16 %v260
      %v450 = vunpack.c.l.b16 %v261
      %v451 = vunpack.c.l.b16 %v262
      %v452 = vunpack.c.l.b16 %v263
      %v453 = vunpack.c.l.b16 %v264
      %v454 = vunpack.c.l.b16 %v265
      %v455 = vunpack.c.l.b16 %v266
      %v456 = vunpack.c.l.b16 %v267
      %v457 = vunpack.c.l.b16 %v268
      %v458 = vunpack.c.l.b16 %v269
      %v459 = vunpack.c.l.b16 %v270
      %v460 = vunpack.c.l.b16 %v271
      %v461 = vunpack.c.l.b16 %v272
      %v462 = vunpack.c.l.b16 %v273
      %v463 = vunpack.c.l.b16 %v274
      %v464 = vunpack.c.l.b16 %v275
      %v465 = vunpack.c.l.b16 %v276
      %v466 = vunpack.c.l.b16 %v277
      %v467 = vunpack.c.l.b16 %v278
      %v468 = vunpack.c.l.b16 %v279
      %v469 = vunpack.c.l.b16 %v280
      %v470 = vunpack.c.l.b16 %v281
      %v471 = vunpack.c.l.b16 %v282
      %v472 = vunpack.c.l.b16 %v283
      %v473 = vunpack.c.l.b16 %v284
      %v474 = vunpack.c.l.b16 %v285
      %v475 = vunpack.c.l.b16 %v286
      %v476 = vunpack.c.l.b16 %v287
      %v477 = vunpack.c.l.b16 %v288
      %v478 = vunpack.c.l.b16 %v289
      %v479 = vunpack.c.l.b16 %v290
      %v480 = vunpack.c.l.b16 %v291
      %v481 = vunpack.c.l.b16 %v292
      %v482 = vunpack.c.l.b16 %v293
      %v483 = vunpack.c.l.b16 %v294
      %v484 = vunpack.c.l.b16 %v295
      %v485 = vunpack.c.l.b16 %v296
      %v486 = vunpack.c.l.b16 %v297
      %v487 = vunpack.c.l.b16 %v298
      %v488 = vunpack.c.l.b16 %v299
      %v489 = vunpack.c.l.b16 %v300
      %v490 = vunpack.c.l.b16 %v301
      %v491 = vunpack.c.l.b16 %v302
      %v492 = vunpack.c.l.b16 %v303
      %v493 = vunpack.c.l.b16 %v304
      %v494 = vunpack.c.l.b16 %v305
      %v495 = vunpack.c.l.b16 %v306
      %v496 = vunpack.c.l.b16 %v307
      %v497 = vpack.c.b16 %v426, %v425
      %v498 = vpack.c.b16 %v428, %v427
      %v499 = vpack.c.b16 %v430, %v429
      %v500 = vpack.c.b16 %v432, %v431
      %v501 = vpack.c.b16 %v434, %v433
      %v502 = vpack.c.b16 %v436, %v435
      %v503 = vpack.c.b16 %v438, %v437
      %v504 = vpack.c.b16 %v440, %v439
      %v505 = vpack.c.b16 %v442, %v441
      %v506 = vpack.c.b16 %v444, %v443
      %v507 = vpack.c.b16 %v446, %v445
      %v508 = vpack.c.b16 %v448, %v447
      %v509 = vpack.c.b16 %v450, %v449
      %v510 = vpack.c.b16 %v452, %v451
      %v511 = vpack.c.b16 %v454, %v453
      %v512 = vpack.c.b16 %v456, %v455
      %v513 = vpack.c.b16 %v458, %v457
      %v514 = vpack.c.b16 %v460, %v459
      %v515 = vpack.c.b16 %v462, %v461
      %v516 = vpack.c.b16 %v464, %v463
      %v517 = vpack.c.b16 %v466, %v465
      %v518 = vpack.c.b16 %v468, %v467
      %v519 = vpack.c.b16 %v470, %v469
      %v520 = vpack.c.b16 %v472, %v471
      %v521 = vpack.c.b16 %v474, %v473
      %v522 = vpack.c.b16 %v476, %v475
      %v523 = vpack.c.b16 %v478, %v477
      %v524 = vpack.c.b16 %v480, %v479
      %v525 = vpack.c.b16 %v482, %v481
      %v526 = vpack.c.b16 %v484, %v483
      %v527 = vpack.c.b16 %v486, %v485
      %v528 = vpack.c.b16 %v488, %v487
      %v529 = vpack.c.b16 %v490, %v489
      %v530 = vpack.c.b16 %v492, %v491
      %v531 = vpack.c.b16 %v494, %v493
      %v532 = vpack.c.b16 %v496, %v495
      %vm569 = vcmask 523264
      %v571 = vsel %vm569, %v339, 0
      %573 = vmatprep.subr.bf16.mxu0 0
      %574 = vmatpush1.bf16.msra.mxu0 %v497
      %575 = vmatprep.subr.bf16.mxu0 0
      %576 = vmatpush1.bf16.msra.mxu0 %v498
      %577 = vmatprep.subr.bf16.mxu0 0
      %578 = vmatpush1.bf16.msra.mxu0 %v499
      %579 = vmatprep.subr.bf16.mxu0 0
      %580 = vmatpush1.bf16.msra.mxu0 %v500
      %581 = vmatprep.subr.bf16.mxu0 0
      %582 = vmatpush1.bf16.msra.mxu0 %v501
      %583 = vmatprep.subr.bf16.mxu0 0
      %584 = vmatpush1.bf16.msra.mxu0 %v502
      %585 = vmatprep.subr.bf16.mxu0 0
      %586 = vmatpush1.bf16.msra.mxu0 %v503
      %587 = vmatprep.subr.bf16.mxu0 0
      %588 = vmatpush1.bf16.msra.mxu0 %v504
      %589 = vmatprep.subr.bf16.mxu0 0
      %590 = vmatpush1.bf16.msra.mxu0 %v505
      %591 = vmatprep.subr.bf16.mxu0 0
      %592 = vmatpush1.bf16.msra.mxu0 %v506
      %593 = vmatprep.subr.bf16.mxu0 0
      %594 = vmatpush1.bf16.msra.mxu0 %v507
      %595 = vmatprep.subr.bf16.mxu0 0
      %596 = vmatpush1.bf16.msra.mxu0 %v508
      %597 = vmatprep.subr.bf16.mxu0 0
      %598 = vmatpush1.bf16.msra.mxu0 %v509
      %599 = vmatprep.subr.bf16.mxu0 0
      %600 = vmatpush1.bf16.msra.mxu0 %v510
      %601 = vmatprep.subr.bf16.mxu0 0
      %602 = vmatpush1.bf16.msra.mxu0 %v511
      %603 = vmatprep.subr.bf16.mxu0 0
      %604 = vmatpush1.bf16.msra.mxu0 %v512
      %605 = vmatprep.mubr.bf16.mxu0 %v346
      %606 = vmatmul.mubr.bf16.gmra.mrb[0].mxu0 %v332
      %v607 = vpop.f32.mrb[0].mxu0
      %v608 = vadd.f32 %v308, %v607
      %v609 = vpop.f32.mrb[0].mxu0
      %v610 = vpop.f32.mrb[0].mxu0
      %v611 = vpop.f32.mrb[0].mxu0
      %612 = vdwg.mxu0
      %613 = vmatprep.subr.bf16.mxu0 0
      %614 = vmatpush1.bf16.msra.mxu0 %v513
      %615 = vmatprep.subr.bf16.mxu0 0
      %616 = vmatpush1.bf16.msra.mxu0 %v514
      %617 = vmatprep.subr.bf16.mxu0 0
      %618 = vmatpush1.bf16.msra.mxu0 %v515
      %619 = vmatprep.subr.bf16.mxu0 0
      %620 = vmatpush1.bf16.msra.mxu0 %v516
      %621 = vmatprep.subr.bf16.mxu0 0
      %622 = vmatpush1.bf16.msra.mxu0 %v517
      %623 = vmatprep.subr.bf16.mxu0 0
      %624 = vmatpush1.bf16.msra.mxu0 %v518
      %625 = vmatprep.subr.bf16.mxu0 0
      %626 = vmatpush1.bf16.msra.mxu0 %v519
      %627 = vmatprep.subr.bf16.mxu0 0
      %628 = vmatpush1.bf16.msra.mxu0 %v520
      %629 = vmatprep.subr.bf16.mxu0 0
      %630 = vmatpush1.bf16.msra.mxu0 %v521
      %631 = vmatprep.subr.bf16.mxu0 0
      %632 = vmatpush1.bf16.msra.mxu0 %v522
      %633 = vmatprep.subr.bf16.mxu0 0
      %634 = vmatpush1.bf16.msra.mxu0 %v523
      %635 = vmatprep.subr.bf16.mxu0 0
      %636 = vmatpush1.bf16.msra.mxu0 %v524
      %637 = vmatprep.subr.bf16.mxu0 0
      %638 = vmatpush1.bf16.msra.mxu0 %v525
      %639 = vmatprep.subr.bf16.mxu0 0
      %640 = vmatpush1.bf16.msra.mxu0 %v526
      %641 = vmatprep.subr.bf16.mxu0 0
      %642 = vmatpush1.bf16.msra.mxu0 %v527
      %643 = vmatprep.subr.bf16.mxu0 0
      %644 = vmatpush1.bf16.msra.mxu0 %v528
      %645 = vmatprep.mubr.bf16.mxu0 %v348
      %646 = vmatmul.mubr.bf16.gmra.mrb[0].mxu0 %v347
      %v647 = vpop.f32.mrb[0].mxu0
      %v648 = vadd.f32 %v608, %v647
      %v649 = vpop.f32.mrb[0].mxu0
      %v650 = vpop.f32.mrb[0].mxu0
      %v651 = vpop.f32.mrb[0].mxu0
      %652 = vdwg.mxu0
      %653 = vmatprep.subr.bf16.mxu0 0
      %654 = vmatpush1.bf16.msra.mxu0 %v529
      %655 = vmatprep.subr.bf16.mxu0 0
      %656 = vmatpush1.bf16.msra.mxu0 %v530
      %657 = vmatprep.subr.bf16.mxu0 0
      %658 = vmatpush1.bf16.msra.mxu0 %v531
      %659 = vmatprep.subr.bf16.mxu0 0
      %660 = vmatpush1.bf16.msra.mxu0 %v532
      %661 = vmatprep.subr.bf16.mxu0 0
      %662 = vmatpush1.bf16.msra.mxu0 0
      %663 = vmatprep.subr.bf16.mxu0 0
      %664 = vmatpush1.bf16.msra.mxu0 0
      %665 = vmatprep.subr.bf16.mxu0 0
      %666 = vmatpush1.bf16.msra.mxu0 0
      %667 = vmatprep.subr.bf16.mxu0 0
      %668 = vmatpush1.bf16.msra.mxu0 0
      %669 = vmatprep.subr.bf16.mxu0 0
      %670 = vmatpush1.bf16.msra.mxu0 0
      %671 = vmatprep.subr.bf16.mxu0 0
      %672 = vmatpush1.bf16.msra.mxu0 0
      %673 = vmatprep.subr.bf16.mxu0 0
      %674 = vmatpush1.bf16.msra.mxu0 0
      %675 = vmatprep.subr.bf16.mxu0 0
      %676 = vmatpush1.bf16.msra.mxu0 0
      %677 = vmatprep.subr.bf16.mxu0 0
      %678 = vmatpush1.bf16.msra.mxu0 0
      %679 = vmatprep.subr.bf16.mxu0 0
      %680 = vmatpush1.bf16.msra.mxu0 0
      %681 = vmatprep.subr.bf16.mxu0 0
      %682 = vmatpush1.bf16.msra.mxu0 0
      %683 = vmatprep.subr.bf16.mxu0 0
      %684 = vmatpush1.bf16.msra.mxu0 0
      %685 = vmatprep.mubr.bf16.mxu0 0
      %686 = vmatmul.mubr.bf16.gmra.mrb[0].mxu0 %v571
      %v687 = vpop.f32.mrb[0].mxu0
      %v688 = vadd.f32 %v648, %v687
      %v689 = vpop.f32.mrb[0].mxu0
      %v690 = vpop.f32.mrb[0].mxu0
      %v691 = vpop.f32.mrb[0].mxu0
      %692 = vdwg.mxu0
      %vm693 = vcmask 0
      %694 = vst.msk [vmem:[%s233] sm:$0x1] %vm693, %v688
      %p695 = scmp.lt.s32.totalorder %s18, 1
      %s696 = scalar_select %p695, %s18, 1
      %p697 = scmp.lt.s32.totalorder %s19, 1
      %s698 = scalar_select %p697, %s19, 1
      %s699 = smul.addr %s696, 2
      %s700 = sadd.s32 %s698, %s699
      %s701 = scalar_lea.vmem %s3, %s700
      // Predicated region
      $region33: #{discriminator_forward.9} parent=31 // pred_check
        %p702 = pneg %p126
      $region34: #{discriminator_forward.9} parent=31 // pred_check_branch
        %704 = sbr.rel (%p702) target = $region36
      $region35: #{discriminator_forward.9} parent=31 // pred_region
        _
      $region36: #{discriminator_forward.9} parent=31 // pred_fallthru
        _
    $region32: #{discriminator_forward.9} parent=5 // pred_fallthru
      _
    %p705 = scmp.le.s32.totalorder 2, %s9
    // Predicated region
    $region37: #{discriminator_forward.9} parent=5 // pred_check
      %p706 = pneg %p705
    $region38: #{discriminator_forward.9} parent=5 // pred_check_branch
      %708 = sbr.rel (%p706) target = $region40
    $region39: #{discriminator_forward.9} parent=5 // pred_region
      %s709 = ssub.s32 %s9, 2
      // Predicated region
      $region41: #{discriminator_forward.9} parent=39 // pred_check
        %p710 = pneg %p132
      $region42: #{discriminator_forward.9} parent=39 // pred_check_branch
        %712 = sbr.rel (%p710) target = $region44
      $region43: #{discriminator_forward.9} parent=39 // pred_region
        %p713 = scmp.lt.s32.totalorder %s20, 1
        %s714 = scalar_select %p713, %s20, 1
        %p715 = scmp.lt.s32.totalorder %s21, 1
        %s716 = scalar_select %p715, %s21, 1
        %s717 = smul.addr %s714, 2
        %s718 = sadd.s32 %s716, %s717
        %s719 = scalar_lea.vmem %s3, %s718
      $region44: #{discriminator_forward.9} parent=39 // pred_fallthru
        _
    $region40: #{discriminator_forward.9} parent=5 // pred_fallthru
      _
  $region6: #{discriminator_forward.9} parent=0 // loop_footer
    %s13 = sadd.s32 1, %s9
  $region7: #{discriminator_forward.9} parent=0 // loop_footer_branch
    %8 = sbr.rel target = $region3
  $region8: #{discriminator_forward.9} parent=0 // loop_exit
    _

</llo_original>
